<compile_context>
chip_gen: v6e
topology: v6e:2x2x1
jax: 0.10.0
libtpu: 0.0.40
codegen_flags: <defaults>
</compile_context>

<pallas_src>
import numpy as np
import jax
import jax.numpy as jnp
from jax.experimental import pallas as pl
from jax.experimental.pallas import tpu as pltpu


def _round_up(x, m):
    return ((x + m - 1) // m) * m


# ------------------------------ Fused kernel -------------------------------- #

def _make_fused_kernel(n_layers, T, BT, H):
    """Kernel refs (in order):
       x_ref     : (T*BT, E)   bf16  time-major token embeddings (batch tile rows)
       st_ref    : (BT, 1)     int32 pooling-window start per example
       en_ref    : (BT, 1)     int32 pooling-window end   per example
       per layer l: wih (Din, Gp) bf16, whh (H, Gp) bf16, bias (1, Gp) f32
                    (gates packed densely: columns [0:H)=i, [H:2H)=f, [2H:3H)=g, [3H:4H)=o)
       linw_ref  : (H, Lp) bf16, linb_ref : (1, Lp) f32
       logits_ref: (BT, Lp) f32 output
       gx_ref    : (T*BT, Gp) f32 scratch (hoisted input-projection gates)
       hall_ref  : (T*BT, H)  bf16 scratch (previous layer's full output sequence)
       h_ref/c_ref/pooled_ref : (BT, H) f32 scratch (carried state, bounds vreg pressure)
    """
    def kernel(*refs):
        x_ref, st_ref, en_ref = refs[:3]
        layer_refs = refs[3:3 + 3 * n_layers]
        linw_ref, linb_ref, logits_ref = refs[3 + 3 * n_layers:6 + 3 * n_layers]
        gx_ref, hall_ref, h_ref, c_ref, pooled_ref = refs[6 + 3 * n_layers:]

        Gp = gx_ref.shape[1]
        neg_inf = jnp.float32(-jnp.inf)

        # Static lane mask selecting the 'g' (cell candidate, tanh) gate block.
        # Hoisted out of all loops (broadcast_in_dim is not CSE'd by JAX).
        lane = jax.lax.broadcasted_iota(jnp.int32, (BT, Gp), 1)
        g_lane = (lane >= 2 * H) & (lane < 3 * H)

        starts = st_ref[...]                       # (BT, 1) int32
        ends = en_ref[...]                         # (BT, 1) int32

        layer_in = x_ref[...]                      # (T*BT, Din) bf16
        for l in range(n_layers):
            wih_ref, whh_ref, b_ref = layer_refs[3 * l:3 * l + 3]
            last = (l == n_layers - 1)

            # Hoisted input projection + bias: one large MXU matmul over all time steps.
            gx_ref[...] = (jnp.dot(layer_in, wih_ref[...],
                                   preferred_element_type=jnp.float32) + b_ref[...])

            h_ref[...] = jnp.zeros((BT, H), jnp.float32)
            c_ref[...] = jnp.zeros((BT, H), jnp.float32)
            if last:
                pooled_ref[...] = jnp.full((BT, H), neg_inf, jnp.float32)

            for t in range(T):                     # static unroll (T fixed, small)
                row = t * BT
                gates = gx_ref[row:row + BT, :] + jnp.dot(
                    h_ref[...].astype(jnp.bfloat16), whh_ref[...],
                    preferred_element_type=jnp.float32)                  # (BT, Gp)
                # One sigmoid + one tanh over the packed gate block, selected by lane.
                act = jnp.where(g_lane, jnp.tanh(gates), jax.nn.sigmoid(gates))
                i_g = act[:, 0 * H:1 * H]
                f_g = act[:, 1 * H:2 * H]
                g_g = act[:, 2 * H:3 * H]
                o_g = act[:, 3 * H:4 * H]
                c_new = f_g * c_ref[...] + i_g * g_g
                h_new = o_g * jnp.tanh(c_new)
                c_ref[...] = c_new
                h_ref[...] = h_new
                if last:
                    # Online masked max-pool; window mask from two scalar-column compares.
                    in_win = (starts <= t) & (ends > t)                  # (BT, 1) bool
                    pooled_ref[...] = jnp.maximum(
                        pooled_ref[...], jnp.where(in_win, h_new, neg_inf))
                else:
                    hall_ref[row:row + BT, :] = h_new.astype(jnp.bfloat16)

            if not last:
                layer_in = hall_ref[...]           # bf16 already; no bulk cast pass

        nonempty = ends > starts                   # empty window -> zeros (matches spec)
        pooled = jnp.where(nonempty, pooled_ref[...], 0.0)
        logits_ref[...] = (jnp.dot(pooled.astype(jnp.bfloat16), linw_ref[...],
                                   preferred_element_type=jnp.float32) + linb_ref[...])

    return kernel


# --------------------------- Parameter handling ------------------------------ #

def init_params(key, *, vocab_size, dim_embedding, dim_hidden, label_vocab_size,
                n_layers):
    """Raw (PyTorch-layout) parameters; embedding init matches SLURNN.init_weights."""
    keys = jax.random.split(key, 1 + 4 * n_layers + 2)
    ki = iter(keys)
    embedding = jax.random.uniform(next(ki), (vocab_size, dim_embedding),
                                   jnp.float32, -0.1, 0.1)
    layers = []
    k_lstm = 1.0 / np.sqrt(dim_hidden)
    for l in range(n_layers):
        din = dim_embedding if l == 0 else dim_hidden
        layers.append(dict(
            w_ih=jax.random.uniform(next(ki), (4 * dim_hidden, din),
                                    jnp.float32, -k_lstm, k_lstm),
            w_hh=jax.random.uniform(next(ki), (4 * dim_hidden, dim_hidden),
                                    jnp.float32, -k_lstm, k_lstm),
            b_ih=jax.random.uniform(next(ki), (4 * dim_hidden,),
                                    jnp.float32, -k_lstm, k_lstm),
            b_hh=jax.random.uniform(next(ki), (4 * dim_hidden,),
                                    jnp.float32, -k_lstm, k_lstm),
        ))
    k_lin = 1.0 / np.sqrt(dim_hidden)
    lin_w = jax.random.uniform(next(ki), (label_vocab_size, dim_hidden),
                               jnp.float32, -k_lin, k_lin)
    lin_b = jax.random.uniform(next(ki), (label_vocab_size,),
                               jnp.float32, -k_lin, k_lin)
    return dict(embedding=embedding, layers=layers, lin_w=lin_w, lin_b=lin_b)


def pack_params(raw):
    """Dense-pack weights: gates as ONE lane block of width 4H (padded to Gp=128-mult);
    contraction dims (E, H) stay unpadded; label dim padded to Lp."""
    H = raw["layers"][0]["w_hh"].shape[1]
    L = raw["lin_w"].shape[0]
    E = raw["embedding"].shape[1]
    Gp = _round_up(4 * H, 128)
    Lp = _round_up(L, 128)

    layers = []
    for layer in raw["layers"]:
        # PyTorch w_ih: (4H, Din), gate order i,f,g,o stacked on dim 0.
        # Transpose -> (Din, 4H) gives exactly the dense i|f|g|o column layout.
        w_ih = jnp.pad(layer["w_ih"].T, ((0, 0), (0, Gp - 4 * H))).astype(jnp.bfloat16)
        w_hh = jnp.pad(layer["w_hh"].T, ((0, 0), (0, Gp - 4 * H))).astype(jnp.bfloat16)
        bias = jnp.pad(layer["b_ih"] + layer["b_hh"],
                       (0, Gp - 4 * H)).reshape(1, Gp).astype(jnp.float32)
        layers.append(dict(w_ih=w_ih, w_hh=w_hh, bias=bias))

    lin_w = jnp.pad(raw["lin_w"].T, ((0, 0), (0, Lp - L))).astype(jnp.bfloat16)
    lin_b = jnp.pad(raw["lin_b"], (0, Lp - L)).reshape(1, Lp).astype(jnp.float32)
    return dict(embedding=raw["embedding"], layers=layers, lin_w=lin_w, lin_b=lin_b,
                H=H, L=L, E=E, Gp=Gp, Lp=Lp)


# ------------------------------ Full forward --------------------------------- #

def slu_rnn_forward(packed, tokens, positions):
    """tokens: (B, T) int32; positions: Python list of per-example position lists."""
    B, T = tokens.shape
    H, L, E, Gp, Lp = (packed[k] for k in ("H", "L", "E", "Gp", "Lp"))
    n_layers = len(packed["layers"])

    # Batch tile: fold the whole (padded) batch into one grid step when possible,
    # cap at 128 rows (fills the MXU M dim on all generations).
    BT = min(_round_up(max(B, 1), 16), 128)
    B_pad = _round_up(B, BT)
    nb = B_pad // BT

    # --- glue: embedding lookup + layout plumbing (pure JAX, outside the kernel) ---
    x = jnp.take(packed["embedding"], tokens, axis=0).astype(jnp.float32)   # (B, T, E)
    x = jnp.pad(x, ((0, B_pad - B), (0, 0), (0, 0)))
    # (B_pad, T, E) -> (nb, T*BT, E), time-major rows within each batch tile
    x = jnp.transpose(x.reshape(nb, BT, T, E), (0, 2, 1, 3)).reshape(nb, T * BT, E)
    x = x.astype(jnp.bfloat16)

    # --- pooling-window bounds as tiny int32 columns (no lane-broadcast mask) ---
    starts = np.zeros((B_pad,), np.int32)
    ends = np.zeros((B_pad,), np.int32)
    for i, pos in enumerate(positions):
        starts[i], ends[i] = int(pos[-2]), int(pos[-1])
    starts = jnp.asarray(starts.reshape(nb, BT, 1))
    ends = jnp.asarray(ends.reshape(nb, BT, 1))

    flat_w = []
    in_specs = [
        pl.BlockSpec((None, T * BT, E), lambda i: (i, 0, 0)),     # x (batch-tile blocked)
        pl.BlockSpec((None, BT, 1), lambda i: (i, 0, 0)),         # window starts
        pl.BlockSpec((None, BT, 1), lambda i: (i, 0, 0)),         # window ends
    ]
    for layer in packed["layers"]:
        flat_w += [layer["w_ih"], layer["w_hh"], layer["bias"]]
        in_specs += [
            pl.BlockSpec(layer["w_ih"].shape, lambda i: (0, 0)),
            pl.BlockSpec(layer["w_hh"].shape, lambda i: (0, 0)),
            pl.BlockSpec(layer["bias"].shape, lambda i: (0, 0)),
        ]
    flat_w += [packed["lin_w"], packed["lin_b"]]
    in_specs += [pl.BlockSpec((H, Lp), lambda i: (0, 0)),
                 pl.BlockSpec((1, Lp), lambda i: (0, 0))]

    logits_p = pl.pallas_call(
        _make_fused_kernel(n_layers, T, BT, H),
        out_shape=jax.ShapeDtypeStruct((B_pad, Lp), jnp.float32),
        grid=(nb,),
        in_specs=in_specs,
        out_specs=pl.BlockSpec((BT, Lp), lambda i: (i, 0)),
        scratch_shapes=[pltpu.VMEM((T * BT, Gp), jnp.float32),    # hoisted gate projections
                        pltpu.VMEM((T * BT, H), jnp.bfloat16),    # previous layer outputs
                        pltpu.VMEM((BT, H), jnp.float32),         # h
                        pltpu.VMEM((BT, H), jnp.float32),         # c
                        pltpu.VMEM((BT, H), jnp.float32)],        # pooled (running max)
        compiler_params=pltpu.CompilerParams(
            # TODO(synk): use CORE_PARALLEL / pl.core_map on v7x (2 TCs) when nb >= 2.
            dimension_semantics=("parallel",),
            vmem_limit_bytes=32 * 1024 * 1024),                   # same budget on v5e/v6e/v7x
    )(x, starts, ends, *flat_w)

    return logits_p[:B, :L]


# --------------------------- Pure-JAX f32 reference --------------------------- #

def _ref_forward(raw, tokens, positions):
    x = jnp.take(raw["embedding"], tokens, axis=0).astype(jnp.float32)   # (B, T, E)
    B, T, _ = x.shape
    out = x
    for layer in raw["layers"]:
        w_ih, w_hh = layer["w_ih"], layer["w_hh"]
        b = layer["b_ih"] + layer["b_hh"]
        H = w_hh.shape[1]
        h = jnp.zeros((B, H), jnp.float32)
        c = jnp.zeros((B, H), jnp.float32)
        outs = []
        for t in range(T):
            gates = out[:, t, :] @ w_ih.T + h @ w_hh.T + b
            i = jax.nn.sigmoid(gates[:, :H])
            f = jax.nn.sigmoid(gates[:, H:2 * H])
            g = jnp.tanh(gates[:, 2 * H:3 * H])
            o = jax.nn.sigmoid(gates[:, 3 * H:])
            c = f * c + i * g
            h = o * jnp.tanh(c)
            outs.append(h)
        out = jnp.stack(outs, axis=1)                                   # (B, T, H)
    H = out.shape[-1]
    pooled = []
    for i, pos in enumerate(positions):
        s, e = pos[-2], pos[-1]
        pooled.append(jnp.max(out[i, s:e], axis=0) if s != e
                      else jnp.zeros((H,), jnp.float32))
    pooled = jnp.stack(pooled, axis=0)
    return pooled @ raw["lin_w"].T + raw["lin_b"]


# ----------------------------------- Main ------------------------------------ #

if __name__ == "__main__":
    BATCH, SEQ = 2, 8
    VOCAB, EMB, HID, LABELS, N_LAYERS = 50, 32, 32, 8, 2

    key = jax.random.PRNGKey(0)
    k_param, k_tok = jax.random.split(key)

    raw = init_params(k_param, vocab_size=VOCAB, dim_embedding=EMB,
                      dim_hidden=HID, label_vocab_size=LABELS, n_layers=N_LAYERS)
    packed = pack_params(raw)

    tokens = jax.random.randint(k_tok, (BATCH, SEQ), 0, VOCAB, dtype=jnp.int32)
    positions = [[0, SEQ], [2, SEQ - 2]]     # pooling windows pos[-2]:pos[-1]

    logits = slu_rnn_forward(packed, tokens, positions)
    logits = jax.block_until_ready(logits)
    assert logits.shape == (BATCH, LABELS)

    ref = jax.block_until_ready(_ref_forward(raw, tokens, positions))
    # Kernel uses bf16 weights / matmul inputs with f32 accumulation -> small drift vs f32.
    np.testing.assert_allclose(np.asarray(logits), np.asarray(ref), rtol=2e-2, atol=2e-2)

    # TODO(synk): bidirectional and 'mean'/'last' pooling config variants (and train-mode
    # dropout) are not implemented; this covers the max-pool, unidirectional config.
    print("KERNEL_OK")
</pallas_src>

<mosaic_0001>
module attributes {stable_mosaic.version = 11 : i64} {
  func.func @kernel(%arg0: i32, %arg1: memref<1x128x32xbf16, #tpu.memory_space<vmem>>, %arg2: memref<1x16x1xi32, #tpu.memory_space<vmem>>, %arg3: memref<1x16x1xi32, #tpu.memory_space<vmem>>, %arg4: memref<32x128xbf16, #tpu.memory_space<vmem>>, %arg5: memref<32x128xbf16, #tpu.memory_space<vmem>>, %arg6: memref<1x128xf32, #tpu.memory_space<vmem>>, %arg7: memref<32x128xbf16, #tpu.memory_space<vmem>>, %arg8: memref<32x128xbf16, #tpu.memory_space<vmem>>, %arg9: memref<1x128xf32, #tpu.memory_space<vmem>>, %arg10: memref<32x128xbf16, #tpu.memory_space<vmem>>, %arg11: memref<1x128xf32, #tpu.memory_space<vmem>>, %arg12: memref<16x128xf32, #tpu.memory_space<vmem>>, %arg13: memref<128x128xf32, #tpu.memory_space<vmem>>, %arg14: memref<128x32xbf16, #tpu.memory_space<vmem>>, %arg15: memref<16x32xf32, #tpu.memory_space<vmem>>, %arg16: memref<16x32xf32, #tpu.memory_space<vmem>>, %arg17: memref<16x32xf32, #tpu.memory_space<vmem>>) attributes {dimension_semantics = [#tpu.dimension_semantics<parallel>], iteration_bounds = array<i64: 1>, scalar_prefetch = 0 : i64, scratch_operands = 5 : i64, tpu.core_type = #tpu.core_type<tc>, window_params = [{transform_indices = @transform_0, window_bounds = array<i64: 1, 128, 32>}, {transform_indices = @transform_1, window_bounds = array<i64: 1, 16, 1>}, {transform_indices = @transform_2, window_bounds = array<i64: 1, 16, 1>}, {pipeline_mode = #tpu.pipeline_mode<synchronous>, transform_indices = @transform_3, window_bounds = array<i64: 32, 128>}, {pipeline_mode = #tpu.pipeline_mode<synchronous>, transform_indices = @transform_4, window_bounds = array<i64: 32, 128>}, {pipeline_mode = #tpu.pipeline_mode<synchronous>, transform_indices = @transform_5, window_bounds = array<i64: 1, 128>}, {pipeline_mode = #tpu.pipeline_mode<synchronous>, transform_indices = @transform_6, window_bounds = array<i64: 32, 128>}, {pipeline_mode = #tpu.pipeline_mode<synchronous>, transform_indices = @transform_7, window_bounds = array<i64: 32, 128>}, {pipeline_mode = #tpu.pipeline_mode<synchronous>, transform_indices = @transform_8, window_bounds = array<i64: 1, 128>}, {pipeline_mode = #tpu.pipeline_mode<synchronous>, transform_indices = @transform_9, window_bounds = array<i64: 32, 128>}, {pipeline_mode = #tpu.pipeline_mode<synchronous>, transform_indices = @transform_10, window_bounds = array<i64: 1, 128>}, {transform_indices = @transform_11, window_bounds = array<i64: 16, 128>}]} {
    %0 = tpu.iota {dimensions = array<i32: 1>} : vector<16x128xi32>
    %c64_i32 = arith.constant 64 : i32
    %1 = vector.broadcast %c64_i32 : i32 to vector<16x128xi32>
    %2 = arith.cmpi sge, %0, %1 : vector<16x128xi32>
    %c96_i32 = arith.constant 96 : i32
    %3 = vector.broadcast %c96_i32 : i32 to vector<16x128xi32>
    %4 = arith.cmpi slt, %0, %3 : vector<16x128xi32>
    %5 = arith.andi %2, %4 : vector<16x128xi1>
    %c0 = arith.constant 0 : index
    %c0_0 = arith.constant 0 : index
    %c0_1 = arith.constant 0 : index
    %6 = vector.load %arg2[%c0, %c0_0, %c0_1] : memref<1x16x1xi32, #tpu.memory_space<vmem>>, vector<1x16x1xi32>
    %7 = vector.shape_cast %6 : vector<1x16x1xi32> to vector<16x1xi32>
    %c0_2 = arith.constant 0 : index
    %c0_3 = arith.constant 0 : index
    %c0_4 = arith.constant 0 : index
    %8 = vector.load %arg3[%c0_2, %c0_3, %c0_4] : memref<1x16x1xi32, #tpu.memory_space<vmem>>, vector<1x16x1xi32>
    %9 = vector.shape_cast %8 : vector<1x16x1xi32> to vector<16x1xi32>
    %c0_5 = arith.constant 0 : index
    %c0_6 = arith.constant 0 : index
    %c0_7 = arith.constant 0 : index
    %10 = vector.load %arg1[%c0_5, %c0_6, %c0_7] : memref<1x128x32xbf16, #tpu.memory_space<vmem>>, vector<1x128x32xbf16>
    %11 = vector.shape_cast %10 : vector<1x128x32xbf16> to vector<128x32xbf16>
    %c0_8 = arith.constant 0 : index
    %c0_9 = arith.constant 0 : index
    %12 = vector.load %arg4[%c0_8, %c0_9] : memref<32x128xbf16, #tpu.memory_space<vmem>>, vector<32x128xbf16>
    %cst = arith.constant dense<0.000000e+00> : vector<128x128xf32>
    %13 = tpu.matmul %11, %12, %cst {dimension_numbers = #tpu.dot_dimension_numbers<[1], [0], [0], [1], [0, 0, 1, 1], [], []>} : vector<128x32xbf16>, vector<32x128xbf16>, vector<128x128xf32> -> vector<128x128xf32>
    %c0_10 = arith.constant 0 : index
    %c0_11 = arith.constant 0 : index
    %14 = vector.load %arg6[%c0_10, %c0_11] : memref<1x128xf32, #tpu.memory_space<vmem>>, vector<1x128xf32>
    %15 = vector.broadcast %14 : vector<1x128xf32> to vector<128x128xf32>
    %16 = arith.addf %13, %15 : vector<128x128xf32>
    %c0_12 = arith.constant 0 : index
    %c0_13 = arith.constant 0 : index
    %17 = vector.load %arg13[%c0_12, %c0_13] : memref<128x128xf32, #tpu.memory_space<vmem>>, vector<128x128xf32>
    tpu.vector_store %arg13[%c0_12, %c0_13], %16 {strides = array<i32>} : memref<128x128xf32, #tpu.memory_space<vmem>>, vector<128x128xf32>,
    %cst_14 = arith.constant 0.000000e+00 : f32
    %18 = vector.broadcast %cst_14 : f32 to vector<16x32xf32>
    %c0_15 = arith.constant 0 : index
    %c0_16 = arith.constant 0 : index
    %19 = vector.load %arg15[%c0_15, %c0_16] : memref<16x32xf32, #tpu.memory_space<vmem>>, vector<16x32xf32>
    tpu.vector_store %arg15[%c0_15, %c0_16], %18 {strides = array<i32>} : memref<16x32xf32, #tpu.memory_space<vmem>>, vector<16x32xf32>,
    %cst_17 = arith.constant 0.000000e+00 : f32
    %20 = vector.broadcast %cst_17 : f32 to vector<16x32xf32>
    %c0_18 = arith.constant 0 : index
    %c0_19 = arith.constant 0 : index
    %21 = vector.load %arg16[%c0_18, %c0_19] : memref<16x32xf32, #tpu.memory_space<vmem>>, vector<16x32xf32>
    tpu.vector_store %arg16[%c0_18, %c0_19], %20 {strides = array<i32>} : memref<16x32xf32, #tpu.memory_space<vmem>>, vector<16x32xf32>,
    %c0_20 = arith.constant 0 : index
    %c0_21 = arith.constant 0 : index
    %22 = vector.load %arg13[%c0_20, %c0_21] : memref<128x128xf32, #tpu.memory_space<vmem>>, vector<16x128xf32>
    %c0_22 = arith.constant 0 : index
    %c0_23 = arith.constant 0 : index
    %23 = vector.load %arg15[%c0_22, %c0_23] : memref<16x32xf32, #tpu.memory_space<vmem>>, vector<16x32xf32>
    %24 = arith.truncf %23 : vector<16x32xf32> to vector<16x32xbf16>
    %c0_24 = arith.constant 0 : index
    %c0_25 = arith.constant 0 : index
    %25 = vector.load %arg5[%c0_24, %c0_25] : memref<32x128xbf16, #tpu.memory_space<vmem>>, vector<32x128xbf16>
    %cst_26 = arith.constant dense<0.000000e+00> : vector<16x128xf32>
    %26 = tpu.matmul %24, %25, %cst_26 {dimension_numbers = #tpu.dot_dimension_numbers<[1], [0], [0], [1], [0, 0, 1, 1], [], []>} : vector<16x32xbf16>, vector<32x128xbf16>, vector<16x128xf32> -> vector<16x128xf32>
    %27 = arith.addf %22, %26 : vector<16x128xf32>
    %28 = math.tanh %27 : vector<16x128xf32>
    %29 = arith.negf %27 : vector<16x128xf32>
    %30 = math.exp %29 : vector<16x128xf32>
    %cst_27 = arith.constant 1.000000e+00 : f32
    %31 = vector.broadcast %cst_27 : f32 to vector<16x128xf32>
    %32 = arith.addf %31, %30 : vector<16x128xf32>
    %33 = arith.divf %31, %32 : vector<16x128xf32>
    %34 = arith.select %5, %28, %33 : vector<16x128xi1>, vector<16x128xf32>
    %35 = vector.extract_strided_slice %34 {offsets = [0, 0], sizes = [16, 32], strides = [1, 1]} : vector<16x128xf32> to vector<16x32xf32>
    %36 = vector.extract_strided_slice %34 {offsets = [0, 32], sizes = [16, 32], strides = [1, 1]} : vector<16x128xf32> to vector<16x32xf32>
    %37 = vector.extract_strided_slice %34 {offsets = [0, 64], sizes = [16, 32], strides = [1, 1]} : vector<16x128xf32> to vector<16x32xf32>
    %38 = vector.extract_strided_slice %34 {offsets = [0, 96], sizes = [16, 32], strides = [1, 1]} : vector<16x128xf32> to vector<16x32xf32>
    %c0_28 = arith.constant 0 : index
    %c0_29 = arith.constant 0 : index
    %39 = vector.load %arg16[%c0_28, %c0_29] : memref<16x32xf32, #tpu.memory_space<vmem>>, vector<16x32xf32>
    %40 = arith.mulf %36, %39 : vector<16x32xf32>
    %41 = arith.mulf %35, %37 : vector<16x32xf32>
    %42 = arith.addf %40, %41 : vector<16x32xf32>
    %43 = math.tanh %42 : vector<16x32xf32>
    %44 = arith.mulf %38, %43 : vector<16x32xf32>
    %c0_30 = arith.constant 0 : index
    %c0_31 = arith.constant 0 : index
    %45 = vector.load %arg16[%c0_30, %c0_31] : memref<16x32xf32, #tpu.memory_space<vmem>>, vector<16x32xf32>
    tpu.vector_store %arg16[%c0_30, %c0_31], %42 {strides = array<i32>} : memref<16x32xf32, #tpu.memory_space<vmem>>, vector<16x32xf32>,
    %c0_32 = arith.constant 0 : index
    %c0_33 = arith.constant 0 : index
    %46 = vector.load %arg15[%c0_32, %c0_33] : memref<16x32xf32, #tpu.memory_space<vmem>>, vector<16x32xf32>
    tpu.vector_store %arg15[%c0_32, %c0_33], %44 {strides = array<i32>} : memref<16x32xf32, #tpu.memory_space<vmem>>, vector<16x32xf32>,
    %47 = arith.truncf %44 : vector<16x32xf32> to vector<16x32xbf16>
    %c0_34 = arith.constant 0 : index
    %c0_35 = arith.constant 0 : index
    %48 = vector.load %arg14[%c0_34, %c0_35] : memref<128x32xbf16, #tpu.memory_space<vmem>>, vector<16x32xbf16>
    tpu.vector_store %arg14[%c0_34, %c0_35], %47 {strides = array<i32>} : memref<128x32xbf16, #tpu.memory_space<vmem>>, vector<16x32xbf16>,
    %c16 = arith.constant 16 : index
    %c0_36 = arith.constant 0 : index
    %49 = vector.load %arg13[%c16, %c0_36] : memref<128x128xf32, #tpu.memory_space<vmem>>, vector<16x128xf32>
    %c0_37 = arith.constant 0 : index
    %c0_38 = arith.constant 0 : index
    %50 = vector.load %arg15[%c0_37, %c0_38] : memref<16x32xf32, #tpu.memory_space<vmem>>, vector<16x32xf32>
    %51 = arith.truncf %50 : vector<16x32xf32> to vector<16x32xbf16>
    %c0_39 = arith.constant 0 : index
    %c0_40 = arith.constant 0 : index
    %52 = vector.load %arg5[%c0_39, %c0_40] : memref<32x128xbf16, #tpu.memory_space<vmem>>, vector<32x128xbf16>
    %cst_41 = arith.constant dense<0.000000e+00> : vector<16x128xf32>
    %53 = tpu.matmul %51, %52, %cst_41 {dimension_numbers = #tpu.dot_dimension_numbers<[1], [0], [0], [1], [0, 0, 1, 1], [], []>} : vector<16x32xbf16>, vector<32x128xbf16>, vector<16x128xf32> -> vector<16x128xf32>
    %54 = arith.addf %49, %53 : vector<16x128xf32>
    %55 = math.tanh %54 : vector<16x128xf32>
    %56 = arith.negf %54 : vector<16x128xf32>
    %57 = math.exp %56 : vector<16x128xf32>
    %cst_42 = arith.constant 1.000000e+00 : f32
    %58 = vector.broadcast %cst_42 : f32 to vector<16x128xf32>
    %59 = arith.addf %58, %57 : vector<16x128xf32>
    %60 = arith.divf %58, %59 : vector<16x128xf32>
    %61 = arith.select %5, %55, %60 : vector<16x128xi1>, vector<16x128xf32>
    %62 = vector.extract_strided_slice %61 {offsets = [0, 0], sizes = [16, 32], strides = [1, 1]} : vector<16x128xf32> to vector<16x32xf32>
    %63 = vector.extract_strided_slice %61 {offsets = [0, 32], sizes = [16, 32], strides = [1, 1]} : vector<16x128xf32> to vector<16x32xf32>
    %64 = vector.extract_strided_slice %61 {offsets = [0, 64], sizes = [16, 32], strides = [1, 1]} : vector<16x128xf32> to vector<16x32xf32>
    %65 = vector.extract_strided_slice %61 {offsets = [0, 96], sizes = [16, 32], strides = [1, 1]} : vector<16x128xf32> to vector<16x32xf32>
    %c0_43 = arith.constant 0 : index
    %c0_44 = arith.constant 0 : index
    %66 = vector.load %arg16[%c0_43, %c0_44] : memref<16x32xf32, #tpu.memory_space<vmem>>, vector<16x32xf32>
    %67 = arith.mulf %63, %66 : vector<16x32xf32>
    %68 = arith.mulf %62, %64 : vector<16x32xf32>
    %69 = arith.addf %67, %68 : vector<16x32xf32>
    %70 = math.tanh %69 : vector<16x32xf32>
    %71 = arith.mulf %65, %70 : vector<16x32xf32>
    %c0_45 = arith.constant 0 : index
    %c0_46 = arith.constant 0 : index
    %72 = vector.load %arg16[%c0_45, %c0_46] : memref<16x32xf32, #tpu.memory_space<vmem>>, vector<16x32xf32>
    tpu.vector_store %arg16[%c0_45, %c0_46], %69 {strides = array<i32>} : memref<16x32xf32, #tpu.memory_space<vmem>>, vector<16x32xf32>,
    %c0_47 = arith.constant 0 : index
    %c0_48 = arith.constant 0 : index
    %73 = vector.load %arg15[%c0_47, %c0_48] : memref<16x32xf32, #tpu.memory_space<vmem>>, vector<16x32xf32>
    tpu.vector_store %arg15[%c0_47, %c0_48], %71 {strides = array<i32>} : memref<16x32xf32, #tpu.memory_space<vmem>>, vector<16x32xf32>,
    %74 = arith.truncf %71 : vector<16x32xf32> to vector<16x32xbf16>
    %c16_49 = arith.constant 16 : index
    %c0_50 = arith.constant 0 : index
    %75 = vector.load %arg14[%c16_49, %c0_50] : memref<128x32xbf16, #tpu.memory_space<vmem>>, vector<16x32xbf16>
    tpu.vector_store %arg14[%c16_49, %c0_50], %74 {strides = array<i32>} : memref<128x32xbf16, #tpu.memory_space<vmem>>, vector<16x32xbf16>,
    %c32 = arith.constant 32 : index
    %c0_51 = arith.constant 0 : index
    %76 = vector.load %arg13[%c32, %c0_51] : memref<128x128xf32, #tpu.memory_space<vmem>>, vector<16x128xf32>
    %c0_52 = arith.constant 0 : index
    %c0_53 = arith.constant 0 : index
    %77 = vector.load %arg15[%c0_52, %c0_53] : memref<16x32xf32, #tpu.memory_space<vmem>>, vector<16x32xf32>
    %78 = arith.truncf %77 : vector<16x32xf32> to vector<16x32xbf16>
    %c0_54 = arith.constant 0 : index
    %c0_55 = arith.constant 0 : index
    %79 = vector.load %arg5[%c0_54, %c0_55] : memref<32x128xbf16, #tpu.memory_space<vmem>>, vector<32x128xbf16>
    %cst_56 = arith.constant dense<0.000000e+00> : vector<16x128xf32>
    %80 = tpu.matmul %78, %79, %cst_56 {dimension_numbers = #tpu.dot_dimension_numbers<[1], [0], [0], [1], [0, 0, 1, 1], [], []>} : vector<16x32xbf16>, vector<32x128xbf16>, vector<16x128xf32> -> vector<16x128xf32>
    %81 = arith.addf %76, %80 : vector<16x128xf32>
    %82 = math.tanh %81 : vector<16x128xf32>
    %83 = arith.negf %81 : vector<16x128xf32>
    %84 = math.exp %83 : vector<16x128xf32>
    %cst_57 = arith.constant 1.000000e+00 : f32
    %85 = vector.broadcast %cst_57 : f32 to vector<16x128xf32>
    %86 = arith.addf %85, %84 : vector<16x128xf32>
    %87 = arith.divf %85, %86 : vector<16x128xf32>
    %88 = arith.select %5, %82, %87 : vector<16x128xi1>, vector<16x128xf32>
    %89 = vector.extract_strided_slice %88 {offsets = [0, 0], sizes = [16, 32], strides = [1, 1]} : vector<16x128xf32> to vector<16x32xf32>
    %90 = vector.extract_strided_slice %88 {offsets = [0, 32], sizes = [16, 32], strides = [1, 1]} : vector<16x128xf32> to vector<16x32xf32>
    %91 = vector.extract_strided_slice %88 {offsets = [0, 64], sizes = [16, 32], strides = [1, 1]} : vector<16x128xf32> to vector<16x32xf32>
    %92 = vector.extract_strided_slice %88 {offsets = [0, 96], sizes = [16, 32], strides = [1, 1]} : vector<16x128xf32> to vector<16x32xf32>
    %c0_58 = arith.constant 0 : index
    %c0_59 = arith.constant 0 : index
    %93 = vector.load %arg16[%c0_58, %c0_59] : memref<16x32xf32, #tpu.memory_space<vmem>>, vector<16x32xf32>
    %94 = arith.mulf %90, %93 : vector<16x32xf32>
    %95 = arith.mulf %89, %91 : vector<16x32xf32>
    %96 = arith.addf %94, %95 : vector<16x32xf32>
    %97 = math.tanh %96 : vector<16x32xf32>
    %98 = arith.mulf %92, %97 : vector<16x32xf32>
    %c0_60 = arith.constant 0 : index
    %c0_61 = arith.constant 0 : index
    %99 = vector.load %arg16[%c0_60, %c0_61] : memref<16x32xf32, #tpu.memory_space<vmem>>, vector<16x32xf32>
    tpu.vector_store %arg16[%c0_60, %c0_61], %96 {strides = array<i32>} : memref<16x32xf32, #tpu.memory_space<vmem>>, vector<16x32xf32>,
    %c0_62 = arith.constant 0 : index
    %c0_63 = arith.constant 0 : index
    %100 = vector.load %arg15[%c0_62, %c0_63] : memref<16x32xf32, #tpu.memory_space<vmem>>, vector<16x32xf32>
    tpu.vector_store %arg15[%c0_62, %c0_63], %98 {strides = array<i32>} : memref<16x32xf32, #tpu.memory_space<vmem>>, vector<16x32xf32>,
    %101 = arith.truncf %98 : vector<16x32xf32> to vector<16x32xbf16>
    %c32_64 = arith.constant 32 : index
    %c0_65 = arith.constant 0 : index
    %102 = vector.load %arg14[%c32_64, %c0_65] : memref<128x32xbf16, #tpu.memory_space<vmem>>, vector<16x32xbf16>
    tpu.vector_store %arg14[%c32_64, %c0_65], %101 {strides = array<i32>} : memref<128x32xbf16, #tpu.memory_space<vmem>>, vector<16x32xbf16>,
    %c48 = arith.constant 48 : index
    %c0_66 = arith.constant 0 : index
    %103 = vector.load %arg13[%c48, %c0_66] : memref<128x128xf32, #tpu.memory_space<vmem>>, vector<16x128xf32>
    %c0_67 = arith.constant 0 : index
    %c0_68 = arith.constant 0 : index
    %104 = vector.load %arg15[%c0_67, %c0_68] : memref<16x32xf32, #tpu.memory_space<vmem>>, vector<16x32xf32>
    %105 = arith.truncf %104 : vector<16x32xf32> to vector<16x32xbf16>
    %c0_69 = arith.constant 0 : index
    %c0_70 = arith.constant 0 : index
    %106 = vector.load %arg5[%c0_69, %c0_70] : memref<32x128xbf16, #tpu.memory_space<vmem>>, vector<32x128xbf16>
    %cst_71 = arith.constant dense<0.000000e+00> : vector<16x128xf32>
    %107 = tpu.matmul %105, %106, %cst_71 {dimension_numbers = #tpu.dot_dimension_numbers<[1], [0], [0], [1], [0, 0, 1, 1], [], []>} : vector<16x32xbf16>, vector<32x128xbf16>, vector<16x128xf32> -> vector<16x128xf32>
    %108 = arith.addf %103, %107 : vector<16x128xf32>
    %109 = math.tanh %108 : vector<16x128xf32>
    %110 = arith.negf %108 : vector<16x128xf32>
    %111 = math.exp %110 : vector<16x128xf32>
    %cst_72 = arith.constant 1.000000e+00 : f32
    %112 = vector.broadcast %cst_72 : f32 to vector<16x128xf32>
    %113 = arith.addf %112, %111 : vector<16x128xf32>
    %114 = arith.divf %112, %113 : vector<16x128xf32>
    %115 = arith.select %5, %109, %114 : vector<16x128xi1>, vector<16x128xf32>
    %116 = vector.extract_strided_slice %115 {offsets = [0, 0], sizes = [16, 32], strides = [1, 1]} : vector<16x128xf32> to vector<16x32xf32>
    %117 = vector.extract_strided_slice %115 {offsets = [0, 32], sizes = [16, 32], strides = [1, 1]} : vector<16x128xf32> to vector<16x32xf32>
    %118 = vector.extract_strided_slice %115 {offsets = [0, 64], sizes = [16, 32], strides = [1, 1]} : vector<16x128xf32> to vector<16x32xf32>
    %119 = vector.extract_strided_slice %115 {offsets = [0, 96], sizes = [16, 32], strides = [1, 1]} : vector<16x128xf32> to vector<16x32xf32>
    %c0_73 = arith.constant 0 : index
    %c0_74 = arith.constant 0 : index
    %120 = vector.load %arg16[%c0_73, %c0_74] : memref<16x32xf32, #tpu.memory_space<vmem>>, vector<16x32xf32>
    %121 = arith.mulf %117, %120 : vector<16x32xf32>
    %122 = arith.mulf %116, %118 : vector<16x32xf32>
    %123 = arith.addf %121, %122 : vector<16x32xf32>
    %124 = math.tanh %123 : vector<16x32xf32>
    %125 = arith.mulf %119, %124 : vector<16x32xf32>
    %c0_75 = arith.constant 0 : index
    %c0_76 = arith.constant 0 : index
    %126 = vector.load %arg16[%c0_75, %c0_76] : memref<16x32xf32, #tpu.memory_space<vmem>>, vector<16x32xf32>
    tpu.vector_store %arg16[%c0_75, %c0_76], %123 {strides = array<i32>} : memref<16x32xf32, #tpu.memory_space<vmem>>, vector<16x32xf32>,
    %c0_77 = arith.constant 0 : index
    %c0_78 = arith.constant 0 : index
    %127 = vector.load %arg15[%c0_77, %c0_78] : memref<16x32xf32, #tpu.memory_space<vmem>>, vector<16x32xf32>
    tpu.vector_store %arg15[%c0_77, %c0_78], %125 {strides = array<i32>} : memref<16x32xf32, #tpu.memory_space<vmem>>, vector<16x32xf32>,
    %128 = arith.truncf %125 : vector<16x32xf32> to vector<16x32xbf16>
    %c48_79 = arith.constant 48 : index
    %c0_80 = arith.constant 0 : index
    %129 = vector.load %arg14[%c48_79, %c0_80] : memref<128x32xbf16, #tpu.memory_space<vmem>>, vector<16x32xbf16>
    tpu.vector_store %arg14[%c48_79, %c0_80], %128 {strides = array<i32>} : memref<128x32xbf16, #tpu.memory_space<vmem>>, vector<16x32xbf16>,
    %c64 = arith.constant 64 : index
    %c0_81 = arith.constant 0 : index
    %130 = vector.load %arg13[%c64, %c0_81] : memref<128x128xf32, #tpu.memory_space<vmem>>, vector<16x128xf32>
    %c0_82 = arith.constant 0 : index
    %c0_83 = arith.constant 0 : index
    %131 = vector.load %arg15[%c0_82, %c0_83] : memref<16x32xf32, #tpu.memory_space<vmem>>, vector<16x32xf32>
    %132 = arith.truncf %131 : vector<16x32xf32> to vector<16x32xbf16>
    %c0_84 = arith.constant 0 : index
    %c0_85 = arith.constant 0 : index
    %133 = vector.load %arg5[%c0_84, %c0_85] : memref<32x128xbf16, #tpu.memory_space<vmem>>, vector<32x128xbf16>
    %cst_86 = arith.constant dense<0.000000e+00> : vector<16x128xf32>
    %134 = tpu.matmul %132, %133, %cst_86 {dimension_numbers = #tpu.dot_dimension_numbers<[1], [0], [0], [1], [0, 0, 1, 1], [], []>} : vector<16x32xbf16>, vector<32x128xbf16>, vector<16x128xf32> -> vector<16x128xf32>
    %135 = arith.addf %130, %134 : vector<16x128xf32>
    %136 = math.tanh %135 : vector<16x128xf32>
    %137 = arith.negf %135 : vector<16x128xf32>
    %138 = math.exp %137 : vector<16x128xf32>
    %cst_87 = arith.constant 1.000000e+00 : f32
    %139 = vector.broadcast %cst_87 : f32 to vector<16x128xf32>
    %140 = arith.addf %139, %138 : vector<16x128xf32>
    %141 = arith.divf %139, %140 : vector<16x128xf32>
    %142 = arith.select %5, %136, %141 : vector<16x128xi1>, vector<16x128xf32>
    %143 = vector.extract_strided_slice %142 {offsets = [0, 0], sizes = [16, 32], strides = [1, 1]} : vector<16x128xf32> to vector<16x32xf32>
    %144 = vector.extract_strided_slice %142 {offsets = [0, 32], sizes = [16, 32], strides = [1, 1]} : vector<16x128xf32> to vector<16x32xf32>
    %145 = vector.extract_strided_slice %142 {offsets = [0, 64], sizes = [16, 32], strides = [1, 1]} : vector<16x128xf32> to vector<16x32xf32>
    %146 = vector.extract_strided_slice %142 {offsets = [0, 96], sizes = [16, 32], strides = [1, 1]} : vector<16x128xf32> to vector<16x32xf32>
    %c0_88 = arith.constant 0 : index
    %c0_89 = arith.constant 0 : index
    %147 = vector.load %arg16[%c0_88, %c0_89] : memref<16x32xf32, #tpu.memory_space<vmem>>, vector<16x32xf32>
    %148 = arith.mulf %144, %147 : vector<16x32xf32>
    %149 = arith.mulf %143, %145 : vector<16x32xf32>
    %150 = arith.addf %148, %149 : vector<16x32xf32>
    %151 = math.tanh %150 : vector<16x32xf32>
    %152 = arith.mulf %146, %151 : vector<16x32xf32>
    %c0_90 = arith.constant 0 : index
    %c0_91 = arith.constant 0 : index
    %153 = vector.load %arg16[%c0_90, %c0_91] : memref<16x32xf32, #tpu.memory_space<vmem>>, vector<16x32xf32>
    tpu.vector_store %arg16[%c0_90, %c0_91], %150 {strides = array<i32>} : memref<16x32xf32, #tpu.memory_space<vmem>>, vector<16x32xf32>,
    %c0_92 = arith.constant 0 : index
    %c0_93 = arith.constant 0 : index
    %154 = vector.load %arg15[%c0_92, %c0_93] : memref<16x32xf32, #tpu.memory_space<vmem>>, vector<16x32xf32>
    tpu.vector_store %arg15[%c0_92, %c0_93], %152 {strides = array<i32>} : memref<16x32xf32, #tpu.memory_space<vmem>>, vector<16x32xf32>,
    %155 = arith.truncf %152 : vector<16x32xf32> to vector<16x32xbf16>
    %c64_94 = arith.constant 64 : index
    %c0_95 = arith.constant 0 : index
    %156 = vector.load %arg14[%c64_94, %c0_95] : memref<128x32xbf16, #tpu.memory_space<vmem>>, vector<16x32xbf16>
    tpu.vector_store %arg14[%c64_94, %c0_95], %155 {strides = array<i32>} : memref<128x32xbf16, #tpu.memory_space<vmem>>, vector<16x32xbf16>,
    %c80 = arith.constant 80 : index
    %c0_96 = arith.constant 0 : index
    %157 = vector.load %arg13[%c80, %c0_96] : memref<128x128xf32, #tpu.memory_space<vmem>>, vector<16x128xf32>
    %c0_97 = arith.constant 0 : index
    %c0_98 = arith.constant 0 : index
    %158 = vector.load %arg15[%c0_97, %c0_98] : memref<16x32xf32, #tpu.memory_space<vmem>>, vector<16x32xf32>
    %159 = arith.truncf %158 : vector<16x32xf32> to vector<16x32xbf16>
    %c0_99 = arith.constant 0 : index
    %c0_100 = arith.constant 0 : index
    %160 = vector.load %arg5[%c0_99, %c0_100] : memref<32x128xbf16, #tpu.memory_space<vmem>>, vector<32x128xbf16>
    %cst_101 = arith.constant dense<0.000000e+00> : vector<16x128xf32>
    %161 = tpu.matmul %159, %160, %cst_101 {dimension_numbers = #tpu.dot_dimension_numbers<[1], [0], [0], [1], [0, 0, 1, 1], [], []>} : vector<16x32xbf16>, vector<32x128xbf16>, vector<16x128xf32> -> vector<16x128xf32>
    %162 = arith.addf %157, %161 : vector<16x128xf32>
    %163 = math.tanh %162 : vector<16x128xf32>
    %164 = arith.negf %162 : vector<16x128xf32>
    %165 = math.exp %164 : vector<16x128xf32>
    %cst_102 = arith.constant 1.000000e+00 : f32
    %166 = vector.broadcast %cst_102 : f32 to vector<16x128xf32>
    %167 = arith.addf %166, %165 : vector<16x128xf32>
    %168 = arith.divf %166, %167 : vector<16x128xf32>
    %169 = arith.select %5, %163, %168 : vector<16x128xi1>, vector<16x128xf32>
    %170 = vector.extract_strided_slice %169 {offsets = [0, 0], sizes = [16, 32], strides = [1, 1]} : vector<16x128xf32> to vector<16x32xf32>
    %171 = vector.extract_strided_slice %169 {offsets = [0, 32], sizes = [16, 32], strides = [1, 1]} : vector<16x128xf32> to vector<16x32xf32>
    %172 = vector.extract_strided_slice %169 {offsets = [0, 64], sizes = [16, 32], strides = [1, 1]} : vector<16x128xf32> to vector<16x32xf32>
    %173 = vector.extract_strided_slice %169 {offsets = [0, 96], sizes = [16, 32], strides = [1, 1]} : vector<16x128xf32> to vector<16x32xf32>
    %c0_103 = arith.constant 0 : index
    %c0_104 = arith.constant 0 : index
    %174 = vector.load %arg16[%c0_103, %c0_104] : memref<16x32xf32, #tpu.memory_space<vmem>>, vector<16x32xf32>
    %175 = arith.mulf %171, %174 : vector<16x32xf32>
    %176 = arith.mulf %170, %172 : vector<16x32xf32>
    %177 = arith.addf %175, %176 : vector<16x32xf32>
    %178 = math.tanh %177 : vector<16x32xf32>
    %179 = arith.mulf %173, %178 : vector<16x32xf32>
    %c0_105 = arith.constant 0 : index
    %c0_106 = arith.constant 0 : index
    %180 = vector.load %arg16[%c0_105, %c0_106] : memref<16x32xf32, #tpu.memory_space<vmem>>, vector<16x32xf32>
    tpu.vector_store %arg16[%c0_105, %c0_106], %177 {strides = array<i32>} : memref<16x32xf32, #tpu.memory_space<vmem>>, vector<16x32xf32>,
    %c0_107 = arith.constant 0 : index
    %c0_108 = arith.constant 0 : index
    %181 = vector.load %arg15[%c0_107, %c0_108] : memref<16x32xf32, #tpu.memory_space<vmem>>, vector<16x32xf32>
    tpu.vector_store %arg15[%c0_107, %c0_108], %179 {strides = array<i32>} : memref<16x32xf32, #tpu.memory_space<vmem>>, vector<16x32xf32>,
    %182 = arith.truncf %179 : vector<16x32xf32> to vector<16x32xbf16>
    %c80_109 = arith.constant 80 : index
    %c0_110 = arith.constant 0 : index
    %183 = vector.load %arg14[%c80_109, %c0_110] : memref<128x32xbf16, #tpu.memory_space<vmem>>, vector<16x32xbf16>
    tpu.vector_store %arg14[%c80_109, %c0_110], %182 {strides = array<i32>} : memref<128x32xbf16, #tpu.memory_space<vmem>>, vector<16x32xbf16>,
    %c96 = arith.constant 96 : index
    %c0_111 = arith.constant 0 : index
    %184 = vector.load %arg13[%c96, %c0_111] : memref<128x128xf32, #tpu.memory_space<vmem>>, vector<16x128xf32>
    %c0_112 = arith.constant 0 : index
    %c0_113 = arith.constant 0 : index
    %185 = vector.load %arg15[%c0_112, %c0_113] : memref<16x32xf32, #tpu.memory_space<vmem>>, vector<16x32xf32>
    %186 = arith.truncf %185 : vector<16x32xf32> to vector<16x32xbf16>
    %c0_114 = arith.constant 0 : index
    %c0_115 = arith.constant 0 : index
    %187 = vector.load %arg5[%c0_114, %c0_115] : memref<32x128xbf16, #tpu.memory_space<vmem>>, vector<32x128xbf16>
    %cst_116 = arith.constant dense<0.000000e+00> : vector<16x128xf32>
    %188 = tpu.matmul %186, %187, %cst_116 {dimension_numbers = #tpu.dot_dimension_numbers<[1], [0], [0], [1], [0, 0, 1, 1], [], []>} : vector<16x32xbf16>, vector<32x128xbf16>, vector<16x128xf32> -> vector<16x128xf32>
    %189 = arith.addf %184, %188 : vector<16x128xf32>
    %190 = math.tanh %189 : vector<16x128xf32>
    %191 = arith.negf %189 : vector<16x128xf32>
    %192 = math.exp %191 : vector<16x128xf32>
    %cst_117 = arith.constant 1.000000e+00 : f32
    %193 = vector.broadcast %cst_117 : f32 to vector<16x128xf32>
    %194 = arith.addf %193, %192 : vector<16x128xf32>
    %195 = arith.divf %193, %194 : vector<16x128xf32>
    %196 = arith.select %5, %190, %195 : vector<16x128xi1>, vector<16x128xf32>
    %197 = vector.extract_strided_slice %196 {offsets = [0, 0], sizes = [16, 32], strides = [1, 1]} : vector<16x128xf32> to vector<16x32xf32>
    %198 = vector.extract_strided_slice %196 {offsets = [0, 32], sizes = [16, 32], strides = [1, 1]} : vector<16x128xf32> to vector<16x32xf32>
    %199 = vector.extract_strided_slice %196 {offsets = [0, 64], sizes = [16, 32], strides = [1, 1]} : vector<16x128xf32> to vector<16x32xf32>
    %200 = vector.extract_strided_slice %196 {offsets = [0, 96], sizes = [16, 32], strides = [1, 1]} : vector<16x128xf32> to vector<16x32xf32>
    %c0_118 = arith.constant 0 : index
    %c0_119 = arith.constant 0 : index
    %201 = vector.load %arg16[%c0_118, %c0_119] : memref<16x32xf32, #tpu.memory_space<vmem>>, vector<16x32xf32>
    %202 = arith.mulf %198, %201 : vector<16x32xf32>
    %203 = arith.mulf %197, %199 : vector<16x32xf32>
    %204 = arith.addf %202, %203 : vector<16x32xf32>
    %205 = math.tanh %204 : vector<16x32xf32>
    %206 = arith.mulf %200, %205 : vector<16x32xf32>
    %c0_120 = arith.constant 0 : index
    %c0_121 = arith.constant 0 : index
    %207 = vector.load %arg16[%c0_120, %c0_121] : memref<16x32xf32, #tpu.memory_space<vmem>>, vector<16x32xf32>
    tpu.vector_store %arg16[%c0_120, %c0_121], %204 {strides = array<i32>} : memref<16x32xf32, #tpu.memory_space<vmem>>, vector<16x32xf32>,
    %c0_122 = arith.constant 0 : index
    %c0_123 = arith.constant 0 : index
    %208 = vector.load %arg15[%c0_122, %c0_123] : memref<16x32xf32, #tpu.memory_space<vmem>>, vector<16x32xf32>
    tpu.vector_store %arg15[%c0_122, %c0_123], %206 {strides = array<i32>} : memref<16x32xf32, #tpu.memory_space<vmem>>, vector<16x32xf32>,
    %209 = arith.truncf %206 : vector<16x32xf32> to vector<16x32xbf16>
    %c96_124 = arith.constant 96 : index
    %c0_125 = arith.constant 0 : index
    %210 = vector.load %arg14[%c96_124, %c0_125] : memref<128x32xbf16, #tpu.memory_space<vmem>>, vector<16x32xbf16>
    tpu.vector_store %arg14[%c96_124, %c0_125], %209 {strides = array<i32>} : memref<128x32xbf16, #tpu.memory_space<vmem>>, vector<16x32xbf16>,
    %c112 = arith.constant 112 : index
    %c0_126 = arith.constant 0 : index
    %211 = vector.load %arg13[%c112, %c0_126] : memref<128x128xf32, #tpu.memory_space<vmem>>, vector<16x128xf32>
    %c0_127 = arith.constant 0 : index
    %c0_128 = arith.constant 0 : index
    %212 = vector.load %arg15[%c0_127, %c0_128] : memref<16x32xf32, #tpu.memory_space<vmem>>, vector<16x32xf32>
    %213 = arith.truncf %212 : vector<16x32xf32> to vector<16x32xbf16>
    %c0_129 = arith.constant 0 : index
    %c0_130 = arith.constant 0 : index
    %214 = vector.load %arg5[%c0_129, %c0_130] : memref<32x128xbf16, #tpu.memory_space<vmem>>, vector<32x128xbf16>
    %cst_131 = arith.constant dense<0.000000e+00> : vector<16x128xf32>
    %215 = tpu.matmul %213, %214, %cst_131 {dimension_numbers = #tpu.dot_dimension_numbers<[1], [0], [0], [1], [0, 0, 1, 1], [], []>} : vector<16x32xbf16>, vector<32x128xbf16>, vector<16x128xf32> -> vector<16x128xf32>
    %216 = arith.addf %211, %215 : vector<16x128xf32>
    %217 = math.tanh %216 : vector<16x128xf32>
    %218 = arith.negf %216 : vector<16x128xf32>
    %219 = math.exp %218 : vector<16x128xf32>
    %cst_132 = arith.constant 1.000000e+00 : f32
    %220 = vector.broadcast %cst_132 : f32 to vector<16x128xf32>
    %221 = arith.addf %220, %219 : vector<16x128xf32>
    %222 = arith.divf %220, %221 : vector<16x128xf32>
    %223 = arith.select %5, %217, %222 : vector<16x128xi1>, vector<16x128xf32>
    %224 = vector.extract_strided_slice %223 {offsets = [0, 0], sizes = [16, 32], strides = [1, 1]} : vector<16x128xf32> to vector<16x32xf32>
    %225 = vector.extract_strided_slice %223 {offsets = [0, 32], sizes = [16, 32], strides = [1, 1]} : vector<16x128xf32> to vector<16x32xf32>
    %226 = vector.extract_strided_slice %223 {offsets = [0, 64], sizes = [16, 32], strides = [1, 1]} : vector<16x128xf32> to vector<16x32xf32>
    %227 = vector.extract_strided_slice %223 {offsets = [0, 96], sizes = [16, 32], strides = [1, 1]} : vector<16x128xf32> to vector<16x32xf32>
    %c0_133 = arith.constant 0 : index
    %c0_134 = arith.constant 0 : index
    %228 = vector.load %arg16[%c0_133, %c0_134] : memref<16x32xf32, #tpu.memory_space<vmem>>, vector<16x32xf32>
    %229 = arith.mulf %225, %228 : vector<16x32xf32>
    %230 = arith.mulf %224, %226 : vector<16x32xf32>
    %231 = arith.addf %229, %230 : vector<16x32xf32>
    %232 = math.tanh %231 : vector<16x32xf32>
    %233 = arith.mulf %227, %232 : vector<16x32xf32>
    %c0_135 = arith.constant 0 : index
    %c0_136 = arith.constant 0 : index
    %234 = vector.load %arg16[%c0_135, %c0_136] : memref<16x32xf32, #tpu.memory_space<vmem>>, vector<16x32xf32>
    tpu.vector_store %arg16[%c0_135, %c0_136], %231 {strides = array<i32>} : memref<16x32xf32, #tpu.memory_space<vmem>>, vector<16x32xf32>,
    %c0_137 = arith.constant 0 : index
    %c0_138 = arith.constant 0 : index
    %235 = vector.load %arg15[%c0_137, %c0_138] : memref<16x32xf32, #tpu.memory_space<vmem>>, vector<16x32xf32>
    tpu.vector_store %arg15[%c0_137, %c0_138], %233 {strides = array<i32>} : memref<16x32xf32, #tpu.memory_space<vmem>>, vector<16x32xf32>,
    %236 = arith.truncf %233 : vector<16x32xf32> to vector<16x32xbf16>
    %c112_139 = arith.constant 112 : index
    %c0_140 = arith.constant 0 : index
    %237 = vector.load %arg14[%c112_139, %c0_140] : memref<128x32xbf16, #tpu.memory_space<vmem>>, vector<16x32xbf16>
    tpu.vector_store %arg14[%c112_139, %c0_140], %236 {strides = array<i32>} : memref<128x32xbf16, #tpu.memory_space<vmem>>, vector<16x32xbf16>,
    %c0_141 = arith.constant 0 : index
    %c0_142 = arith.constant 0 : index
    %238 = vector.load %arg14[%c0_141, %c0_142] : memref<128x32xbf16, #tpu.memory_space<vmem>>, vector<128x32xbf16>
    %c0_143 = arith.constant 0 : index
    %c0_144 = arith.constant 0 : index
    %239 = vector.load %arg7[%c0_143, %c0_144] : memref<32x128xbf16, #tpu.memory_space<vmem>>, vector<32x128xbf16>
    %cst_145 = arith.constant dense<0.000000e+00> : vector<128x128xf32>
    %240 = tpu.matmul %238, %239, %cst_145 {dimension_numbers = #tpu.dot_dimension_numbers<[1], [0], [0], [1], [0, 0, 1, 1], [], []>} : vector<128x32xbf16>, vector<32x128xbf16>, vector<128x128xf32> -> vector<128x128xf32>
    %c0_146 = arith.constant 0 : index
    %c0_147 = arith.constant 0 : index
    %241 = vector.load %arg9[%c0_146, %c0_147] : memref<1x128xf32, #tpu.memory_space<vmem>>, vector<1x128xf32>
    %242 = vector.broadcast %241 : vector<1x128xf32> to vector<128x128xf32>
    %243 = arith.addf %240, %242 : vector<128x128xf32>
    %c0_148 = arith.constant 0 : index
    %c0_149 = arith.constant 0 : index
    %244 = vector.load %arg13[%c0_148, %c0_149] : memref<128x128xf32, #tpu.memory_space<vmem>>, vector<128x128xf32>
    tpu.vector_store %arg13[%c0_148, %c0_149], %243 {strides = array<i32>} : memref<128x128xf32, #tpu.memory_space<vmem>>, vector<128x128xf32>,
    %cst_150 = arith.constant 0.000000e+00 : f32
    %245 = vector.broadcast %cst_150 : f32 to vector<16x32xf32>
    %c0_151 = arith.constant 0 : index
    %c0_152 = arith.constant 0 : index
    %246 = vector.load %arg15[%c0_151, %c0_152] : memref<16x32xf32, #tpu.memory_space<vmem>>, vector<16x32xf32>
    tpu.vector_store %arg15[%c0_151, %c0_152], %245 {strides = array<i32>} : memref<16x32xf32, #tpu.memory_space<vmem>>, vector<16x32xf32>,
    %cst_153 = arith.constant 0.000000e+00 : f32
    %247 = vector.broadcast %cst_153 : f32 to vector<16x32xf32>
    %c0_154 = arith.constant 0 : index
    %c0_155 = arith.constant 0 : index
    %248 = vector.load %arg16[%c0_154, %c0_155] : memref<16x32xf32, #tpu.memory_space<vmem>>, vector<16x32xf32>
    tpu.vector_store %arg16[%c0_154, %c0_155], %247 {strides = array<i32>} : memref<16x32xf32, #tpu.memory_space<vmem>>, vector<16x32xf32>,
    %cst_156 = arith.constant 0xFF800000 : f32
    %249 = vector.broadcast %cst_156 : f32 to vector<16x32xf32>
    %c0_157 = arith.constant 0 : index
    %c0_158 = arith.constant 0 : index
    %250 = vector.load %arg17[%c0_157, %c0_158] : memref<16x32xf32, #tpu.memory_space<vmem>>, vector<16x32xf32>
    tpu.vector_store %arg17[%c0_157, %c0_158], %249 {strides = array<i32>} : memref<16x32xf32, #tpu.memory_space<vmem>>, vector<16x32xf32>,
    %c0_159 = arith.constant 0 : index
    %c0_160 = arith.constant 0 : index
    %251 = vector.load %arg13[%c0_159, %c0_160] : memref<128x128xf32, #tpu.memory_space<vmem>>, vector<16x128xf32>
    %c0_161 = arith.constant 0 : index
    %c0_162 = arith.constant 0 : index
    %252 = vector.load %arg15[%c0_161, %c0_162] : memref<16x32xf32, #tpu.memory_space<vmem>>, vector<16x32xf32>
    %253 = arith.truncf %252 : vector<16x32xf32> to vector<16x32xbf16>
    %c0_163 = arith.constant 0 : index
    %c0_164 = arith.constant 0 : index
    %254 = vector.load %arg8[%c0_163, %c0_164] : memref<32x128xbf16, #tpu.memory_space<vmem>>, vector<32x128xbf16>
    %cst_165 = arith.constant dense<0.000000e+00> : vector<16x128xf32>
    %255 = tpu.matmul %253, %254, %cst_165 {dimension_numbers = #tpu.dot_dimension_numbers<[1], [0], [0], [1], [0, 0, 1, 1], [], []>} : vector<16x32xbf16>, vector<32x128xbf16>, vector<16x128xf32> -> vector<16x128xf32>
    %256 = arith.addf %251, %255 : vector<16x128xf32>
    %257 = math.tanh %256 : vector<16x128xf32>
    %258 = arith.negf %256 : vector<16x128xf32>
    %259 = math.exp %258 : vector<16x128xf32>
    %cst_166 = arith.constant 1.000000e+00 : f32
    %260 = vector.broadcast %cst_166 : f32 to vector<16x128xf32>
    %261 = arith.addf %260, %259 : vector<16x128xf32>
    %262 = arith.divf %260, %261 : vector<16x128xf32>
    %263 = arith.select %5, %257, %262 : vector<16x128xi1>, vector<16x128xf32>
    %264 = vector.extract_strided_slice %263 {offsets = [0, 0], sizes = [16, 32], strides = [1, 1]} : vector<16x128xf32> to vector<16x32xf32>
    %265 = vector.extract_strided_slice %263 {offsets = [0, 32], sizes = [16, 32], strides = [1, 1]} : vector<16x128xf32> to vector<16x32xf32>
    %266 = vector.extract_strided_slice %263 {offsets = [0, 64], sizes = [16, 32], strides = [1, 1]} : vector<16x128xf32> to vector<16x32xf32>
    %267 = vector.extract_strided_slice %263 {offsets = [0, 96], sizes = [16, 32], strides = [1, 1]} : vector<16x128xf32> to vector<16x32xf32>
    %c0_167 = arith.constant 0 : index
    %c0_168 = arith.constant 0 : index
    %268 = vector.load %arg16[%c0_167, %c0_168] : memref<16x32xf32, #tpu.memory_space<vmem>>, vector<16x32xf32>
    %269 = arith.mulf %265, %268 : vector<16x32xf32>
    %270 = arith.mulf %264, %266 : vector<16x32xf32>
    %271 = arith.addf %269, %270 : vector<16x32xf32>
    %272 = math.tanh %271 : vector<16x32xf32>
    %273 = arith.mulf %267, %272 : vector<16x32xf32>
    %c0_169 = arith.constant 0 : index
    %c0_170 = arith.constant 0 : index
    %274 = vector.load %arg16[%c0_169, %c0_170] : memref<16x32xf32, #tpu.memory_space<vmem>>, vector<16x32xf32>
    tpu.vector_store %arg16[%c0_169, %c0_170], %271 {strides = array<i32>} : memref<16x32xf32, #tpu.memory_space<vmem>>, vector<16x32xf32>,
    %c0_171 = arith.constant 0 : index
    %c0_172 = arith.constant 0 : index
    %275 = vector.load %arg15[%c0_171, %c0_172] : memref<16x32xf32, #tpu.memory_space<vmem>>, vector<16x32xf32>
    tpu.vector_store %arg15[%c0_171, %c0_172], %273 {strides = array<i32>} : memref<16x32xf32, #tpu.memory_space<vmem>>, vector<16x32xf32>,
    %c0_i32 = arith.constant 0 : i32
    %276 = vector.broadcast %c0_i32 : i32 to vector<16x1xi32>
    %277 = arith.cmpi sle, %7, %276 : vector<16x1xi32>
    %c0_i32_173 = arith.constant 0 : i32
    %278 = vector.broadcast %c0_i32_173 : i32 to vector<16x1xi32>
    %279 = arith.cmpi sgt, %9, %278 : vector<16x1xi32>
    %280 = arith.andi %277, %279 : vector<16x1xi1>
    %c0_174 = arith.constant 0 : index
    %c0_175 = arith.constant 0 : index
    %281 = vector.load %arg17[%c0_174, %c0_175] : memref<16x32xf32, #tpu.memory_space<vmem>>, vector<16x32xf32>
    %cst_176 = arith.constant 0xFF800000 : f32
    %282 = vector.shape_cast %280 : vector<16x1xi1> to vector<16x1xi1>
    %283 = vector.broadcast %282 : vector<16x1xi1> to vector<16x32xi1>
    %284 = vector.broadcast %cst_176 : f32 to vector<16x32xf32>
    %285 = arith.select %283, %273, %284 : vector<16x32xi1>, vector<16x32xf32>
    %286 = arith.maximumf %281, %285 : vector<16x32xf32>
    %c0_177 = arith.constant 0 : index
    %c0_178 = arith.constant 0 : index
    %287 = vector.load %arg17[%c0_177, %c0_178] : memref<16x32xf32, #tpu.memory_space<vmem>>, vector<16x32xf32>
    tpu.vector_store %arg17[%c0_177, %c0_178], %286 {strides = array<i32>} : memref<16x32xf32, #tpu.memory_space<vmem>>, vector<16x32xf32>,
    %c16_179 = arith.constant 16 : index
    %c0_180 = arith.constant 0 : index
    %288 = vector.load %arg13[%c16_179, %c0_180] : memref<128x128xf32, #tpu.memory_space<vmem>>, vector<16x128xf32>
    %c0_181 = arith.constant 0 : index
    %c0_182 = arith.constant 0 : index
    %289 = vector.load %arg15[%c0_181, %c0_182] : memref<16x32xf32, #tpu.memory_space<vmem>>, vector<16x32xf32>
    %290 = arith.truncf %289 : vector<16x32xf32> to vector<16x32xbf16>
    %c0_183 = arith.constant 0 : index
    %c0_184 = arith.constant 0 : index
    %291 = vector.load %arg8[%c0_183, %c0_184] : memref<32x128xbf16, #tpu.memory_space<vmem>>, vector<32x128xbf16>
    %cst_185 = arith.constant dense<0.000000e+00> : vector<16x128xf32>
    %292 = tpu.matmul %290, %291, %cst_185 {dimension_numbers = #tpu.dot_dimension_numbers<[1], [0], [0], [1], [0, 0, 1, 1], [], []>} : vector<16x32xbf16>, vector<32x128xbf16>, vector<16x128xf32> -> vector<16x128xf32>
    %293 = arith.addf %288, %292 : vector<16x128xf32>
    %294 = math.tanh %293 : vector<16x128xf32>
    %295 = arith.negf %293 : vector<16x128xf32>
    %296 = math.exp %295 : vector<16x128xf32>
    %cst_186 = arith.constant 1.000000e+00 : f32
    %297 = vector.broadcast %cst_186 : f32 to vector<16x128xf32>
    %298 = arith.addf %297, %296 : vector<16x128xf32>
    %299 = arith.divf %297, %298 : vector<16x128xf32>
    %300 = arith.select %5, %294, %299 : vector<16x128xi1>, vector<16x128xf32>
    %301 = vector.extract_strided_slice %300 {offsets = [0, 0], sizes = [16, 32], strides = [1, 1]} : vector<16x128xf32> to vector<16x32xf32>
    %302 = vector.extract_strided_slice %300 {offsets = [0, 32], sizes = [16, 32], strides = [1, 1]} : vector<16x128xf32> to vector<16x32xf32>
    %303 = vector.extract_strided_slice %300 {offsets = [0, 64], sizes = [16, 32], strides = [1, 1]} : vector<16x128xf32> to vector<16x32xf32>
    %304 = vector.extract_strided_slice %300 {offsets = [0, 96], sizes = [16, 32], strides = [1, 1]} : vector<16x128xf32> to vector<16x32xf32>
    %c0_187 = arith.constant 0 : index
    %c0_188 = arith.constant 0 : index
    %305 = vector.load %arg16[%c0_187, %c0_188] : memref<16x32xf32, #tpu.memory_space<vmem>>, vector<16x32xf32>
    %306 = arith.mulf %302, %305 : vector<16x32xf32>
    %307 = arith.mulf %301, %303 : vector<16x32xf32>
    %308 = arith.addf %306, %307 : vector<16x32xf32>
    %309 = math.tanh %308 : vector<16x32xf32>
    %310 = arith.mulf %304, %309 : vector<16x32xf32>
    %c0_189 = arith.constant 0 : index
    %c0_190 = arith.constant 0 : index
    %311 = vector.load %arg16[%c0_189, %c0_190] : memref<16x32xf32, #tpu.memory_space<vmem>>, vector<16x32xf32>
    tpu.vector_store %arg16[%c0_189, %c0_190], %308 {strides = array<i32>} : memref<16x32xf32, #tpu.memory_space<vmem>>, vector<16x32xf32>,
    %c0_191 = arith.constant 0 : index
    %c0_192 = arith.constant 0 : index
    %312 = vector.load %arg15[%c0_191, %c0_192] : memref<16x32xf32, #tpu.memory_space<vmem>>, vector<16x32xf32>
    tpu.vector_store %arg15[%c0_191, %c0_192], %310 {strides = array<i32>} : memref<16x32xf32, #tpu.memory_space<vmem>>, vector<16x32xf32>,
    %c1_i32 = arith.constant 1 : i32
    %313 = vector.broadcast %c1_i32 : i32 to vector<16x1xi32>
    %314 = arith.cmpi sle, %7, %313 : vector<16x1xi32>
    %c1_i32_193 = arith.constant 1 : i32
    %315 = vector.broadcast %c1_i32_193 : i32 to vector<16x1xi32>
    %316 = arith.cmpi sgt, %9, %315 : vector<16x1xi32>
    %317 = arith.andi %314, %316 : vector<16x1xi1>
    %c0_194 = arith.constant 0 : index
    %c0_195 = arith.constant 0 : index
    %318 = vector.load %arg17[%c0_194, %c0_195] : memref<16x32xf32, #tpu.memory_space<vmem>>, vector<16x32xf32>
    %cst_196 = arith.constant 0xFF800000 : f32
    %319 = vector.shape_cast %317 : vector<16x1xi1> to vector<16x1xi1>
    %320 = vector.broadcast %319 : vector<16x1xi1> to vector<16x32xi1>
    %321 = vector.broadcast %cst_196 : f32 to vector<16x32xf32>
    %322 = arith.select %320, %310, %321 : vector<16x32xi1>, vector<16x32xf32>
    %323 = arith.maximumf %318, %322 : vector<16x32xf32>
    %c0_197 = arith.constant 0 : index
    %c0_198 = arith.constant 0 : index
    %324 = vector.load %arg17[%c0_197, %c0_198] : memref<16x32xf32, #tpu.memory_space<vmem>>, vector<16x32xf32>
    tpu.vector_store %arg17[%c0_197, %c0_198], %323 {strides = array<i32>} : memref<16x32xf32, #tpu.memory_space<vmem>>, vector<16x32xf32>,
    %c32_199 = arith.constant 32 : index
    %c0_200 = arith.constant 0 : index
    %325 = vector.load %arg13[%c32_199, %c0_200] : memref<128x128xf32, #tpu.memory_space<vmem>>, vector<16x128xf32>
    %c0_201 = arith.constant 0 : index
    %c0_202 = arith.constant 0 : index
    %326 = vector.load %arg15[%c0_201, %c0_202] : memref<16x32xf32, #tpu.memory_space<vmem>>, vector<16x32xf32>
    %327 = arith.truncf %326 : vector<16x32xf32> to vector<16x32xbf16>
    %c0_203 = arith.constant 0 : index
    %c0_204 = arith.constant 0 : index
    %328 = vector.load %arg8[%c0_203, %c0_204] : memref<32x128xbf16, #tpu.memory_space<vmem>>, vector<32x128xbf16>
    %cst_205 = arith.constant dense<0.000000e+00> : vector<16x128xf32>
    %329 = tpu.matmul %327, %328, %cst_205 {dimension_numbers = #tpu.dot_dimension_numbers<[1], [0], [0], [1], [0, 0, 1, 1], [], []>} : vector<16x32xbf16>, vector<32x128xbf16>, vector<16x128xf32> -> vector<16x128xf32>
    %330 = arith.addf %325, %329 : vector<16x128xf32>
    %331 = math.tanh %330 : vector<16x128xf32>
    %332 = arith.negf %330 : vector<16x128xf32>
    %333 = math.exp %332 : vector<16x128xf32>
    %cst_206 = arith.constant 1.000000e+00 : f32
    %334 = vector.broadcast %cst_206 : f32 to vector<16x128xf32>
    %335 = arith.addf %334, %333 : vector<16x128xf32>
    %336 = arith.divf %334, %335 : vector<16x128xf32>
    %337 = arith.select %5, %331, %336 : vector<16x128xi1>, vector<16x128xf32>
    %338 = vector.extract_strided_slice %337 {offsets = [0, 0], sizes = [16, 32], strides = [1, 1]} : vector<16x128xf32> to vector<16x32xf32>
    %339 = vector.extract_strided_slice %337 {offsets = [0, 32], sizes = [16, 32], strides = [1, 1]} : vector<16x128xf32> to vector<16x32xf32>
    %340 = vector.extract_strided_slice %337 {offsets = [0, 64], sizes = [16, 32], strides = [1, 1]} : vector<16x128xf32> to vector<16x32xf32>
    %341 = vector.extract_strided_slice %337 {offsets = [0, 96], sizes = [16, 32], strides = [1, 1]} : vector<16x128xf32> to vector<16x32xf32>
    %c0_207 = arith.constant 0 : index
    %c0_208 = arith.constant 0 : index
    %342 = vector.load %arg16[%c0_207, %c0_208] : memref<16x32xf32, #tpu.memory_space<vmem>>, vector<16x32xf32>
    %343 = arith.mulf %339, %342 : vector<16x32xf32>
    %344 = arith.mulf %338, %340 : vector<16x32xf32>
    %345 = arith.addf %343, %344 : vector<16x32xf32>
    %346 = math.tanh %345 : vector<16x32xf32>
    %347 = arith.mulf %341, %346 : vector<16x32xf32>
    %c0_209 = arith.constant 0 : index
    %c0_210 = arith.constant 0 : index
    %348 = vector.load %arg16[%c0_209, %c0_210] : memref<16x32xf32, #tpu.memory_space<vmem>>, vector<16x32xf32>
    tpu.vector_store %arg16[%c0_209, %c0_210], %345 {strides = array<i32>} : memref<16x32xf32, #tpu.memory_space<vmem>>, vector<16x32xf32>,
    %c0_211 = arith.constant 0 : index
    %c0_212 = arith.constant 0 : index
    %349 = vector.load %arg15[%c0_211, %c0_212] : memref<16x32xf32, #tpu.memory_space<vmem>>, vector<16x32xf32>
    tpu.vector_store %arg15[%c0_211, %c0_212], %347 {strides = array<i32>} : memref<16x32xf32, #tpu.memory_space<vmem>>, vector<16x32xf32>,
    %c2_i32 = arith.constant 2 : i32
    %350 = vector.broadcast %c2_i32 : i32 to vector<16x1xi32>
    %351 = arith.cmpi sle, %7, %350 : vector<16x1xi32>
    %c2_i32_213 = arith.constant 2 : i32
    %352 = vector.broadcast %c2_i32_213 : i32 to vector<16x1xi32>
    %353 = arith.cmpi sgt, %9, %352 : vector<16x1xi32>
    %354 = arith.andi %351, %353 : vector<16x1xi1>
    %c0_214 = arith.constant 0 : index
    %c0_215 = arith.constant 0 : index
    %355 = vector.load %arg17[%c0_214, %c0_215] : memref<16x32xf32, #tpu.memory_space<vmem>>, vector<16x32xf32>
    %cst_216 = arith.constant 0xFF800000 : f32
    %356 = vector.shape_cast %354 : vector<16x1xi1> to vector<16x1xi1>
    %357 = vector.broadcast %356 : vector<16x1xi1> to vector<16x32xi1>
    %358 = vector.broadcast %cst_216 : f32 to vector<16x32xf32>
    %359 = arith.select %357, %347, %358 : vector<16x32xi1>, vector<16x32xf32>
    %360 = arith.maximumf %355, %359 : vector<16x32xf32>
    %c0_217 = arith.constant 0 : index
    %c0_218 = arith.constant 0 : index
    %361 = vector.load %arg17[%c0_217, %c0_218] : memref<16x32xf32, #tpu.memory_space<vmem>>, vector<16x32xf32>
    tpu.vector_store %arg17[%c0_217, %c0_218], %360 {strides = array<i32>} : memref<16x32xf32, #tpu.memory_space<vmem>>, vector<16x32xf32>,
    %c48_219 = arith.constant 48 : index
    %c0_220 = arith.constant 0 : index
    %362 = vector.load %arg13[%c48_219, %c0_220] : memref<128x128xf32, #tpu.memory_space<vmem>>, vector<16x128xf32>
    %c0_221 = arith.constant 0 : index
    %c0_222 = arith.constant 0 : index
    %363 = vector.load %arg15[%c0_221, %c0_222] : memref<16x32xf32, #tpu.memory_space<vmem>>, vector<16x32xf32>
    %364 = arith.truncf %363 : vector<16x32xf32> to vector<16x32xbf16>
    %c0_223 = arith.constant 0 : index
    %c0_224 = arith.constant 0 : index
    %365 = vector.load %arg8[%c0_223, %c0_224] : memref<32x128xbf16, #tpu.memory_space<vmem>>, vector<32x128xbf16>
    %cst_225 = arith.constant dense<0.000000e+00> : vector<16x128xf32>
    %366 = tpu.matmul %364, %365, %cst_225 {dimension_numbers = #tpu.dot_dimension_numbers<[1], [0], [0], [1], [0, 0, 1, 1], [], []>} : vector<16x32xbf16>, vector<32x128xbf16>, vector<16x128xf32> -> vector<16x128xf32>
    %367 = arith.addf %362, %366 : vector<16x128xf32>
    %368 = math.tanh %367 : vector<16x128xf32>
    %369 = arith.negf %367 : vector<16x128xf32>
    %370 = math.exp %369 : vector<16x128xf32>
    %cst_226 = arith.constant 1.000000e+00 : f32
    %371 = vector.broadcast %cst_226 : f32 to vector<16x128xf32>
    %372 = arith.addf %371, %370 : vector<16x128xf32>
    %373 = arith.divf %371, %372 : vector<16x128xf32>
    %374 = arith.select %5, %368, %373 : vector<16x128xi1>, vector<16x128xf32>
    %375 = vector.extract_strided_slice %374 {offsets = [0, 0], sizes = [16, 32], strides = [1, 1]} : vector<16x128xf32> to vector<16x32xf32>
    %376 = vector.extract_strided_slice %374 {offsets = [0, 32], sizes = [16, 32], strides = [1, 1]} : vector<16x128xf32> to vector<16x32xf32>
    %377 = vector.extract_strided_slice %374 {offsets = [0, 64], sizes = [16, 32], strides = [1, 1]} : vector<16x128xf32> to vector<16x32xf32>
    %378 = vector.extract_strided_slice %374 {offsets = [0, 96], sizes = [16, 32], strides = [1, 1]} : vector<16x128xf32> to vector<16x32xf32>
    %c0_227 = arith.constant 0 : index
    %c0_228 = arith.constant 0 : index
    %379 = vector.load %arg16[%c0_227, %c0_228] : memref<16x32xf32, #tpu.memory_space<vmem>>, vector<16x32xf32>
    %380 = arith.mulf %376, %379 : vector<16x32xf32>
    %381 = arith.mulf %375, %377 : vector<16x32xf32>
    %382 = arith.addf %380, %381 : vector<16x32xf32>
    %383 = math.tanh %382 : vector<16x32xf32>
    %384 = arith.mulf %378, %383 : vector<16x32xf32>
    %c0_229 = arith.constant 0 : index
    %c0_230 = arith.constant 0 : index
    %385 = vector.load %arg16[%c0_229, %c0_230] : memref<16x32xf32, #tpu.memory_space<vmem>>, vector<16x32xf32>
    tpu.vector_store %arg16[%c0_229, %c0_230], %382 {strides = array<i32>} : memref<16x32xf32, #tpu.memory_space<vmem>>, vector<16x32xf32>,
    %c0_231 = arith.constant 0 : index
    %c0_232 = arith.constant 0 : index
    %386 = vector.load %arg15[%c0_231, %c0_232] : memref<16x32xf32, #tpu.memory_space<vmem>>, vector<16x32xf32>
    tpu.vector_store %arg15[%c0_231, %c0_232], %384 {strides = array<i32>} : memref<16x32xf32, #tpu.memory_space<vmem>>, vector<16x32xf32>,
    %c3_i32 = arith.constant 3 : i32
    %387 = vector.broadcast %c3_i32 : i32 to vector<16x1xi32>
    %388 = arith.cmpi sle, %7, %387 : vector<16x1xi32>
    %c3_i32_233 = arith.constant 3 : i32
    %389 = vector.broadcast %c3_i32_233 : i32 to vector<16x1xi32>
    %390 = arith.cmpi sgt, %9, %389 : vector<16x1xi32>
    %391 = arith.andi %388, %390 : vector<16x1xi1>
    %c0_234 = arith.constant 0 : index
    %c0_235 = arith.constant 0 : index
    %392 = vector.load %arg17[%c0_234, %c0_235] : memref<16x32xf32, #tpu.memory_space<vmem>>, vector<16x32xf32>
    %cst_236 = arith.constant 0xFF800000 : f32
    %393 = vector.shape_cast %391 : vector<16x1xi1> to vector<16x1xi1>
    %394 = vector.broadcast %393 : vector<16x1xi1> to vector<16x32xi1>
    %395 = vector.broadcast %cst_236 : f32 to vector<16x32xf32>
    %396 = arith.select %394, %384, %395 : vector<16x32xi1>, vector<16x32xf32>
    %397 = arith.maximumf %392, %396 : vector<16x32xf32>
    %c0_237 = arith.constant 0 : index
    %c0_238 = arith.constant 0 : index
    %398 = vector.load %arg17[%c0_237, %c0_238] : memref<16x32xf32, #tpu.memory_space<vmem>>, vector<16x32xf32>
    tpu.vector_store %arg17[%c0_237, %c0_238], %397 {strides = array<i32>} : memref<16x32xf32, #tpu.memory_space<vmem>>, vector<16x32xf32>,
    %c64_239 = arith.constant 64 : index
    %c0_240 = arith.constant 0 : index
    %399 = vector.load %arg13[%c64_239, %c0_240] : memref<128x128xf32, #tpu.memory_space<vmem>>, vector<16x128xf32>
    %c0_241 = arith.constant 0 : index
    %c0_242 = arith.constant 0 : index
    %400 = vector.load %arg15[%c0_241, %c0_242] : memref<16x32xf32, #tpu.memory_space<vmem>>, vector<16x32xf32>
    %401 = arith.truncf %400 : vector<16x32xf32> to vector<16x32xbf16>
    %c0_243 = arith.constant 0 : index
    %c0_244 = arith.constant 0 : index
    %402 = vector.load %arg8[%c0_243, %c0_244] : memref<32x128xbf16, #tpu.memory_space<vmem>>, vector<32x128xbf16>
    %cst_245 = arith.constant dense<0.000000e+00> : vector<16x128xf32>
    %403 = tpu.matmul %401, %402, %cst_245 {dimension_numbers = #tpu.dot_dimension_numbers<[1], [0], [0], [1], [0, 0, 1, 1], [], []>} : vector<16x32xbf16>, vector<32x128xbf16>, vector<16x128xf32> -> vector<16x128xf32>
    %404 = arith.addf %399, %403 : vector<16x128xf32>
    %405 = math.tanh %404 : vector<16x128xf32>
    %406 = arith.negf %404 : vector<16x128xf32>
    %407 = math.exp %406 : vector<16x128xf32>
    %cst_246 = arith.constant 1.000000e+00 : f32
    %408 = vector.broadcast %cst_246 : f32 to vector<16x128xf32>
    %409 = arith.addf %408, %407 : vector<16x128xf32>
    %410 = arith.divf %408, %409 : vector<16x128xf32>
    %411 = arith.select %5, %405, %410 : vector<16x128xi1>, vector<16x128xf32>
    %412 = vector.extract_strided_slice %411 {offsets = [0, 0], sizes = [16, 32], strides = [1, 1]} : vector<16x128xf32> to vector<16x32xf32>
    %413 = vector.extract_strided_slice %411 {offsets = [0, 32], sizes = [16, 32], strides = [1, 1]} : vector<16x128xf32> to vector<16x32xf32>
    %414 = vector.extract_strided_slice %411 {offsets = [0, 64], sizes = [16, 32], strides = [1, 1]} : vector<16x128xf32> to vector<16x32xf32>
    %415 = vector.extract_strided_slice %411 {offsets = [0, 96], sizes = [16, 32], strides = [1, 1]} : vector<16x128xf32> to vector<16x32xf32>
    %c0_247 = arith.constant 0 : index
    %c0_248 = arith.constant 0 : index
    %416 = vector.load %arg16[%c0_247, %c0_248] : memref<16x32xf32, #tpu.memory_space<vmem>>, vector<16x32xf32>
    %417 = arith.mulf %413, %416 : vector<16x32xf32>
    %418 = arith.mulf %412, %414 : vector<16x32xf32>
    %419 = arith.addf %417, %418 : vector<16x32xf32>
    %420 = math.tanh %419 : vector<16x32xf32>
    %421 = arith.mulf %415, %420 : vector<16x32xf32>
    %c0_249 = arith.constant 0 : index
    %c0_250 = arith.constant 0 : index
    %422 = vector.load %arg16[%c0_249, %c0_250] : memref<16x32xf32, #tpu.memory_space<vmem>>, vector<16x32xf32>
    tpu.vector_store %arg16[%c0_249, %c0_250], %419 {strides = array<i32>} : memref<16x32xf32, #tpu.memory_space<vmem>>, vector<16x32xf32>,
    %c0_251 = arith.constant 0 : index
    %c0_252 = arith.constant 0 : index
    %423 = vector.load %arg15[%c0_251, %c0_252] : memref<16x32xf32, #tpu.memory_space<vmem>>, vector<16x32xf32>
    tpu.vector_store %arg15[%c0_251, %c0_252], %421 {strides = array<i32>} : memref<16x32xf32, #tpu.memory_space<vmem>>, vector<16x32xf32>,
    %c4_i32 = arith.constant 4 : i32
    %424 = vector.broadcast %c4_i32 : i32 to vector<16x1xi32>
    %425 = arith.cmpi sle, %7, %424 : vector<16x1xi32>
    %c4_i32_253 = arith.constant 4 : i32
    %426 = vector.broadcast %c4_i32_253 : i32 to vector<16x1xi32>
    %427 = arith.cmpi sgt, %9, %426 : vector<16x1xi32>
    %428 = arith.andi %425, %427 : vector<16x1xi1>
    %c0_254 = arith.constant 0 : index
    %c0_255 = arith.constant 0 : index
    %429 = vector.load %arg17[%c0_254, %c0_255] : memref<16x32xf32, #tpu.memory_space<vmem>>, vector<16x32xf32>
    %cst_256 = arith.constant 0xFF800000 : f32
    %430 = vector.shape_cast %428 : vector<16x1xi1> to vector<16x1xi1>
    %431 = vector.broadcast %430 : vector<16x1xi1> to vector<16x32xi1>
    %432 = vector.broadcast %cst_256 : f32 to vector<16x32xf32>
    %433 = arith.select %431, %421, %432 : vector<16x32xi1>, vector<16x32xf32>
    %434 = arith.maximumf %429, %433 : vector<16x32xf32>
    %c0_257 = arith.constant 0 : index
    %c0_258 = arith.constant 0 : index
    %435 = vector.load %arg17[%c0_257, %c0_258] : memref<16x32xf32, #tpu.memory_space<vmem>>, vector<16x32xf32>
    tpu.vector_store %arg17[%c0_257, %c0_258], %434 {strides = array<i32>} : memref<16x32xf32, #tpu.memory_space<vmem>>, vector<16x32xf32>,
    %c80_259 = arith.constant 80 : index
    %c0_260 = arith.constant 0 : index
    %436 = vector.load %arg13[%c80_259, %c0_260] : memref<128x128xf32, #tpu.memory_space<vmem>>, vector<16x128xf32>
    %c0_261 = arith.constant 0 : index
    %c0_262 = arith.constant 0 : index
    %437 = vector.load %arg15[%c0_261, %c0_262] : memref<16x32xf32, #tpu.memory_space<vmem>>, vector<16x32xf32>
    %438 = arith.truncf %437 : vector<16x32xf32> to vector<16x32xbf16>
    %c0_263 = arith.constant 0 : index
    %c0_264 = arith.constant 0 : index
    %439 = vector.load %arg8[%c0_263, %c0_264] : memref<32x128xbf16, #tpu.memory_space<vmem>>, vector<32x128xbf16>
    %cst_265 = arith.constant dense<0.000000e+00> : vector<16x128xf32>
    %440 = tpu.matmul %438, %439, %cst_265 {dimension_numbers = #tpu.dot_dimension_numbers<[1], [0], [0], [1], [0, 0, 1, 1], [], []>} : vector<16x32xbf16>, vector<32x128xbf16>, vector<16x128xf32> -> vector<16x128xf32>
    %441 = arith.addf %436, %440 : vector<16x128xf32>
    %442 = math.tanh %441 : vector<16x128xf32>
    %443 = arith.negf %441 : vector<16x128xf32>
    %444 = math.exp %443 : vector<16x128xf32>
    %cst_266 = arith.constant 1.000000e+00 : f32
    %445 = vector.broadcast %cst_266 : f32 to vector<16x128xf32>
    %446 = arith.addf %445, %444 : vector<16x128xf32>
    %447 = arith.divf %445, %446 : vector<16x128xf32>
    %448 = arith.select %5, %442, %447 : vector<16x128xi1>, vector<16x128xf32>
    %449 = vector.extract_strided_slice %448 {offsets = [0, 0], sizes = [16, 32], strides = [1, 1]} : vector<16x128xf32> to vector<16x32xf32>
    %450 = vector.extract_strided_slice %448 {offsets = [0, 32], sizes = [16, 32], strides = [1, 1]} : vector<16x128xf32> to vector<16x32xf32>
    %451 = vector.extract_strided_slice %448 {offsets = [0, 64], sizes = [16, 32], strides = [1, 1]} : vector<16x128xf32> to vector<16x32xf32>
    %452 = vector.extract_strided_slice %448 {offsets = [0, 96], sizes = [16, 32], strides = [1, 1]} : vector<16x128xf32> to vector<16x32xf32>
    %c0_267 = arith.constant 0 : index
    %c0_268 = arith.constant 0 : index
    %453 = vector.load %arg16[%c0_267, %c0_268] : memref<16x32xf32, #tpu.memory_space<vmem>>, vector<16x32xf32>
    %454 = arith.mulf %450, %453 : vector<16x32xf32>
    %455 = arith.mulf %449, %451 : vector<16x32xf32>
    %456 = arith.addf %454, %455 : vector<16x32xf32>
    %457 = math.tanh %456 : vector<16x32xf32>
    %458 = arith.mulf %452, %457 : vector<16x32xf32>
    %c0_269 = arith.constant 0 : index
    %c0_270 = arith.constant 0 : index
    %459 = vector.load %arg16[%c0_269, %c0_270] : memref<16x32xf32, #tpu.memory_space<vmem>>, vector<16x32xf32>
    tpu.vector_store %arg16[%c0_269, %c0_270], %456 {strides = array<i32>} : memref<16x32xf32, #tpu.memory_space<vmem>>, vector<16x32xf32>,
    %c0_271 = arith.constant 0 : index
    %c0_272 = arith.constant 0 : index
    %460 = vector.load %arg15[%c0_271, %c0_272] : memref<16x32xf32, #tpu.memory_space<vmem>>, vector<16x32xf32>
    tpu.vector_store %arg15[%c0_271, %c0_272], %458 {strides = array<i32>} : memref<16x32xf32, #tpu.memory_space<vmem>>, vector<16x32xf32>,
    %c5_i32 = arith.constant 5 : i32
    %461 = vector.broadcast %c5_i32 : i32 to vector<16x1xi32>
    %462 = arith.cmpi sle, %7, %461 : vector<16x1xi32>
    %c5_i32_273 = arith.constant 5 : i32
    %463 = vector.broadcast %c5_i32_273 : i32 to vector<16x1xi32>
    %464 = arith.cmpi sgt, %9, %463 : vector<16x1xi32>
    %465 = arith.andi %462, %464 : vector<16x1xi1>
    %c0_274 = arith.constant 0 : index
    %c0_275 = arith.constant 0 : index
    %466 = vector.load %arg17[%c0_274, %c0_275] : memref<16x32xf32, #tpu.memory_space<vmem>>, vector<16x32xf32>
    %cst_276 = arith.constant 0xFF800000 : f32
    %467 = vector.shape_cast %465 : vector<16x1xi1> to vector<16x1xi1>
    %468 = vector.broadcast %467 : vector<16x1xi1> to vector<16x32xi1>
    %469 = vector.broadcast %cst_276 : f32 to vector<16x32xf32>
    %470 = arith.select %468, %458, %469 : vector<16x32xi1>, vector<16x32xf32>
    %471 = arith.maximumf %466, %470 : vector<16x32xf32>
    %c0_277 = arith.constant 0 : index
    %c0_278 = arith.constant 0 : index
    %472 = vector.load %arg17[%c0_277, %c0_278] : memref<16x32xf32, #tpu.memory_space<vmem>>, vector<16x32xf32>
    tpu.vector_store %arg17[%c0_277, %c0_278], %471 {strides = array<i32>} : memref<16x32xf32, #tpu.memory_space<vmem>>, vector<16x32xf32>,
    %c96_279 = arith.constant 96 : index
    %c0_280 = arith.constant 0 : index
    %473 = vector.load %arg13[%c96_279, %c0_280] : memref<128x128xf32, #tpu.memory_space<vmem>>, vector<16x128xf32>
    %c0_281 = arith.constant 0 : index
    %c0_282 = arith.constant 0 : index
    %474 = vector.load %arg15[%c0_281, %c0_282] : memref<16x32xf32, #tpu.memory_space<vmem>>, vector<16x32xf32>
    %475 = arith.truncf %474 : vector<16x32xf32> to vector<16x32xbf16>
    %c0_283 = arith.constant 0 : index
    %c0_284 = arith.constant 0 : index
    %476 = vector.load %arg8[%c0_283, %c0_284] : memref<32x128xbf16, #tpu.memory_space<vmem>>, vector<32x128xbf16>
    %cst_285 = arith.constant dense<0.000000e+00> : vector<16x128xf32>
    %477 = tpu.matmul %475, %476, %cst_285 {dimension_numbers = #tpu.dot_dimension_numbers<[1], [0], [0], [1], [0, 0, 1, 1], [], []>} : vector<16x32xbf16>, vector<32x128xbf16>, vector<16x128xf32> -> vector<16x128xf32>
    %478 = arith.addf %473, %477 : vector<16x128xf32>
    %479 = math.tanh %478 : vector<16x128xf32>
    %480 = arith.negf %478 : vector<16x128xf32>
    %481 = math.exp %480 : vector<16x128xf32>
    %cst_286 = arith.constant 1.000000e+00 : f32
    %482 = vector.broadcast %cst_286 : f32 to vector<16x128xf32>
    %483 = arith.addf %482, %481 : vector<16x128xf32>
    %484 = arith.divf %482, %483 : vector<16x128xf32>
    %485 = arith.select %5, %479, %484 : vector<16x128xi1>, vector<16x128xf32>
    %486 = vector.extract_strided_slice %485 {offsets = [0, 0], sizes = [16, 32], strides = [1, 1]} : vector<16x128xf32> to vector<16x32xf32>
    %487 = vector.extract_strided_slice %485 {offsets = [0, 32], sizes = [16, 32], strides = [1, 1]} : vector<16x128xf32> to vector<16x32xf32>
    %488 = vector.extract_strided_slice %485 {offsets = [0, 64], sizes = [16, 32], strides = [1, 1]} : vector<16x128xf32> to vector<16x32xf32>
    %489 = vector.extract_strided_slice %485 {offsets = [0, 96], sizes = [16, 32], strides = [1, 1]} : vector<16x128xf32> to vector<16x32xf32>
    %c0_287 = arith.constant 0 : index
    %c0_288 = arith.constant 0 : index
    %490 = vector.load %arg16[%c0_287, %c0_288] : memref<16x32xf32, #tpu.memory_space<vmem>>, vector<16x32xf32>
    %491 = arith.mulf %487, %490 : vector<16x32xf32>
    %492 = arith.mulf %486, %488 : vector<16x32xf32>
    %493 = arith.addf %491, %492 : vector<16x32xf32>
    %494 = math.tanh %493 : vector<16x32xf32>
    %495 = arith.mulf %489, %494 : vector<16x32xf32>
    %c0_289 = arith.constant 0 : index
    %c0_290 = arith.constant 0 : index
    %496 = vector.load %arg16[%c0_289, %c0_290] : memref<16x32xf32, #tpu.memory_space<vmem>>, vector<16x32xf32>
    tpu.vector_store %arg16[%c0_289, %c0_290], %493 {strides = array<i32>} : memref<16x32xf32, #tpu.memory_space<vmem>>, vector<16x32xf32>,
    %c0_291 = arith.constant 0 : index
    %c0_292 = arith.constant 0 : index
    %497 = vector.load %arg15[%c0_291, %c0_292] : memref<16x32xf32, #tpu.memory_space<vmem>>, vector<16x32xf32>
    tpu.vector_store %arg15[%c0_291, %c0_292], %495 {strides = array<i32>} : memref<16x32xf32, #tpu.memory_space<vmem>>, vector<16x32xf32>,
    %c6_i32 = arith.constant 6 : i32
    %498 = vector.broadcast %c6_i32 : i32 to vector<16x1xi32>
    %499 = arith.cmpi sle, %7, %498 : vector<16x1xi32>
    %c6_i32_293 = arith.constant 6 : i32
    %500 = vector.broadcast %c6_i32_293 : i32 to vector<16x1xi32>
    %501 = arith.cmpi sgt, %9, %500 : vector<16x1xi32>
    %502 = arith.andi %499, %501 : vector<16x1xi1>
    %c0_294 = arith.constant 0 : index
    %c0_295 = arith.constant 0 : index
    %503 = vector.load %arg17[%c0_294, %c0_295] : memref<16x32xf32, #tpu.memory_space<vmem>>, vector<16x32xf32>
    %cst_296 = arith.constant 0xFF800000 : f32
    %504 = vector.shape_cast %502 : vector<16x1xi1> to vector<16x1xi1>
    %505 = vector.broadcast %504 : vector<16x1xi1> to vector<16x32xi1>
    %506 = vector.broadcast %cst_296 : f32 to vector<16x32xf32>
    %507 = arith.select %505, %495, %506 : vector<16x32xi1>, vector<16x32xf32>
    %508 = arith.maximumf %503, %507 : vector<16x32xf32>
    %c0_297 = arith.constant 0 : index
    %c0_298 = arith.constant 0 : index
    %509 = vector.load %arg17[%c0_297, %c0_298] : memref<16x32xf32, #tpu.memory_space<vmem>>, vector<16x32xf32>
    tpu.vector_store %arg17[%c0_297, %c0_298], %508 {strides = array<i32>} : memref<16x32xf32, #tpu.memory_space<vmem>>, vector<16x32xf32>,
    %c112_299 = arith.constant 112 : index
    %c0_300 = arith.constant 0 : index
    %510 = vector.load %arg13[%c112_299, %c0_300] : memref<128x128xf32, #tpu.memory_space<vmem>>, vector<16x128xf32>
    %c0_301 = arith.constant 0 : index
    %c0_302 = arith.constant 0 : index
    %511 = vector.load %arg15[%c0_301, %c0_302] : memref<16x32xf32, #tpu.memory_space<vmem>>, vector<16x32xf32>
    %512 = arith.truncf %511 : vector<16x32xf32> to vector<16x32xbf16>
    %c0_303 = arith.constant 0 : index
    %c0_304 = arith.constant 0 : index
    %513 = vector.load %arg8[%c0_303, %c0_304] : memref<32x128xbf16, #tpu.memory_space<vmem>>, vector<32x128xbf16>
    %cst_305 = arith.constant dense<0.000000e+00> : vector<16x128xf32>
    %514 = tpu.matmul %512, %513, %cst_305 {dimension_numbers = #tpu.dot_dimension_numbers<[1], [0], [0], [1], [0, 0, 1, 1], [], []>} : vector<16x32xbf16>, vector<32x128xbf16>, vector<16x128xf32> -> vector<16x128xf32>
    %515 = arith.addf %510, %514 : vector<16x128xf32>
    %516 = math.tanh %515 : vector<16x128xf32>
    %517 = arith.negf %515 : vector<16x128xf32>
    %518 = math.exp %517 : vector<16x128xf32>
    %cst_306 = arith.constant 1.000000e+00 : f32
    %519 = vector.broadcast %cst_306 : f32 to vector<16x128xf32>
    %520 = arith.addf %519, %518 : vector<16x128xf32>
    %521 = arith.divf %519, %520 : vector<16x128xf32>
    %522 = arith.select %5, %516, %521 : vector<16x128xi1>, vector<16x128xf32>
    %523 = vector.extract_strided_slice %522 {offsets = [0, 0], sizes = [16, 32], strides = [1, 1]} : vector<16x128xf32> to vector<16x32xf32>
    %524 = vector.extract_strided_slice %522 {offsets = [0, 32], sizes = [16, 32], strides = [1, 1]} : vector<16x128xf32> to vector<16x32xf32>
    %525 = vector.extract_strided_slice %522 {offsets = [0, 64], sizes = [16, 32], strides = [1, 1]} : vector<16x128xf32> to vector<16x32xf32>
    %526 = vector.extract_strided_slice %522 {offsets = [0, 96], sizes = [16, 32], strides = [1, 1]} : vector<16x128xf32> to vector<16x32xf32>
    %c0_307 = arith.constant 0 : index
    %c0_308 = arith.constant 0 : index
    %527 = vector.load %arg16[%c0_307, %c0_308] : memref<16x32xf32, #tpu.memory_space<vmem>>, vector<16x32xf32>
    %528 = arith.mulf %524, %527 : vector<16x32xf32>
    %529 = arith.mulf %523, %525 : vector<16x32xf32>
    %530 = arith.addf %528, %529 : vector<16x32xf32>
    %531 = math.tanh %530 : vector<16x32xf32>
    %532 = arith.mulf %526, %531 : vector<16x32xf32>
    %c0_309 = arith.constant 0 : index
    %c0_310 = arith.constant 0 : index
    %533 = vector.load %arg16[%c0_309, %c0_310] : memref<16x32xf32, #tpu.memory_space<vmem>>, vector<16x32xf32>
    tpu.vector_store %arg16[%c0_309, %c0_310], %530 {strides = array<i32>} : memref<16x32xf32, #tpu.memory_space<vmem>>, vector<16x32xf32>,
    %c0_311 = arith.constant 0 : index
    %c0_312 = arith.constant 0 : index
    %534 = vector.load %arg15[%c0_311, %c0_312] : memref<16x32xf32, #tpu.memory_space<vmem>>, vector<16x32xf32>
    tpu.vector_store %arg15[%c0_311, %c0_312], %532 {strides = array<i32>} : memref<16x32xf32, #tpu.memory_space<vmem>>, vector<16x32xf32>,
    %c7_i32 = arith.constant 7 : i32
    %535 = vector.broadcast %c7_i32 : i32 to vector<16x1xi32>
    %536 = arith.cmpi sle, %7, %535 : vector<16x1xi32>
    %c7_i32_313 = arith.constant 7 : i32
    %537 = vector.broadcast %c7_i32_313 : i32 to vector<16x1xi32>
    %538 = arith.cmpi sgt, %9, %537 : vector<16x1xi32>
    %539 = arith.andi %536, %538 : vector<16x1xi1>
    %c0_314 = arith.constant 0 : index
    %c0_315 = arith.constant 0 : index
    %540 = vector.load %arg17[%c0_314, %c0_315] : memref<16x32xf32, #tpu.memory_space<vmem>>, vector<16x32xf32>
    %cst_316 = arith.constant 0xFF800000 : f32
    %541 = vector.shape_cast %539 : vector<16x1xi1> to vector<16x1xi1>
    %542 = vector.broadcast %541 : vector<16x1xi1> to vector<16x32xi1>
    %543 = vector.broadcast %cst_316 : f32 to vector<16x32xf32>
    %544 = arith.select %542, %532, %543 : vector<16x32xi1>, vector<16x32xf32>
    %545 = arith.maximumf %540, %544 : vector<16x32xf32>
    %c0_317 = arith.constant 0 : index
    %c0_318 = arith.constant 0 : index
    %546 = vector.load %arg17[%c0_317, %c0_318] : memref<16x32xf32, #tpu.memory_space<vmem>>, vector<16x32xf32>
    tpu.vector_store %arg17[%c0_317, %c0_318], %545 {strides = array<i32>} : memref<16x32xf32, #tpu.memory_space<vmem>>, vector<16x32xf32>,
    %547 = arith.cmpi sgt, %9, %7 : vector<16x1xi32>
    %c0_319 = arith.constant 0 : index
    %c0_320 = arith.constant 0 : index
    %548 = vector.load %arg17[%c0_319, %c0_320] : memref<16x32xf32, #tpu.memory_space<vmem>>, vector<16x32xf32>
    %cst_321 = arith.constant 0.000000e+00 : f32
    %549 = vector.shape_cast %547 : vector<16x1xi1> to vector<16x1xi1>
    %550 = vector.broadcast %549 : vector<16x1xi1> to vector<16x32xi1>
    %551 = vector.broadcast %cst_321 : f32 to vector<16x32xf32>
    %552 = arith.select %550, %548, %551 : vector<16x32xi1>, vector<16x32xf32>
    %553 = arith.truncf %552 : vector<16x32xf32> to vector<16x32xbf16>
    %c0_322 = arith.constant 0 : index
    %c0_323 = arith.constant 0 : index
    %554 = vector.load %arg10[%c0_322, %c0_323] : memref<32x128xbf16, #tpu.memory_space<vmem>>, vector<32x128xbf16>
    %cst_324 = arith.constant dense<0.000000e+00> : vector<16x128xf32>
    %555 = tpu.matmul %553, %554, %cst_324 {dimension_numbers = #tpu.dot_dimension_numbers<[1], [0], [0], [1], [0, 0, 1, 1], [], []>} : vector<16x32xbf16>, vector<32x128xbf16>, vector<16x128xf32> -> vector<16x128xf32>
    %c0_325 = arith.constant 0 : index
    %c0_326 = arith.constant 0 : index
    %556 = vector.load %arg11[%c0_325, %c0_326] : memref<1x128xf32, #tpu.memory_space<vmem>>, vector<1x128xf32>
    %557 = vector.broadcast %556 : vector<1x128xf32> to vector<16x128xf32>
    %558 = arith.addf %555, %557 : vector<16x128xf32>
    %c0_327 = arith.constant 0 : index
    %c0_328 = arith.constant 0 : index
    %559 = vector.load %arg12[%c0_327, %c0_328] : memref<16x128xf32, #tpu.memory_space<vmem>>, vector<16x128xf32>
    tpu.vector_store %arg12[%c0_327, %c0_328], %558 {strides = array<i32>} : memref<16x128xf32, #tpu.memory_space<vmem>>, vector<16x128xf32>,
    return
  }
  func.func @transform_0(%arg0: i32) -> (i32, i32, i32) {
    %c0_i32 = arith.constant 0 : i32
    %c0_i32_0 = arith.constant 0 : i32
    %c0_i32_1 = arith.constant 0 : i32
    return %arg0, %c0_i32, %c0_i32_0 : i32, i32, i32
  }
  func.func @transform_1(%arg0: i32) -> (i32, i32, i32) {
    %c0_i32 = arith.constant 0 : i32
    %c0_i32_0 = arith.constant 0 : i32
    %c0_i32_1 = arith.constant 0 : i32
    return %arg0, %c0_i32, %c0_i32_0 : i32, i32, i32
  }
  func.func @transform_2(%arg0: i32) -> (i32, i32, i32) {
    %c0_i32 = arith.constant 0 : i32
    %c0_i32_0 = arith.constant 0 : i32
    %c0_i32_1 = arith.constant 0 : i32
    return %arg0, %c0_i32, %c0_i32_0 : i32, i32, i32
  }
  func.func @transform_3(%arg0: i32) -> (i32, i32) {
    %c0_i32 = arith.constant 0 : i32
    %c0_i32_0 = arith.constant 0 : i32
    %c0_i32_1 = arith.constant 0 : i32
    return %c0_i32, %c0_i32_0 : i32, i32
  }
  func.func @transform_4(%arg0: i32) -> (i32, i32) {
    %c0_i32 = arith.constant 0 : i32
    %c0_i32_0 = arith.constant 0 : i32
    %c0_i32_1 = arith.constant 0 : i32
    return %c0_i32, %c0_i32_0 : i32, i32
  }
  func.func @transform_5(%arg0: i32) -> (i32, i32) {
    %c0_i32 = arith.constant 0 : i32
    %c0_i32_0 = arith.constant 0 : i32
    %c0_i32_1 = arith.constant 0 : i32
    return %c0_i32, %c0_i32_0 : i32, i32
  }
  func.func @transform_6(%arg0: i32) -> (i32, i32) {
    %c0_i32 = arith.constant 0 : i32
    %c0_i32_0 = arith.constant 0 : i32
    %c0_i32_1 = arith.constant 0 : i32
    return %c0_i32, %c0_i32_0 : i32, i32
  }
  func.func @transform_7(%arg0: i32) -> (i32, i32) {
    %c0_i32 = arith.constant 0 : i32
    %c0_i32_0 = arith.constant 0 : i32
    %c0_i32_1 = arith.constant 0 : i32
    return %c0_i32, %c0_i32_0 : i32, i32
  }
  func.func @transform_8(%arg0: i32) -> (i32, i32) {
    %c0_i32 = arith.constant 0 : i32
    %c0_i32_0 = arith.constant 0 : i32
    %c0_i32_1 = arith.constant 0 : i32
    return %c0_i32, %c0_i32_0 : i32, i32
  }
  func.func @transform_9(%arg0: i32) -> (i32, i32) {
    %c0_i32 = arith.constant 0 : i32
    %c0_i32_0 = arith.constant 0 : i32
    %c0_i32_1 = arith.constant 0 : i32
    return %c0_i32, %c0_i32_0 : i32, i32
  }
  func.func @transform_10(%arg0: i32) -> (i32, i32) {
    %c0_i32 = arith.constant 0 : i32
    %c0_i32_0 = arith.constant 0 : i32
    %c0_i32_1 = arith.constant 0 : i32
    return %c0_i32, %c0_i32_0 : i32, i32
  }
  func.func @transform_11(%arg0: i32) -> (i32, i32) {
    %c0_i32 = arith.constant 0 : i32
    %c0_i32_0 = arith.constant 0 : i32
    return %arg0, %c0_i32 : i32, i32
  }
}

</mosaic_0001>

<llo_original>
// kernel: tpu_custom_call.1
$region0: #{tpu_custom_call.1}
  #allocation0 [shape = 'u32[]', space=smem, size = 0x4, offset = 0x4, fixed_abs, tag = 'smem constant byte address 0x4 - core index']
  #allocation1 [shape = 'u32[144,128]{1,0:T(1,128)}', space=vmem, size = 0x12000, scoped, tag = 'internal scratch']
  #allocation2 [shape = 'f32[128,128]{1,0:T(8,128)}', space=vmem, size = 0x10000, scoped, tag = 'scratch operand']
  #allocation3 [shape = 'bf16[128,32]{1,0:T(8,128)(2,1)}', space=vmem, size = 0x8000, scoped, tag = 'scratch operand']
  #allocation4 [shape = 'f32[16,32]{1,0:T(8,128)}', space=vmem, size = 0x2000, scoped, tag = 'scratch operand']
  #allocation5 [shape = 'f32[16,32]{1,0:T(8,128)}', space=vmem, size = 0x2000, scoped, tag = 'scratch operand']
  #allocation6 [shape = 'f32[16,32]{1,0:T(8,128)}', space=vmem, size = 0x2000, scoped, tag = 'scratch operand']
  %s0 = inlined_call_operand.vmem [shape: bf16[1,128,32], index: 0, kind: input, shape index: {}]
  %s1 = inlined_call_operand.vmem [shape: s32[1,16,1], index: 1, kind: input, shape index: {}]
  %s2 = inlined_call_operand.vmem [shape: s32[1,16,1], index: 2, kind: input, shape index: {}]
  %s3 = inlined_call_operand.vmem [shape: bf16[32,128], index: 3, kind: input, shape index: {}]
  %s4 = inlined_call_operand.vmem [shape: bf16[32,128], index: 4, kind: input, shape index: {}]
  %s5 = inlined_call_operand.vmem [shape: f32[1,128], index: 5, kind: input, shape index: {}]
  %s6 = inlined_call_operand.vmem [shape: bf16[32,128], index: 6, kind: input, shape index: {}]
  %s7 = inlined_call_operand.vmem [shape: bf16[32,128], index: 7, kind: input, shape index: {}]
  %s8 = inlined_call_operand.vmem [shape: f32[1,128], index: 8, kind: input, shape index: {}]
  %s9 = inlined_call_operand.vmem [shape: bf16[32,128], index: 9, kind: input, shape index: {}]
  %s10 = inlined_call_operand.vmem [shape: f32[1,128], index: 10, kind: input, shape index: {}]
  %s11 = inlined_call_operand.hbm [shape: f32[16,128], index: 11, kind: output, shape index: {}]
  %s12 = sld [smem:[#allocation0]]
  $region54: #{tpu_custom_call.1} parent=0
    _
  %s14 = ssub.s32 1, %s12
  %s15 = scalar_select 0, %s14, %s12
  $region1: #{tpu_custom_call.1} parent=0
    #allocation7 [shape = 'u8[8192]{0}', space=vmem, size = 0x2000, scoped, tag = 'output window, operand 0, single buffered']
    #allocation8 [shape = 's32[1]{0}', space=sflag, size = 0x4, scoped, tag = 'scoped memory for tpu_custom_call.1']
    %16 = vsyncpa [#allocation8], 0
    // Predicated region
    $region2: #{tpu_custom_call.1} parent=1 // pred_check
      _
    $region3: #{tpu_custom_call.1} parent=1 // pred_check_branch
      %18 = sbr.rel (0) target = $region5
    $region4: #{tpu_custom_call.1} parent=1 // pred_region
      _
    $region5: #{tpu_custom_call.1} parent=1 // pred_fallthru
      _
    // Predicated region
    $region6: #{tpu_custom_call.1} parent=1 // pred_check
      _
    $region7: #{tpu_custom_call.1} parent=1 // pred_check_branch
      %20 = sbr.rel (0) target = $region9
    $region8: #{tpu_custom_call.1} parent=1 // pred_region
      _
    $region9: #{tpu_custom_call.1} parent=1 // pred_fallthru
      _
    // Predicated region
    $region10: #{tpu_custom_call.1} parent=1 // pred_check
      _
    $region11: #{tpu_custom_call.1} parent=1 // pred_check_branch
      %22 = sbr.rel (0) target = $region13
    $region12: #{tpu_custom_call.1} parent=1 // pred_region
      _
    $region13: #{tpu_custom_call.1} parent=1 // pred_fallthru
      _
    // Predicated region
    $region14: #{tpu_custom_call.1} parent=1 // pred_check
      _
    $region15: #{tpu_custom_call.1} parent=1 // pred_check_branch
      %24 = sbr.rel (0) target = $region17
    $region16: #{tpu_custom_call.1} parent=1 // pred_region
      _
    $region17: #{tpu_custom_call.1} parent=1 // pred_fallthru
      _
    // Predicated region
    $region18: #{tpu_custom_call.1} parent=1 // pred_check
      _
    $region19: #{tpu_custom_call.1} parent=1 // pred_check_branch
      %26 = sbr.rel (0) target = $region21
    $region20: #{tpu_custom_call.1} parent=1 // pred_region
      _
    $region21: #{tpu_custom_call.1} parent=1 // pred_fallthru
      _
    // Predicated region
    $region22: #{tpu_custom_call.1} parent=1 // pred_check
      _
    $region23: #{tpu_custom_call.1} parent=1 // pred_check_branch
      %28 = sbr.rel (0) target = $region25
    $region24: #{tpu_custom_call.1} parent=1 // pred_region
      _
    $region25: #{tpu_custom_call.1} parent=1 // pred_fallthru
      _
    // Predicated region
    $region26: #{tpu_custom_call.1} parent=1 // pred_check
      _
    $region27: #{tpu_custom_call.1} parent=1 // pred_check_branch
      %30 = sbr.rel (0) target = $region29
    $region28: #{tpu_custom_call.1} parent=1 // pred_region
      _
    $region29: #{tpu_custom_call.1} parent=1 // pred_fallthru
      _
    // Predicated region
    $region30: #{tpu_custom_call.1} parent=1 // pred_check
      _
    $region31: #{tpu_custom_call.1} parent=1 // pred_check_branch
      %32 = sbr.rel (0) target = $region33
    $region32: #{tpu_custom_call.1} parent=1 // pred_region
      _
    $region33: #{tpu_custom_call.1} parent=1 // pred_fallthru
      _
    // Predicated region
    $region34: #{tpu_custom_call.1} parent=1 // pred_check
      _
    $region35: #{tpu_custom_call.1} parent=1 // pred_check_branch
      %34 = sbr.rel (0) target = $region37
    $region36: #{tpu_custom_call.1} parent=1 // pred_region
      _
    $region37: #{tpu_custom_call.1} parent=1 // pred_fallthru
      _
    // Predicated region
    $region38: #{tpu_custom_call.1} parent=1 // pred_check
      _
    $region39: #{tpu_custom_call.1} parent=1 // pred_check_branch
      %36 = sbr.rel (0) target = $region41
    $region40: #{tpu_custom_call.1} parent=1 // pred_region
      _
    $region41: #{tpu_custom_call.1} parent=1 // pred_fallthru
      _
    // Predicated region
    $region42: #{tpu_custom_call.1} parent=1 // pred_check
      _
    $region43: #{tpu_custom_call.1} parent=1 // pred_check_branch
      %38 = sbr.rel (0) target = $region45
    $region44: #{tpu_custom_call.1} parent=1 // pred_region
      _
    $region45: #{tpu_custom_call.1} parent=1 // pred_fallthru
      _
    %v40 = vlaneseq
    %v41 = vand.u32 %v40, 127
    %vm42 = vcmp.ge.s32.totalorder %v41, 64
    %vm43 = vcmp.lt.s32.totalorder %v41, 96
    %vm44 = vmand %vm42, %vm43
    %v45 = vld [vmem:[%s1] sm:$0xff]
    %v46 = vld [vmem:[%s1 + $0x8] sm:$0xff]
    %v47 = vld [vmem:[%s2] sm:$0xff]
    %v48 = vld [vmem:[%s2 + $0x8] sm:$0xff]
    %v49 = vld [vmem:[%s0] sm:$0xf]
    %v50 = vld [vmem:[%s0 + $0x4] sm:$0xf]
    %v51 = vld [vmem:[%s0 + $0x8] sm:$0xf]
    %v52 = vld [vmem:[%s0 + $0xc] sm:$0xf]
    %v53 = vld [vmem:[%s0 + $0x10] sm:$0xf]
    %v54 = vld [vmem:[%s0 + $0x14] sm:$0xf]
    %v55 = vld [vmem:[%s0 + $0x18] sm:$0xf]
    %v56 = vld [vmem:[%s0 + $0x1c] sm:$0xf]
    %v57 = vld [vmem:[%s0 + $0x20] sm:$0xf]
    %v58 = vld [vmem:[%s0 + $0x24] sm:$0xf]
    %v59 = vld [vmem:[%s0 + $0x28] sm:$0xf]
    %v60 = vld [vmem:[%s0 + $0x2c] sm:$0xf]
    %v61 = vld [vmem:[%s0 + $0x30] sm:$0xf]
    %v62 = vld [vmem:[%s0 + $0x34] sm:$0xf]
    %v63 = vld [vmem:[%s0 + $0x38] sm:$0xf]
    %v64 = vld [vmem:[%s0 + $0x3c] sm:$0xf]
    %v65 = vld [vmem:[%s3] sm:$0xf]
    %v66 = vld [vmem:[%s3 + $0x4] sm:$0xf]
    %v67 = vld [vmem:[%s3 + $0x8] sm:$0xf]
    %v68 = vld [vmem:[%s3 + $0xc] sm:$0xf]
    %v69 = vld [vmem:[%s5] sm:$0x1]
    %v71 = vlaneseq
    %v72 = vshrl.u32 %v71, 7
    %v73 = vsub.s32 0, %v72
    %v74 = vrot.slane %v69, %v73
    %v92 = vunpack.c.l.b16 %v49
    %v93 = vunpack.c.l.b16 %v50
    %v94 = vunpack.c.l.b16 %v51
    %v95 = vunpack.c.l.b16 %v52
    %v96 = vunpack.c.l.b16 %v53
    %v97 = vunpack.c.l.b16 %v54
    %v98 = vunpack.c.l.b16 %v55
    %v99 = vunpack.c.l.b16 %v56
    %v100 = vunpack.c.l.b16 %v57
    %v101 = vunpack.c.l.b16 %v58
    %v102 = vunpack.c.l.b16 %v59
    %v103 = vunpack.c.l.b16 %v60
    %v104 = vunpack.c.l.b16 %v61
    %v105 = vunpack.c.l.b16 %v62
    %v106 = vunpack.c.l.b16 %v63
    %v107 = vunpack.c.l.b16 %v64
    %v108 = vpack.c.b16 %v93, %v92
    %v109 = vpack.c.b16 %v95, %v94
    %v110 = vpack.c.b16 %v97, %v96
    %v111 = vpack.c.b16 %v99, %v98
    %v112 = vpack.c.b16 %v101, %v100
    %v113 = vpack.c.b16 %v103, %v102
    %v114 = vpack.c.b16 %v105, %v104
    %v115 = vpack.c.b16 %v107, %v106
    %v120 = vunpack.c.l.b16 %v65
    %v121 = vunpack.c.l.b16 %v66
    %v122 = vunpack.c.l.b16 %v67
    %v123 = vunpack.c.l.b16 %v68
    %v124 = vpack.c.b16 %v121, %v120
    %v125 = vpack.c.b16 %v123, %v122
    %vm128 = vcmask 261120
    %v130 = vsel %vm128, %v108, 0
    %v133 = vsel %vm128, %v109, 0
    %v136 = vsel %vm128, %v110, 0
    %v139 = vsel %vm128, %v111, 0
    %v142 = vsel %vm128, %v112, 0
    %v145 = vsel %vm128, %v113, 0
    %v148 = vsel %vm128, %v114, 0
    %v151 = vsel %vm128, %v115, 0
    %153 = vmatprep.subr.bf16.mxu0 0
    %154 = vmatpush1.bf16.msra.mxu0 0
    %155 = vmatprep.subr.bf16.mxu0 0
    %156 = vmatpush1.bf16.msra.mxu0 0
    %157 = vmatprep.subr.bf16.mxu0 0
    %158 = vmatpush1.bf16.msra.mxu0 0
    %159 = vmatprep.subr.bf16.mxu0 0
    %160 = vmatpush1.bf16.msra.mxu0 0
    %161 = vmatprep.subr.bf16.mxu0 0
    %162 = vmatpush1.bf16.msra.mxu0 0
    %163 = vmatprep.subr.bf16.mxu0 0
    %164 = vmatpush1.bf16.msra.mxu0 0
    %165 = vmatprep.subr.bf16.mxu0 0
    %166 = vmatpush1.bf16.msra.mxu0 %v125
    %167 = vmatprep.subr.bf16.mxu0 0
    %168 = vmatpush1.bf16.msra.mxu0 %v124
    %169 = vmatprep.subr.bf16.mxu0 0
    %170 = vmatpush2.bf16.msra.mxu0 0
    %171 = vmatprep.subr.bf16.mxu0 0
    %172 = vmatpush2.bf16.msra.mxu0 0
    %173 = vmatprep.subr.bf16.mxu0 0
    %174 = vmatpush2.bf16.msra.mxu0 0
    %175 = vmatprep.subr.bf16.mxu0 0
    %176 = vmatpush2.bf16.msra.mxu0 0
    %177 = vmatprep.subr.bf16.mxu0 0
    %178 = vmatpush2.bf16.msra.mxu0 0
    %179 = vmatprep.subr.bf16.mxu0 0
    %180 = vmatpush2.bf16.msra.mxu0 0
    %181 = vmatprep.subr.bf16.mxu0 0
    %182 = vmatpush2.bf16.msra.mxu0 0
    %183 = vmatprep.subr.bf16.mxu0 0
    %184 = vmatpush2.bf16.msra.mxu0 0
    %185 = vmatprep.mubr.bf16.mxu0 0
    %186 = vmatmul.mubr.bf16.gmra.mxu0 %v130
    %v187 = vpop.f32.mrf.mxu0
    %v188 = vadd.f32 %v74, %v187
    %v189 = vpop.f32.mrf.mxu0
    %v190 = vpop.f32.mrf.mxu0
    %v191 = vadd.f32 %v74, %v190
    %v192 = vpop.f32.mrf.mxu0
    %193 = vmatprep.mubr.bf16.mxu0 0
    %194 = vmatmul.mubr.bf16.gmra.mxu0 %v133
    %v195 = vpop.f32.mrf.mxu0
    %v196 = vadd.f32 %v74, %v195
    %v197 = vpop.f32.mrf.mxu0
    %v198 = vpop.f32.mrf.mxu0
    %v199 = vadd.f32 %v74, %v198
    %v200 = vpop.f32.mrf.mxu0
    %201 = vmatprep.mubr.bf16.mxu0 0
    %202 = vmatmul.mubr.bf16.gmra.mxu0 %v136
    %v203 = vpop.f32.mrf.mxu0
    %v204 = vadd.f32 %v74, %v203
    %v205 = vpop.f32.mrf.mxu0
    %v206 = vpop.f32.mrf.mxu0
    %v207 = vadd.f32 %v74, %v206
    %v208 = vpop.f32.mrf.mxu0
    %209 = vmatprep.mubr.bf16.mxu0 0
    %210 = vmatmul.mubr.bf16.gmra.mxu0 %v139
    %v211 = vpop.f32.mrf.mxu0
    %v212 = vadd.f32 %v74, %v211
    %v213 = vpop.f32.mrf.mxu0
    %v214 = vpop.f32.mrf.mxu0
    %v215 = vadd.f32 %v74, %v214
    %v216 = vpop.f32.mrf.mxu0
    %217 = vmatprep.mubr.bf16.mxu0 0
    %218 = vmatmul.mubr.bf16.gmra.mxu0 %v142
    %v219 = vpop.f32.mrf.mxu0
    %v220 = vadd.f32 %v74, %v219
    %v221 = vpop.f32.mrf.mxu0
    %v222 = vpop.f32.mrf.mxu0
    %v223 = vadd.f32 %v74, %v222
    %v224 = vpop.f32.mrf.mxu0
    %225 = vmatprep.mubr.bf16.mxu0 0
    %226 = vmatmul.mubr.bf16.gmra.mxu0 %v145
    %v227 = vpop.f32.mrf.mxu0
    %v228 = vadd.f32 %v74, %v227
    %v229 = vpop.f32.mrf.mxu0
    %v230 = vpop.f32.mrf.mxu0
    %v231 = vadd.f32 %v74, %v230
    %v232 = vpop.f32.mrf.mxu0
    %233 = vmatprep.mubr.bf16.mxu0 0
    %234 = vmatmul.mubr.bf16.gmra.mxu0 %v148
    %v235 = vpop.f32.mrf.mxu0
    %v236 = vadd.f32 %v74, %v235
    %v237 = vpop.f32.mrf.mxu0
    %v238 = vpop.f32.mrf.mxu0
    %v239 = vadd.f32 %v74, %v238
    %v240 = vpop.f32.mrf.mxu0
    %241 = vmatprep.mubr.bf16.mxu0 0
    %242 = vmatmul.mubr.bf16.gmra.mxu0 %v151
    %v243 = vpop.f32.mrf.mxu0
    %v244 = vadd.f32 %v74, %v243
    %v245 = vpop.f32.mrf.mxu0
    %v246 = vpop.f32.mrf.mxu0
    %v247 = vadd.f32 %v74, %v246
    %v248 = vpop.f32.mrf.mxu0
    %249 = vdwg.mxu0
    %250 = vst [vmem:[#allocation2] sm:$0xff] %v188
    %251 = vst [vmem:[#allocation2 + $0x8] sm:$0xff] %v191
    %252 = vst [vmem:[#allocation2 + $0x10] sm:$0xff] %v196
    %253 = vst [vmem:[#allocation2 + $0x18] sm:$0xff] %v199
    %254 = vst [vmem:[#allocation2 + $0x20] sm:$0xff] %v204
    %255 = vst [vmem:[#allocation2 + $0x28] sm:$0xff] %v207
    %256 = vst [vmem:[#allocation2 + $0x30] sm:$0xff] %v212
    %257 = vst [vmem:[#allocation2 + $0x38] sm:$0xff] %v215
    %258 = vst [vmem:[#allocation2 + $0x40] sm:$0xff] %v220
    %259 = vst [vmem:[#allocation2 + $0x48] sm:$0xff] %v223
    %260 = vst [vmem:[#allocation2 + $0x50] sm:$0xff] %v228
    %261 = vst [vmem:[#allocation2 + $0x58] sm:$0xff] %v231
    %262 = vst [vmem:[#allocation2 + $0x60] sm:$0xff] %v236
    %263 = vst [vmem:[#allocation2 + $0x68] sm:$0xff] %v239
    %264 = vst [vmem:[#allocation2 + $0x70] sm:$0xff] %v244
    %265 = vst [vmem:[#allocation2 + $0x78] sm:$0xff] %v247
    %266 = vst.msk [vmem:[#allocation4] sm:$0xff] %vm128, 0.0
    %267 = vst.msk [vmem:[#allocation4 + $0x8] sm:$0xff] %vm128, 0.0
    %268 = vst.msk [vmem:[#allocation5] sm:$0xff] %vm128, 0.0
    %269 = vst.msk [vmem:[#allocation5 + $0x8] sm:$0xff] %vm128, 0.0
    %v270 = vld [vmem:[#allocation2] sm:$0xff]
    %v271 = vld [vmem:[#allocation2 + $0x8] sm:$0xff]
    %v272 = vld [vmem:[#allocation4] sm:$0xff]
    %v273 = vld [vmem:[#allocation4 + $0x8] sm:$0xff]
    %v274 = vpack.c.bf16 %v273, %v272
    %v275 = vld [vmem:[%s4] sm:$0xf]
    %v276 = vld [vmem:[%s4 + $0x4] sm:$0xf]
    %v277 = vld [vmem:[%s4 + $0x8] sm:$0xf]
    %v278 = vld [vmem:[%s4 + $0xc] sm:$0xf]
    %v283 = vunpack.c.l.b16 %v275
    %v284 = vunpack.c.l.b16 %v276
    %v285 = vunpack.c.l.b16 %v277
    %v286 = vunpack.c.l.b16 %v278
    %v287 = vpack.c.b16 %v284, %v283
    %v288 = vpack.c.b16 %v286, %v285
    %v292 = vsel %vm128, %v274, 0
    %294 = vmatprep.subr.bf16.mxu0 0
    %295 = vmatpush1.bf16.msra.mxu0 0
    %296 = vmatprep.subr.bf16.mxu0 0
    %297 = vmatpush1.bf16.msra.mxu0 0
    %298 = vmatprep.subr.bf16.mxu0 0
    %299 = vmatpush1.bf16.msra.mxu0 0
    %300 = vmatprep.subr.bf16.mxu0 0
    %301 = vmatpush1.bf16.msra.mxu0 0
    %302 = vmatprep.subr.bf16.mxu0 0
    %303 = vmatpush1.bf16.msra.mxu0 0
    %304 = vmatprep.subr.bf16.mxu0 0
    %305 = vmatpush1.bf16.msra.mxu0 0
    %306 = vmatprep.subr.bf16.mxu0 0
    %307 = vmatpush1.bf16.msra.mxu0 %v288
    %308 = vmatprep.subr.bf16.mxu0 0
    %309 = vmatpush1.bf16.msra.mxu0 %v287
    %310 = vmatprep.subr.bf16.mxu0 0
    %311 = vmatpush2.bf16.msra.mxu0 0
    %312 = vmatprep.subr.bf16.mxu0 0
    %313 = vmatpush2.bf16.msra.mxu0 0
    %314 = vmatprep.subr.bf16.mxu0 0
    %315 = vmatpush2.bf16.msra.mxu0 0
    %316 = vmatprep.subr.bf16.mxu0 0
    %317 = vmatpush2.bf16.msra.mxu0 0
    %318 = vmatprep.subr.bf16.mxu0 0
    %319 = vmatpush2.bf16.msra.mxu0 0
    %320 = vmatprep.subr.bf16.mxu0 0
    %321 = vmatpush2.bf16.msra.mxu0 0
    %322 = vmatprep.subr.bf16.mxu0 0
    %323 = vmatpush2.bf16.msra.mxu0 0
    %324 = vmatprep.subr.bf16.mxu0 0
    %325 = vmatpush2.bf16.msra.mxu0 0
    %326 = vmatprep.mubr.bf16.mxu0 0
    %327 = vmatmul.mubr.bf16.gmra.mxu0 %v292
    %v328 = vpop.f32.mrf.mxu0
    %v329 = vadd.f32 0.0, %v328
    %v330 = vpop.f32.mrf.mxu0
    %v331 = vpop.f32.mrf.mxu0
    %v332 = vadd.f32 0.0, %v331
    %v333 = vpop.f32.mrf.mxu0
    %334 = vdwg.mxu0
    %v335 = vadd.f32 %v270, %v329
    %v336 = vadd.f32 %v271, %v332
    %v337 = vtanh.pop %v335
    %v338 = vtanh.pop %v336
    %v339 = vxor.u32 %v335, 2147483648
    %v340 = vxor.u32 %v336, 2147483648
    %v341 = vmul.f32 %v339, 1.442695
    %v342 = vpow.pop %v341
    %v343 = vmul.f32 %v340, 1.442695
    %v344 = vpow.pop %v343
    %v345 = vadd.f32 %v342, 1.0
    %v346 = vadd.f32 %v344, 1.0
    %v347 = vrcp.pop %v345
    %v348 = vmul.f32 1.0, %v347
    %v349 = vrcp.pop %v346
    %v350 = vmul.f32 1.0, %v349
    %v351 = vsel %vm44, %v337, %v348
    %v352 = vsel %vm44, %v338, %v350
    %v353 = vld [vmem:[#allocation5] sm:$0xff]
    %v354 = vld [vmem:[#allocation5 + $0x8] sm:$0xff]
    %357 = vrot.lane.b32.xlu0 %v353, 32
    %v358 = vpop.permute.xlu0 %357
    %359 = vrot.lane.b32.xlu0 %v354, 32
    %v360 = vpop.permute.xlu0 %359
    %v363 = vmul.f32 %v351, %v358
    %v364 = vmul.f32 %v352, %v360
    %367 = vrot.lane.b32.xlu0 %v351, 64
    %v368 = vpop.permute.xlu0 %367
    %369 = vrot.lane.b32.xlu0 %v352, 64
    %v370 = vpop.permute.xlu0 %369
    %v373 = vmul.f32 %v351, %v368
    %v374 = vmul.f32 %v352, %v370
    %377 = vrot.lane.b32.xlu0 %v373, 32
    %v378 = vpop.permute.xlu0 %377
    %379 = vrot.lane.b32.xlu0 %v374, 32
    %v380 = vpop.permute.xlu0 %379
    %v383 = vadd.f32 %v363, %v378
    %v384 = vadd.f32 %v364, %v380
    %v385 = vtanh.pop %v383
    %v386 = vtanh.pop %v384
    %389 = vrot.lane.b32.xlu0 %v385, 64
    %v390 = vpop.permute.xlu0 %389
    %391 = vrot.lane.b32.xlu0 %v386, 64
    %v392 = vpop.permute.xlu0 %391
    %v395 = vmul.f32 %v351, %v390
    %v396 = vmul.f32 %v352, %v392
    %399 = vrot.lane.b32.xlu0 %v383, 96
    %v400 = vpop.permute.xlu0 %399
    %401 = vrot.lane.b32.xlu0 %v384, 96
    %v402 = vpop.permute.xlu0 %401
    %405 = vst.msk [vmem:[#allocation5] sm:$0xff] %vm128, %v400
    %406 = vst.msk [vmem:[#allocation5 + $0x8] sm:$0xff] %vm128, %v402
    %409 = vrot.lane.b32.xlu0 %v395, 32
    %v410 = vpop.permute.xlu0 %409
    %411 = vrot.lane.b32.xlu0 %v396, 32
    %v412 = vpop.permute.xlu0 %411
    %415 = vst.msk [vmem:[#allocation4] sm:$0xff] %vm128, %v410
    %416 = vst.msk [vmem:[#allocation4 + $0x8] sm:$0xff] %vm128, %v412
    %v417 = vpack.c.bf16 %v396, %v395
    %v419 = vunpack.c.l.b16 %v417
    %v420 = vunpack.c.h.b16 %v417
    %v421 = vpack.c.b16 %v419, %v419
    %v422 = vpack.c.b16 %v420, %v420
    %423 = vrot.lane.b32.xlu0 %v421, 32
    %v424 = vpop.permute.xlu0 %423
    %425 = vrot.lane.b32.xlu0 %v422, 32
    %v426 = vpop.permute.xlu0 %425
    %vm429 = vcmask 257024
    %430 = vst.msk [vmem:[#allocation3] sm:$0xf] %vm429, %v424
    %431 = vst.msk [vmem:[#allocation3 + $0x4] sm:$0xf] %vm429, %v426
    %v432 = vld [vmem:[#allocation2 + $0x10] sm:$0xff]
    %v433 = vld [vmem:[#allocation2 + $0x18] sm:$0xff]
    %v434 = vld [vmem:[#allocation4] sm:$0xff]
    %v435 = vld [vmem:[#allocation4 + $0x8] sm:$0xff]
    %v436 = vpack.c.bf16 %v435, %v434
    %v437 = vld [vmem:[%s4] sm:$0xf]
    %v438 = vld [vmem:[%s4 + $0x4] sm:$0xf]
    %v439 = vld [vmem:[%s4 + $0x8] sm:$0xf]
    %v440 = vld [vmem:[%s4 + $0xc] sm:$0xf]
    %v445 = vunpack.c.l.b16 %v437
    %v446 = vunpack.c.l.b16 %v438
    %v447 = vunpack.c.l.b16 %v439
    %v448 = vunpack.c.l.b16 %v440
    %v449 = vpack.c.b16 %v446, %v445
    %v450 = vpack.c.b16 %v448, %v447
    %v454 = vsel %vm128, %v436, 0
    %456 = vmatprep.subr.bf16.mxu0 0
    %457 = vmatpush1.bf16.msra.mxu0 0
    %458 = vmatprep.subr.bf16.mxu0 0
    %459 = vmatpush1.bf16.msra.mxu0 0
    %460 = vmatprep.subr.bf16.mxu0 0
    %461 = vmatpush1.bf16.msra.mxu0 0
    %462 = vmatprep.subr.bf16.mxu0 0
    %463 = vmatpush1.bf16.msra.mxu0 0
    %464 = vmatprep.subr.bf16.mxu0 0
    %465 = vmatpush1.bf16.msra.mxu0 0
    %466 = vmatprep.subr.bf16.mxu0 0
    %467 = vmatpush1.bf16.msra.mxu0 0
    %468 = vmatprep.subr.bf16.mxu0 0
    %469 = vmatpush1.bf16.msra.mxu0 %v450
    %470 = vmatprep.subr.bf16.mxu0 0
    %471 = vmatpush1.bf16.msra.mxu0 %v449
    %472 = vmatprep.subr.bf16.mxu0 0
    %473 = vmatpush2.bf16.msra.mxu0 0
    %474 = vmatprep.subr.bf16.mxu0 0
    %475 = vmatpush2.bf16.msra.mxu0 0
    %476 = vmatprep.subr.bf16.mxu0 0
    %477 = vmatpush2.bf16.msra.mxu0 0
    %478 = vmatprep.subr.bf16.mxu0 0
    %479 = vmatpush2.bf16.msra.mxu0 0
    %480 = vmatprep.subr.bf16.mxu0 0
    %481 = vmatpush2.bf16.msra.mxu0 0
    %482 = vmatprep.subr.bf16.mxu0 0
    %483 = vmatpush2.bf16.msra.mxu0 0
    %484 = vmatprep.subr.bf16.mxu0 0
    %485 = vmatpush2.bf16.msra.mxu0 0
    %486 = vmatprep.subr.bf16.mxu0 0
    %487 = vmatpush2.bf16.msra.mxu0 0
    %488 = vmatprep.mubr.bf16.mxu0 0
    %489 = vmatmul.mubr.bf16.gmra.mxu0 %v454
    %v490 = vpop.f32.mrf.mxu0
    %v491 = vadd.f32 0.0, %v490
    %v492 = vpop.f32.mrf.mxu0
    %v493 = vpop.f32.mrf.mxu0
    %v494 = vadd.f32 0.0, %v493
    %v495 = vpop.f32.mrf.mxu0
    %496 = vdwg.mxu0
    %v497 = vadd.f32 %v432, %v491
    %v498 = vadd.f32 %v433, %v494
    %v499 = vtanh.pop %v497
    %v500 = vtanh.pop %v498
    %v501 = vxor.u32 %v497, 2147483648
    %v502 = vxor.u32 %v498, 2147483648
    %v503 = vmul.f32 %v501, 1.442695
    %v504 = vpow.pop %v503
    %v505 = vmul.f32 %v502, 1.442695
    %v506 = vpow.pop %v505
    %v507 = vadd.f32 %v504, 1.0
    %v508 = vadd.f32 %v506, 1.0
    %v509 = vrcp.pop %v507
    %v510 = vmul.f32 1.0, %v509
    %v511 = vrcp.pop %v508
    %v512 = vmul.f32 1.0, %v511
    %v513 = vsel %vm44, %v499, %v510
    %v514 = vsel %vm44, %v500, %v512
    %v515 = vld [vmem:[#allocation5] sm:$0xff]
    %v516 = vld [vmem:[#allocation5 + $0x8] sm:$0xff]
    %519 = vrot.lane.b32.xlu0 %v515, 32
    %v520 = vpop.permute.xlu0 %519
    %521 = vrot.lane.b32.xlu0 %v516, 32
    %v522 = vpop.permute.xlu0 %521
    %v525 = vmul.f32 %v513, %v520
    %v526 = vmul.f32 %v514, %v522
    %529 = vrot.lane.b32.xlu0 %v513, 64
    %v530 = vpop.permute.xlu0 %529
    %531 = vrot.lane.b32.xlu0 %v514, 64
    %v532 = vpop.permute.xlu0 %531
    %v535 = vmul.f32 %v513, %v530
    %v536 = vmul.f32 %v514, %v532
    %539 = vrot.lane.b32.xlu0 %v535, 32
    %v540 = vpop.permute.xlu0 %539
    %541 = vrot.lane.b32.xlu0 %v536, 32
    %v542 = vpop.permute.xlu0 %541
    %v545 = vadd.f32 %v525, %v540
    %v546 = vadd.f32 %v526, %v542
    %v547 = vtanh.pop %v545
    %v548 = vtanh.pop %v546
    %551 = vrot.lane.b32.xlu0 %v547, 64
    %v552 = vpop.permute.xlu0 %551
    %553 = vrot.lane.b32.xlu0 %v548, 64
    %v554 = vpop.permute.xlu0 %553
    %v557 = vmul.f32 %v513, %v552
    %v558 = vmul.f32 %v514, %v554
    %561 = vrot.lane.b32.xlu0 %v545, 96
    %v562 = vpop.permute.xlu0 %561
    %563 = vrot.lane.b32.xlu0 %v546, 96
    %v564 = vpop.permute.xlu0 %563
    %567 = vst.msk [vmem:[#allocation5] sm:$0xff] %vm128, %v562
    %568 = vst.msk [vmem:[#allocation5 + $0x8] sm:$0xff] %vm128, %v564
    %571 = vrot.lane.b32.xlu0 %v557, 32
    %v572 = vpop.permute.xlu0 %571
    %573 = vrot.lane.b32.xlu0 %v558, 32
    %v574 = vpop.permute.xlu0 %573
    %577 = vst.msk [vmem:[#allocation4] sm:$0xff] %vm128, %v572
    %578 = vst.msk [vmem:[#allocation4 + $0x8] sm:$0xff] %vm128, %v574
    %v579 = vpack.c.bf16 %v558, %v557
    %v581 = vunpack.c.l.b16 %v579
    %v582 = vunpack.c.h.b16 %v579
    %v583 = vpack.c.b16 %v581, %v581
    %v584 = vpack.c.b16 %v582, %v582
    %585 = vrot.lane.b32.xlu0 %v583, 32
    %v586 = vpop.permute.xlu0 %585
    %587 = vrot.lane.b32.xlu0 %v584, 32
    %v588 = vpop.permute.xlu0 %587
    %591 = vst.msk [vmem:[#allocation3 + $0x8] sm:$0xf] %vm429, %v586
    %592 = vst.msk [vmem:[#allocation3 + $0xc] sm:$0xf] %vm429, %v588
    %v593 = vld [vmem:[#allocation2 + $0x20] sm:$0xff]
    %v594 = vld [vmem:[#allocation2 + $0x28] sm:$0xff]
    %v595 = vld [vmem:[#allocation4] sm:$0xff]
    %v596 = vld [vmem:[#allocation4 + $0x8] sm:$0xff]
    %v597 = vpack.c.bf16 %v596, %v595
    %v598 = vld [vmem:[%s4] sm:$0xf]
    %v599 = vld [vmem:[%s4 + $0x4] sm:$0xf]
    %v600 = vld [vmem:[%s4 + $0x8] sm:$0xf]
    %v601 = vld [vmem:[%s4 + $0xc] sm:$0xf]
    %v606 = vunpack.c.l.b16 %v598
    %v607 = vunpack.c.l.b16 %v599
    %v608 = vunpack.c.l.b16 %v600
    %v609 = vunpack.c.l.b16 %v601
    %v610 = vpack.c.b16 %v607, %v606
    %v611 = vpack.c.b16 %v609, %v608
    %v615 = vsel %vm128, %v597, 0
    %617 = vmatprep.subr.bf16.mxu0 0
    %618 = vmatpush1.bf16.msra.mxu0 0
    %619 = vmatprep.subr.bf16.mxu0 0
    %620 = vmatpush1.bf16.msra.mxu0 0
    %621 = vmatprep.subr.bf16.mxu0 0
    %622 = vmatpush1.bf16.msra.mxu0 0
    %623 = vmatprep.subr.bf16.mxu0 0
    %624 = vmatpush1.bf16.msra.mxu0 0
    %625 = vmatprep.subr.bf16.mxu0 0
    %626 = vmatpush1.bf16.msra.mxu0 0
    %627 = vmatprep.subr.bf16.mxu0 0
    %628 = vmatpush1.bf16.msra.mxu0 0
    %629 = vmatprep.subr.bf16.mxu0 0
    %630 = vmatpush1.bf16.msra.mxu0 %v611
    %631 = vmatprep.subr.bf16.mxu0 0
    %632 = vmatpush1.bf16.msra.mxu0 %v610
    %633 = vmatprep.subr.bf16.mxu0 0
    %634 = vmatpush2.bf16.msra.mxu0 0
    %635 = vmatprep.subr.bf16.mxu0 0
    %636 = vmatpush2.bf16.msra.mxu0 0
    %637 = vmatprep.subr.bf16.mxu0 0
    %638 = vmatpush2.bf16.msra.mxu0 0
    %639 = vmatprep.subr.bf16.mxu0 0
    %640 = vmatpush2.bf16.msra.mxu0 0
    %641 = vmatprep.subr.bf16.mxu0 0
    %642 = vmatpush2.bf16.msra.mxu0 0
    %643 = vmatprep.subr.bf16.mxu0 0
    %644 = vmatpush2.bf16.msra.mxu0 0
    %645 = vmatprep.subr.bf16.mxu0 0
    %646 = vmatpush2.bf16.msra.mxu0 0
    %647 = vmatprep.subr.bf16.mxu0 0
    %648 = vmatpush2.bf16.msra.mxu0 0
    %649 = vmatprep.mubr.bf16.mxu0 0
    %650 = vmatmul.mubr.bf16.gmra.mxu0 %v615
    %v651 = vpop.f32.mrf.mxu0
    %v652 = vadd.f32 0.0, %v651
    %v653 = vpop.f32.mrf.mxu0
    %v654 = vpop.f32.mrf.mxu0
    %v655 = vadd.f32 0.0, %v654
    %v656 = vpop.f32.mrf.mxu0
    %657 = vdwg.mxu0
    %v658 = vadd.f32 %v593, %v652
    %v659 = vadd.f32 %v594, %v655
    %v660 = vtanh.pop %v658
    %v661 = vtanh.pop %v659
    %v662 = vxor.u32 %v658, 2147483648
    %v663 = vxor.u32 %v659, 2147483648
    %v664 = vmul.f32 %v662, 1.442695
    %v665 = vpow.pop %v664
    %v666 = vmul.f32 %v663, 1.442695
    %v667 = vpow.pop %v666
    %v668 = vadd.f32 %v665, 1.0
    %v669 = vadd.f32 %v667, 1.0
    %v670 = vrcp.pop %v668
    %v671 = vmul.f32 1.0, %v670
    %v672 = vrcp.pop %v669
    %v673 = vmul.f32 1.0, %v672
    %v674 = vsel %vm44, %v660, %v671
    %v675 = vsel %vm44, %v661, %v673
    %v676 = vld [vmem:[#allocation5] sm:$0xff]
    %v677 = vld [vmem:[#allocation5 + $0x8] sm:$0xff]
    %680 = vrot.lane.b32.xlu0 %v676, 32
    %v681 = vpop.permute.xlu0 %680
    %682 = vrot.lane.b32.xlu0 %v677, 32
    %v683 = vpop.permute.xlu0 %682
    %v686 = vmul.f32 %v674, %v681
    %v687 = vmul.f32 %v675, %v683
    %690 = vrot.lane.b32.xlu0 %v674, 64
    %v691 = vpop.permute.xlu0 %690
    %692 = vrot.lane.b32.xlu0 %v675, 64
    %v693 = vpop.permute.xlu0 %692
    %v696 = vmul.f32 %v674, %v691
    %v697 = vmul.f32 %v675, %v693
    %700 = vrot.lane.b32.xlu0 %v696, 32
    %v701 = vpop.permute.xlu0 %700
    %702 = vrot.lane.b32.xlu0 %v697, 32
    %v703 = vpop.permute.xlu0 %702
    %v706 = vadd.f32 %v686, %v701
    %v707 = vadd.f32 %v687, %v703
    %v708 = vtanh.pop %v706
    %v709 = vtanh.pop %v707
    %712 = vrot.lane.b32.xlu0 %v708, 64
    %v713 = vpop.permute.xlu0 %712
    %714 = vrot.lane.b32.xlu0 %v709, 64
    %v715 = vpop.permute.xlu0 %714
    %v718 = vmul.f32 %v674, %v713
    %v719 = vmul.f32 %v675, %v715
    %722 = vrot.lane.b32.xlu0 %v706, 96
    %v723 = vpop.permute.xlu0 %722
    %724 = vrot.lane.b32.xlu0 %v707, 96
    %v725 = vpop.permute.xlu0 %724
    %728 = vst.msk [vmem:[#allocation5] sm:$0xff] %vm128, %v723
    %729 = vst.msk [vmem:[#allocation5 + $0x8] sm:$0xff] %vm128, %v725
    %732 = vrot.lane.b32.xlu0 %v718, 32
    %v733 = vpop.permute.xlu0 %732
    %734 = vrot.lane.b32.xlu0 %v719, 32
    %v735 = vpop.permute.xlu0 %734
    %738 = vst.msk [vmem:[#allocation4] sm:$0xff] %vm128, %v733
    %739 = vst.msk [vmem:[#allocation4 + $0x8] sm:$0xff] %vm128, %v735
    %v740 = vpack.c.bf16 %v719, %v718
    %v742 = vunpack.c.l.b16 %v740
    %v743 = vunpack.c.h.b16 %v740
    %v744 = vpack.c.b16 %v742, %v742
    %v745 = vpack.c.b16 %v743, %v743
    %746 = vrot.lane.b32.xlu0 %v744, 32
    %v747 = vpop.permute.xlu0 %746
    %748 = vrot.lane.b32.xlu0 %v745, 32
    %v749 = vpop.permute.xlu0 %748
    %752 = vst.msk [vmem:[#allocation3 + $0x10] sm:$0xf] %vm429, %v747
    %753 = vst.msk [vmem:[#allocation3 + $0x14] sm:$0xf] %vm429, %v749
    %v754 = vld [vmem:[#allocation2 + $0x30] sm:$0xff]
    %v755 = vld [vmem:[#allocation2 + $0x38] sm:$0xff]
    %v756 = vld [vmem:[#allocation4] sm:$0xff]
    %v757 = vld [vmem:[#allocation4 + $0x8] sm:$0xff]
    %v758 = vpack.c.bf16 %v757, %v756
    %v759 = vld [vmem:[%s4] sm:$0xf]
    %v760 = vld [vmem:[%s4 + $0x4] sm:$0xf]
    %v761 = vld [vmem:[%s4 + $0x8] sm:$0xf]
    %v762 = vld [vmem:[%s4 + $0xc] sm:$0xf]
    %v767 = vunpack.c.l.b16 %v759
    %v768 = vunpack.c.l.b16 %v760
    %v769 = vunpack.c.l.b16 %v761
    %v770 = vunpack.c.l.b16 %v762
    %v771 = vpack.c.b16 %v768, %v767
    %v772 = vpack.c.b16 %v770, %v769
    %v776 = vsel %vm128, %v758, 0
    %778 = vmatprep.subr.bf16.mxu0 0
    %779 = vmatpush1.bf16.msra.mxu0 0
    %780 = vmatprep.subr.bf16.mxu0 0
    %781 = vmatpush1.bf16.msra.mxu0 0
    %782 = vmatprep.subr.bf16.mxu0 0
    %783 = vmatpush1.bf16.msra.mxu0 0
    %784 = vmatprep.subr.bf16.mxu0 0
    %785 = vmatpush1.bf16.msra.mxu0 0
    %786 = vmatprep.subr.bf16.mxu0 0
    %787 = vmatpush1.bf16.msra.mxu0 0
    %788 = vmatprep.subr.bf16.mxu0 0
    %789 = vmatpush1.bf16.msra.mxu0 0
    %790 = vmatprep.subr.bf16.mxu0 0
    %791 = vmatpush1.bf16.msra.mxu0 %v772
    %792 = vmatprep.subr.bf16.mxu0 0
    %793 = vmatpush1.bf16.msra.mxu0 %v771
    %794 = vmatprep.subr.bf16.mxu0 0
    %795 = vmatpush2.bf16.msra.mxu0 0
    %796 = vmatprep.subr.bf16.mxu0 0
    %797 = vmatpush2.bf16.msra.mxu0 0
    %798 = vmatprep.subr.bf16.mxu0 0
    %799 = vmatpush2.bf16.msra.mxu0 0
    %800 = vmatprep.subr.bf16.mxu0 0
    %801 = vmatpush2.bf16.msra.mxu0 0
    %802 = vmatprep.subr.bf16.mxu0 0
    %803 = vmatpush2.bf16.msra.mxu0 0
    %804 = vmatprep.subr.bf16.mxu0 0
    %805 = vmatpush2.bf16.msra.mxu0 0
    %806 = vmatprep.subr.bf16.mxu0 0
    %807 = vmatpush2.bf16.msra.mxu0 0
    %808 = vmatprep.subr.bf16.mxu0 0
    %809 = vmatpush2.bf16.msra.mxu0 0
    %810 = vmatprep.mubr.bf16.mxu0 0
    %811 = vmatmul.mubr.bf16.gmra.mxu0 %v776
    %v812 = vpop.f32.mrf.mxu0
    %v813 = vadd.f32 0.0, %v812
    %v814 = vpop.f32.mrf.mxu0
    %v815 = vpop.f32.mrf.mxu0
    %v816 = vadd.f32 0.0, %v815
    %v817 = vpop.f32.mrf.mxu0
    %818 = vdwg.mxu0
    %v819 = vadd.f32 %v754, %v813
    %v820 = vadd.f32 %v755, %v816
    %v821 = vtanh.pop %v819
    %v822 = vtanh.pop %v820
    %v823 = vxor.u32 %v819, 2147483648
    %v824 = vxor.u32 %v820, 2147483648
    %v825 = vmul.f32 %v823, 1.442695
    %v826 = vpow.pop %v825
    %v827 = vmul.f32 %v824, 1.442695
    %v828 = vpow.pop %v827
    %v829 = vadd.f32 %v826, 1.0
    %v830 = vadd.f32 %v828, 1.0
    %v831 = vrcp.pop %v829
    %v832 = vmul.f32 1.0, %v831
    %v833 = vrcp.pop %v830
    %v834 = vmul.f32 1.0, %v833
    %v835 = vsel %vm44, %v821, %v832
    %v836 = vsel %vm44, %v822, %v834
    %v837 = vld [vmem:[#allocation5] sm:$0xff]
    %v838 = vld [vmem:[#allocation5 + $0x8] sm:$0xff]
    %841 = vrot.lane.b32.xlu0 %v837, 32
    %v842 = vpop.permute.xlu0 %841
    %843 = vrot.lane.b32.xlu0 %v838, 32
    %v844 = vpop.permute.xlu0 %843
    %v847 = vmul.f32 %v835, %v842
    %v848 = vmul.f32 %v836, %v844
    %851 = vrot.lane.b32.xlu0 %v835, 64
    %v852 = vpop.permute.xlu0 %851
    %853 = vrot.lane.b32.xlu0 %v836, 64
    %v854 = vpop.permute.xlu0 %853
    %v857 = vmul.f32 %v835, %v852
    %v858 = vmul.f32 %v836, %v854
    %861 = vrot.lane.b32.xlu0 %v857, 32
    %v862 = vpop.permute.xlu0 %861
    %863 = vrot.lane.b32.xlu0 %v858, 32
    %v864 = vpop.permute.xlu0 %863
    %v867 = vadd.f32 %v847, %v862
    %v868 = vadd.f32 %v848, %v864
    %v869 = vtanh.pop %v867
    %v870 = vtanh.pop %v868
    %873 = vrot.lane.b32.xlu0 %v869, 64
    %v874 = vpop.permute.xlu0 %873
    %875 = vrot.lane.b32.xlu0 %v870, 64
    %v876 = vpop.permute.xlu0 %875
    %v879 = vmul.f32 %v835, %v874
    %v880 = vmul.f32 %v836, %v876
    %883 = vrot.lane.b32.xlu0 %v867, 96
    %v884 = vpop.permute.xlu0 %883
    %885 = vrot.lane.b32.xlu0 %v868, 96
    %v886 = vpop.permute.xlu0 %885
    %889 = vst.msk [vmem:[#allocation5] sm:$0xff] %vm128, %v884
    %890 = vst.msk [vmem:[#allocation5 + $0x8] sm:$0xff] %vm128, %v886
    %893 = vrot.lane.b32.xlu0 %v879, 32
    %v894 = vpop.permute.xlu0 %893
    %895 = vrot.lane.b32.xlu0 %v880, 32
    %v896 = vpop.permute.xlu0 %895
    %899 = vst.msk [vmem:[#allocation4] sm:$0xff] %vm128, %v894
    %900 = vst.msk [vmem:[#allocation4 + $0x8] sm:$0xff] %vm128, %v896
    %v901 = vpack.c.bf16 %v880, %v879
    %v903 = vunpack.c.l.b16 %v901
    %v904 = vunpack.c.h.b16 %v901
    %v905 = vpack.c.b16 %v903, %v903
    %v906 = vpack.c.b16 %v904, %v904
    %907 = vrot.lane.b32.xlu0 %v905, 32
    %v908 = vpop.permute.xlu0 %907
    %909 = vrot.lane.b32.xlu0 %v906, 32
    %v910 = vpop.permute.xlu0 %909
    %913 = vst.msk [vmem:[#allocation3 + $0x18] sm:$0xf] %vm429, %v908
    %914 = vst.msk [vmem:[#allocation3 + $0x1c] sm:$0xf] %vm429, %v910
    %v915 = vld [vmem:[#allocation2 + $0x40] sm:$0xff]
    %v916 = vld [vmem:[#allocation2 + $0x48] sm:$0xff]
    %v917 = vld [vmem:[#allocation4] sm:$0xff]
    %v918 = vld [vmem:[#allocation4 + $0x8] sm:$0xff]
    %v919 = vpack.c.bf16 %v918, %v917
    %v920 = vld [vmem:[%s4] sm:$0xf]
    %v921 = vld [vmem:[%s4 + $0x4] sm:$0xf]
    %v922 = vld [vmem:[%s4 + $0x8] sm:$0xf]
    %v923 = vld [vmem:[%s4 + $0xc] sm:$0xf]
    %v928 = vunpack.c.l.b16 %v920
    %v929 = vunpack.c.l.b16 %v921
    %v930 = vunpack.c.l.b16 %v922
    %v931 = vunpack.c.l.b16 %v923
    %v932 = vpack.c.b16 %v929, %v928
    %v933 = vpack.c.b16 %v931, %v930
    %v937 = vsel %vm128, %v919, 0
    %939 = vmatprep.subr.bf16.mxu0 0
    %940 = vmatpush1.bf16.msra.mxu0 0
    %941 = vmatprep.subr.bf16.mxu0 0
    %942 = vmatpush1.bf16.msra.mxu0 0
    %943 = vmatprep.subr.bf16.mxu0 0
    %944 = vmatpush1.bf16.msra.mxu0 0
    %945 = vmatprep.subr.bf16.mxu0 0
    %946 = vmatpush1.bf16.msra.mxu0 0
    %947 = vmatprep.subr.bf16.mxu0 0
    %948 = vmatpush1.bf16.msra.mxu0 0
    %949 = vmatprep.subr.bf16.mxu0 0
    %950 = vmatpush1.bf16.msra.mxu0 0
    %951 = vmatprep.subr.bf16.mxu0 0
    %952 = vmatpush1.bf16.msra.mxu0 %v933
    %953 = vmatprep.subr.bf16.mxu0 0
    %954 = vmatpush1.bf16.msra.mxu0 %v932
    %955 = vmatprep.subr.bf16.mxu0 0
    %956 = vmatpush2.bf16.msra.mxu0 0
    %957 = vmatprep.subr.bf16.mxu0 0
    %958 = vmatpush2.bf16.msra.mxu0 0
    %959 = vmatprep.subr.bf16.mxu0 0
    %960 = vmatpush2.bf16.msra.mxu0 0
    %961 = vmatprep.subr.bf16.mxu0 0
    %962 = vmatpush2.bf16.msra.mxu0 0
    %963 = vmatprep.subr.bf16.mxu0 0
    %964 = vmatpush2.bf16.msra.mxu0 0
    %965 = vmatprep.subr.bf16.mxu0 0
    %966 = vmatpush2.bf16.msra.mxu0 0
    %967 = vmatprep.subr.bf16.mxu0 0
    %968 = vmatpush2.bf16.msra.mxu0 0
    %969 = vmatprep.subr.bf16.mxu0 0
    %970 = vmatpush2.bf16.msra.mxu0 0
    %971 = vmatprep.mubr.bf16.mxu0 0
    %972 = vmatmul.mubr.bf16.gmra.mxu0 %v937
    %v973 = vpop.f32.mrf.mxu0
    %v974 = vadd.f32 0.0, %v973
    %v975 = vpop.f32.mrf.mxu0
    %v976 = vpop.f32.mrf.mxu0
    %v977 = vadd.f32 0.0, %v976
    %v978 = vpop.f32.mrf.mxu0
    %979 = vdwg.mxu0
    %v980 = vadd.f32 %v915, %v974
    %v981 = vadd.f32 %v916, %v977
    %v982 = vtanh.pop %v980
    %v983 = vtanh.pop %v981
    %v984 = vxor.u32 %v980, 2147483648
    %v985 = vxor.u32 %v981, 2147483648
    %v986 = vmul.f32 %v984, 1.442695
    %v987 = vpow.pop %v986
    %v988 = vmul.f32 %v985, 1.442695
    %v989 = vpow.pop %v988
    %v990 = vadd.f32 %v987, 1.0
    %v991 = vadd.f32 %v989, 1.0
    %v992 = vrcp.pop %v990
    %v993 = vmul.f32 1.0, %v992
    %v994 = vrcp.pop %v991
    %v995 = vmul.f32 1.0, %v994
    %v996 = vsel %vm44, %v982, %v993
    %v997 = vsel %vm44, %v983, %v995
    %v998 = vld [vmem:[#allocation5] sm:$0xff]
    %v999 = vld [vmem:[#allocation5 + $0x8] sm:$0xff]
    %1002 = vrot.lane.b32.xlu0 %v998, 32
    %v1003 = vpop.permute.xlu0 %1002
    %1004 = vrot.lane.b32.xlu0 %v999, 32
    %v1005 = vpop.permute.xlu0 %1004
    %v1008 = vmul.f32 %v996, %v1003
    %v1009 = vmul.f32 %v997, %v1005
    %1012 = vrot.lane.b32.xlu0 %v996, 64
    %v1013 = vpop.permute.xlu0 %1012
    %1014 = vrot.lane.b32.xlu0 %v997, 64
    %v1015 = vpop.permute.xlu0 %1014
    %v1018 = vmul.f32 %v996, %v1013
    %v1019 = vmul.f32 %v997, %v1015
    %1022 = vrot.lane.b32.xlu0 %v1018, 32
    %v1023 = vpop.permute.xlu0 %1022
    %1024 = vrot.lane.b32.xlu0 %v1019, 32
    %v1025 = vpop.permute.xlu0 %1024
    %v1028 = vadd.f32 %v1008, %v1023
    %v1029 = vadd.f32 %v1009, %v1025
    %v1030 = vtanh.pop %v1028
    %v1031 = vtanh.pop %v1029
    %1034 = vrot.lane.b32.xlu0 %v1030, 64
    %v1035 = vpop.permute.xlu0 %1034
    %1036 = vrot.lane.b32.xlu0 %v1031, 64
    %v1037 = vpop.permute.xlu0 %1036
    %v1040 = vmul.f32 %v996, %v1035
    %v1041 = vmul.f32 %v997, %v1037
    %1044 = vrot.lane.b32.xlu0 %v1028, 96
    %v1045 = vpop.permute.xlu0 %1044
    %1046 = vrot.lane.b32.xlu0 %v1029, 96
    %v1047 = vpop.permute.xlu0 %1046
    %1050 = vst.msk [vmem:[#allocation5] sm:$0xff] %vm128, %v1045
    %1051 = vst.msk [vmem:[#allocation5 + $0x8] sm:$0xff] %vm128, %v1047
    %1054 = vrot.lane.b32.xlu0 %v1040, 32
    %v1055 = vpop.permute.xlu0 %1054
    %1056 = vrot.lane.b32.xlu0 %v1041, 32
    %v1057 = vpop.permute.xlu0 %1056
    %1060 = vst.msk [vmem:[#allocation4] sm:$0xff] %vm128, %v1055
    %1061 = vst.msk [vmem:[#allocation4 + $0x8] sm:$0xff] %vm128, %v1057
    %v1062 = vpack.c.bf16 %v1041, %v1040
    %v1064 = vunpack.c.l.b16 %v1062
    %v1065 = vunpack.c.h.b16 %v1062
    %v1066 = vpack.c.b16 %v1064, %v1064
    %v1067 = vpack.c.b16 %v1065, %v1065
    %1068 = vrot.lane.b32.xlu0 %v1066, 32
    %v1069 = vpop.permute.xlu0 %1068
    %1070 = vrot.lane.b32.xlu0 %v1067, 32
    %v1071 = vpop.permute.xlu0 %1070
    %1074 = vst.msk [vmem:[#allocation3 + $0x20] sm:$0xf] %vm429, %v1069
    %1075 = vst.msk [vmem:[#allocation3 + $0x24] sm:$0xf] %vm429, %v1071
    %v1076 = vld [vmem:[#allocation2 + $0x50] sm:$0xff]
    %v1077 = vld [vmem:[#allocation2 + $0x58] sm:$0xff]
    %v1078 = vld [vmem:[#allocation4] sm:$0xff]
    %v1079 = vld [vmem:[#allocation4 + $0x8] sm:$0xff]
    %v1080 = vpack.c.bf16 %v1079, %v1078
    %v1081 = vld [vmem:[%s4] sm:$0xf]
    %v1082 = vld [vmem:[%s4 + $0x4] sm:$0xf]
    %v1083 = vld [vmem:[%s4 + $0x8] sm:$0xf]
    %v1084 = vld [vmem:[%s4 + $0xc] sm:$0xf]
    %v1089 = vunpack.c.l.b16 %v1081
    %v1090 = vunpack.c.l.b16 %v1082
    %v1091 = vunpack.c.l.b16 %v1083
    %v1092 = vunpack.c.l.b16 %v1084
    %v1093 = vpack.c.b16 %v1090, %v1089
    %v1094 = vpack.c.b16 %v1092, %v1091
    %v1098 = vsel %vm128, %v1080, 0
    %1100 = vmatprep.subr.bf16.mxu0 0
    %1101 = vmatpush1.bf16.msra.mxu0 0
    %1102 = vmatprep.subr.bf16.mxu0 0
    %1103 = vmatpush1.bf16.msra.mxu0 0
    %1104 = vmatprep.subr.bf16.mxu0 0
    %1105 = vmatpush1.bf16.msra.mxu0 0
    %1106 = vmatprep.subr.bf16.mxu0 0
    %1107 = vmatpush1.bf16.msra.mxu0 0
    %1108 = vmatprep.subr.bf16.mxu0 0
    %1109 = vmatpush1.bf16.msra.mxu0 0
    %1110 = vmatprep.subr.bf16.mxu0 0
    %1111 = vmatpush1.bf16.msra.mxu0 0
    %1112 = vmatprep.subr.bf16.mxu0 0
    %1113 = vmatpush1.bf16.msra.mxu0 %v1094
    %1114 = vmatprep.subr.bf16.mxu0 0
    %1115 = vmatpush1.bf16.msra.mxu0 %v1093
    %1116 = vmatprep.subr.bf16.mxu0 0
    %1117 = vmatpush2.bf16.msra.mxu0 0
    %1118 = vmatprep.subr.bf16.mxu0 0
    %1119 = vmatpush2.bf16.msra.mxu0 0
    %1120 = vmatprep.subr.bf16.mxu0 0
    %1121 = vmatpush2.bf16.msra.mxu0 0
    %1122 = vmatprep.subr.bf16.mxu0 0
    %1123 = vmatpush2.bf16.msra.mxu0 0
    %1124 = vmatprep.subr.bf16.mxu0 0
    %1125 = vmatpush2.bf16.msra.mxu0 0
    %1126 = vmatprep.subr.bf16.mxu0 0
    %1127 = vmatpush2.bf16.msra.mxu0 0
    %1128 = vmatprep.subr.bf16.mxu0 0
    %1129 = vmatpush2.bf16.msra.mxu0 0
    %1130 = vmatprep.subr.bf16.mxu0 0
    %1131 = vmatpush2.bf16.msra.mxu0 0
    %1132 = vmatprep.mubr.bf16.mxu0 0
    %1133 = vmatmul.mubr.bf16.gmra.mxu0 %v1098
    %v1134 = vpop.f32.mrf.mxu0
    %v1135 = vadd.f32 0.0, %v1134
    %v1136 = vpop.f32.mrf.mxu0
    %v1137 = vpop.f32.mrf.mxu0
    %v1138 = vadd.f32 0.0, %v1137
    %v1139 = vpop.f32.mrf.mxu0
    %1140 = vdwg.mxu0
    %v1141 = vadd.f32 %v1076, %v1135
    %v1142 = vadd.f32 %v1077, %v1138
    %v1143 = vtanh.pop %v1141
    %v1144 = vtanh.pop %v1142
    %v1145 = vxor.u32 %v1141, 2147483648
    %v1146 = vxor.u32 %v1142, 2147483648
    %v1147 = vmul.f32 %v1145, 1.442695
    %v1148 = vpow.pop %v1147
    %v1149 = vmul.f32 %v1146, 1.442695
    %v1150 = vpow.pop %v1149
    %v1151 = vadd.f32 %v1148, 1.0
    %v1152 = vadd.f32 %v1150, 1.0
    %v1153 = vrcp.pop %v1151
    %v1154 = vmul.f32 1.0, %v1153
    %v1155 = vrcp.pop %v1152
    %v1156 = vmul.f32 1.0, %v1155
    %v1157 = vsel %vm44, %v1143, %v1154
    %v1158 = vsel %vm44, %v1144, %v1156
    %v1159 = vld [vmem:[#allocation5] sm:$0xff]
    %v1160 = vld [vmem:[#allocation5 + $0x8] sm:$0xff]
    %1163 = vrot.lane.b32.xlu0 %v1159, 32
    %v1164 = vpop.permute.xlu0 %1163
    %1165 = vrot.lane.b32.xlu0 %v1160, 32
    %v1166 = vpop.permute.xlu0 %1165
    %v1169 = vmul.f32 %v1157, %v1164
    %v1170 = vmul.f32 %v1158, %v1166
    %1173 = vrot.lane.b32.xlu0 %v1157, 64
    %v1174 = vpop.permute.xlu0 %1173
    %1175 = vrot.lane.b32.xlu0 %v1158, 64
    %v1176 = vpop.permute.xlu0 %1175
    %v1179 = vmul.f32 %v1157, %v1174
    %v1180 = vmul.f32 %v1158, %v1176
    %1183 = vrot.lane.b32.xlu0 %v1179, 32
    %v1184 = vpop.permute.xlu0 %1183
    %1185 = vrot.lane.b32.xlu0 %v1180, 32
    %v1186 = vpop.permute.xlu0 %1185
    %v1189 = vadd.f32 %v1169, %v1184
    %v1190 = vadd.f32 %v1170, %v1186
    %v1191 = vtanh.pop %v1189
    %v1192 = vtanh.pop %v1190
    %1195 = vrot.lane.b32.xlu0 %v1191, 64
    %v1196 = vpop.permute.xlu0 %1195
    %1197 = vrot.lane.b32.xlu0 %v1192, 64
    %v1198 = vpop.permute.xlu0 %1197
    %v1201 = vmul.f32 %v1157, %v1196
    %v1202 = vmul.f32 %v1158, %v1198
    %1205 = vrot.lane.b32.xlu0 %v1189, 96
    %v1206 = vpop.permute.xlu0 %1205
    %1207 = vrot.lane.b32.xlu0 %v1190, 96
    %v1208 = vpop.permute.xlu0 %1207
    %1211 = vst.msk [vmem:[#allocation5] sm:$0xff] %vm128, %v1206
    %1212 = vst.msk [vmem:[#allocation5 + $0x8] sm:$0xff] %vm128, %v1208
    %1215 = vrot.lane.b32.xlu0 %v1201, 32
    %v1216 = vpop.permute.xlu0 %1215
    %1217 = vrot.lane.b32.xlu0 %v1202, 32
    %v1218 = vpop.permute.xlu0 %1217
    %1221 = vst.msk [vmem:[#allocation4] sm:$0xff] %vm128, %v1216
    %1222 = vst.msk [vmem:[#allocation4 + $0x8] sm:$0xff] %vm128, %v1218
    %v1223 = vpack.c.bf16 %v1202, %v1201
    %v1225 = vunpack.c.l.b16 %v1223
    %v1226 = vunpack.c.h.b16 %v1223
    %v1227 = vpack.c.b16 %v1225, %v1225
    %v1228 = vpack.c.b16 %v1226, %v1226
    %1229 = vrot.lane.b32.xlu0 %v1227, 32
    %v1230 = vpop.permute.xlu0 %1229
    %1231 = vrot.lane.b32.xlu0 %v1228, 32
    %v1232 = vpop.permute.xlu0 %1231
    %1235 = vst.msk [vmem:[#allocation3 + $0x28] sm:$0xf] %vm429, %v1230
    %1236 = vst.msk [vmem:[#allocation3 + $0x2c] sm:$0xf] %vm429, %v1232
    %v1237 = vld [vmem:[#allocation2 + $0x60] sm:$0xff]
    %v1238 = vld [vmem:[#allocation2 + $0x68] sm:$0xff]
    %v1239 = vld [vmem:[#allocation4] sm:$0xff]
    %v1240 = vld [vmem:[#allocation4 + $0x8] sm:$0xff]
    %v1241 = vpack.c.bf16 %v1240, %v1239
    %v1242 = vld [vmem:[%s4] sm:$0xf]
    %v1243 = vld [vmem:[%s4 + $0x4] sm:$0xf]
    %v1244 = vld [vmem:[%s4 + $0x8] sm:$0xf]
    %v1245 = vld [vmem:[%s4 + $0xc] sm:$0xf]
    %v1250 = vunpack.c.l.b16 %v1242
    %v1251 = vunpack.c.l.b16 %v1243
    %v1252 = vunpack.c.l.b16 %v1244
    %v1253 = vunpack.c.l.b16 %v1245
    %v1254 = vpack.c.b16 %v1251, %v1250
    %v1255 = vpack.c.b16 %v1253, %v1252
    %v1259 = vsel %vm128, %v1241, 0
    %1261 = vmatprep.subr.bf16.mxu0 0
    %1262 = vmatpush1.bf16.msra.mxu0 0
    %1263 = vmatprep.subr.bf16.mxu0 0
    %1264 = vmatpush1.bf16.msra.mxu0 0
    %1265 = vmatprep.subr.bf16.mxu0 0
    %1266 = vmatpush1.bf16.msra.mxu0 0
    %1267 = vmatprep.subr.bf16.mxu0 0
    %1268 = vmatpush1.bf16.msra.mxu0 0
    %1269 = vmatprep.subr.bf16.mxu0 0
    %1270 = vmatpush1.bf16.msra.mxu0 0
    %1271 = vmatprep.subr.bf16.mxu0 0
    %1272 = vmatpush1.bf16.msra.mxu0 0
    %1273 = vmatprep.subr.bf16.mxu0 0
    %1274 = vmatpush1.bf16.msra.mxu0 %v1255
    %1275 = vmatprep.subr.bf16.mxu0 0
    %1276 = vmatpush1.bf16.msra.mxu0 %v1254
    %1277 = vmatprep.subr.bf16.mxu0 0
    %1278 = vmatpush2.bf16.msra.mxu0 0
    %1279 = vmatprep.subr.bf16.mxu0 0
    %1280 = vmatpush2.bf16.msra.mxu0 0
    %1281 = vmatprep.subr.bf16.mxu0 0
    %1282 = vmatpush2.bf16.msra.mxu0 0
    %1283 = vmatprep.subr.bf16.mxu0 0
    %1284 = vmatpush2.bf16.msra.mxu0 0
    %1285 = vmatprep.subr.bf16.mxu0 0
    %1286 = vmatpush2.bf16.msra.mxu0 0
    %1287 = vmatprep.subr.bf16.mxu0 0
    %1288 = vmatpush2.bf16.msra.mxu0 0
    %1289 = vmatprep.subr.bf16.mxu0 0
    %1290 = vmatpush2.bf16.msra.mxu0 0
    %1291 = vmatprep.subr.bf16.mxu0 0
    %1292 = vmatpush2.bf16.msra.mxu0 0
    %1293 = vmatprep.mubr.bf16.mxu0 0
    %1294 = vmatmul.mubr.bf16.gmra.mxu0 %v1259
    %v1295 = vpop.f32.mrf.mxu0
    %v1296 = vadd.f32 0.0, %v1295
    %v1297 = vpop.f32.mrf.mxu0
    %v1298 = vpop.f32.mrf.mxu0
    %v1299 = vadd.f32 0.0, %v1298
    %v1300 = vpop.f32.mrf.mxu0
    %1301 = vdwg.mxu0
    %v1302 = vadd.f32 %v1237, %v1296
    %v1303 = vadd.f32 %v1238, %v1299
    %v1304 = vtanh.pop %v1302
    %v1305 = vtanh.pop %v1303
    %v1306 = vxor.u32 %v1302, 2147483648
    %v1307 = vxor.u32 %v1303, 2147483648
    %v1308 = vmul.f32 %v1306, 1.442695
    %v1309 = vpow.pop %v1308
    %v1310 = vmul.f32 %v1307, 1.442695
    %v1311 = vpow.pop %v1310
    %v1312 = vadd.f32 %v1309, 1.0
    %v1313 = vadd.f32 %v1311, 1.0
    %v1314 = vrcp.pop %v1312
    %v1315 = vmul.f32 1.0, %v1314
    %v1316 = vrcp.pop %v1313
    %v1317 = vmul.f32 1.0, %v1316
    %v1318 = vsel %vm44, %v1304, %v1315
    %v1319 = vsel %vm44, %v1305, %v1317
    %v1320 = vld [vmem:[#allocation5] sm:$0xff]
    %v1321 = vld [vmem:[#allocation5 + $0x8] sm:$0xff]
    %1324 = vrot.lane.b32.xlu0 %v1320, 32
    %v1325 = vpop.permute.xlu0 %1324
    %1326 = vrot.lane.b32.xlu0 %v1321, 32
    %v1327 = vpop.permute.xlu0 %1326
    %v1330 = vmul.f32 %v1318, %v1325
    %v1331 = vmul.f32 %v1319, %v1327
    %1334 = vrot.lane.b32.xlu0 %v1318, 64
    %v1335 = vpop.permute.xlu0 %1334
    %1336 = vrot.lane.b32.xlu0 %v1319, 64
    %v1337 = vpop.permute.xlu0 %1336
    %v1340 = vmul.f32 %v1318, %v1335
    %v1341 = vmul.f32 %v1319, %v1337
    %1344 = vrot.lane.b32.xlu0 %v1340, 32
    %v1345 = vpop.permute.xlu0 %1344
    %1346 = vrot.lane.b32.xlu0 %v1341, 32
    %v1347 = vpop.permute.xlu0 %1346
    %v1350 = vadd.f32 %v1330, %v1345
    %v1351 = vadd.f32 %v1331, %v1347
    %v1352 = vtanh.pop %v1350
    %v1353 = vtanh.pop %v1351
    %1356 = vrot.lane.b32.xlu0 %v1352, 64
    %v1357 = vpop.permute.xlu0 %1356
    %1358 = vrot.lane.b32.xlu0 %v1353, 64
    %v1359 = vpop.permute.xlu0 %1358
    %v1362 = vmul.f32 %v1318, %v1357
    %v1363 = vmul.f32 %v1319, %v1359
    %1366 = vrot.lane.b32.xlu0 %v1350, 96
    %v1367 = vpop.permute.xlu0 %1366
    %1368 = vrot.lane.b32.xlu0 %v1351, 96
    %v1369 = vpop.permute.xlu0 %1368
    %1372 = vst.msk [vmem:[#allocation5] sm:$0xff] %vm128, %v1367
    %1373 = vst.msk [vmem:[#allocation5 + $0x8] sm:$0xff] %vm128, %v1369
    %1376 = vrot.lane.b32.xlu0 %v1362, 32
    %v1377 = vpop.permute.xlu0 %1376
    %1378 = vrot.lane.b32.xlu0 %v1363, 32
    %v1379 = vpop.permute.xlu0 %1378
    %1382 = vst.msk [vmem:[#allocation4] sm:$0xff] %vm128, %v1377
    %1383 = vst.msk [vmem:[#allocation4 + $0x8] sm:$0xff] %vm128, %v1379
    %v1384 = vpack.c.bf16 %v1363, %v1362
    %v1386 = vunpack.c.l.b16 %v1384
    %v1387 = vunpack.c.h.b16 %v1384
    %v1388 = vpack.c.b16 %v1386, %v1386
    %v1389 = vpack.c.b16 %v1387, %v1387
    %1390 = vrot.lane.b32.xlu0 %v1388, 32
    %v1391 = vpop.permute.xlu0 %1390
    %1392 = vrot.lane.b32.xlu0 %v1389, 32
    %v1393 = vpop.permute.xlu0 %1392
    %1396 = vst.msk [vmem:[#allocation3 + $0x30] sm:$0xf] %vm429, %v1391
    %1397 = vst.msk [vmem:[#allocation3 + $0x34] sm:$0xf] %vm429, %v1393
    %v1398 = vld [vmem:[#allocation2 + $0x70] sm:$0xff]
    %v1399 = vld [vmem:[#allocation2 + $0x78] sm:$0xff]
    %v1400 = vld [vmem:[#allocation4] sm:$0xff]
    %v1401 = vld [vmem:[#allocation4 + $0x8] sm:$0xff]
    %v1402 = vpack.c.bf16 %v1401, %v1400
    %v1403 = vld [vmem:[%s4] sm:$0xf]
    %v1404 = vld [vmem:[%s4 + $0x4] sm:$0xf]
    %v1405 = vld [vmem:[%s4 + $0x8] sm:$0xf]
    %v1406 = vld [vmem:[%s4 + $0xc] sm:$0xf]
    %v1411 = vunpack.c.l.b16 %v1403
    %v1412 = vunpack.c.l.b16 %v1404
    %v1413 = vunpack.c.l.b16 %v1405
    %v1414 = vunpack.c.l.b16 %v1406
    %v1415 = vpack.c.b16 %v1412, %v1411
    %v1416 = vpack.c.b16 %v1414, %v1413
    %v1420 = vsel %vm128, %v1402, 0
    %1422 = vmatprep.subr.bf16.mxu0 0
    %1423 = vmatpush1.bf16.msra.mxu0 0
    %1424 = vmatprep.subr.bf16.mxu0 0
    %1425 = vmatpush1.bf16.msra.mxu0 0
    %1426 = vmatprep.subr.bf16.mxu0 0
    %1427 = vmatpush1.bf16.msra.mxu0 0
    %1428 = vmatprep.subr.bf16.mxu0 0
    %1429 = vmatpush1.bf16.msra.mxu0 0
    %1430 = vmatprep.subr.bf16.mxu0 0
    %1431 = vmatpush1.bf16.msra.mxu0 0
    %1432 = vmatprep.subr.bf16.mxu0 0
    %1433 = vmatpush1.bf16.msra.mxu0 0
    %1434 = vmatprep.subr.bf16.mxu0 0
    %1435 = vmatpush1.bf16.msra.mxu0 %v1416
    %1436 = vmatprep.subr.bf16.mxu0 0
    %1437 = vmatpush1.bf16.msra.mxu0 %v1415
    %1438 = vmatprep.subr.bf16.mxu0 0
    %1439 = vmatpush2.bf16.msra.mxu0 0
    %1440 = vmatprep.subr.bf16.mxu0 0
    %1441 = vmatpush2.bf16.msra.mxu0 0
    %1442 = vmatprep.subr.bf16.mxu0 0
    %1443 = vmatpush2.bf16.msra.mxu0 0
    %1444 = vmatprep.subr.bf16.mxu0 0
    %1445 = vmatpush2.bf16.msra.mxu0 0
    %1446 = vmatprep.subr.bf16.mxu0 0
    %1447 = vmatpush2.bf16.msra.mxu0 0
    %1448 = vmatprep.subr.bf16.mxu0 0
    %1449 = vmatpush2.bf16.msra.mxu0 0
    %1450 = vmatprep.subr.bf16.mxu0 0
    %1451 = vmatpush2.bf16.msra.mxu0 0
    %1452 = vmatprep.subr.bf16.mxu0 0
    %1453 = vmatpush2.bf16.msra.mxu0 0
    %1454 = vmatprep.mubr.bf16.mxu0 0
    %1455 = vmatmul.mubr.bf16.gmra.mxu0 %v1420
    %v1456 = vpop.f32.mrf.mxu0
    %v1457 = vadd.f32 0.0, %v1456
    %v1458 = vpop.f32.mrf.mxu0
    %v1459 = vpop.f32.mrf.mxu0
    %v1460 = vadd.f32 0.0, %v1459
    %v1461 = vpop.f32.mrf.mxu0
    %1462 = vdwg.mxu0
    %v1463 = vadd.f32 %v1398, %v1457
    %v1464 = vadd.f32 %v1399, %v1460
    %v1465 = vtanh.pop %v1463
    %v1466 = vtanh.pop %v1464
    %v1467 = vxor.u32 %v1463, 2147483648
    %v1468 = vxor.u32 %v1464, 2147483648
    %v1469 = vmul.f32 %v1467, 1.442695
    %v1470 = vpow.pop %v1469
    %v1471 = vmul.f32 %v1468, 1.442695
    %v1472 = vpow.pop %v1471
    %v1473 = vadd.f32 %v1470, 1.0
    %v1474 = vadd.f32 %v1472, 1.0
    %v1475 = vrcp.pop %v1473
    %v1476 = vmul.f32 1.0, %v1475
    %v1477 = vrcp.pop %v1474
    %v1478 = vmul.f32 1.0, %v1477
    %v1479 = vsel %vm44, %v1465, %v1476
    %v1480 = vsel %vm44, %v1466, %v1478
    %v1481 = vld [vmem:[#allocation5] sm:$0xff]
    %v1482 = vld [vmem:[#allocation5 + $0x8] sm:$0xff]
    %1485 = vrot.lane.b32.xlu0 %v1481, 32
    %v1486 = vpop.permute.xlu0 %1485
    %1487 = vrot.lane.b32.xlu0 %v1482, 32
    %v1488 = vpop.permute.xlu0 %1487
    %v1491 = vmul.f32 %v1479, %v1486
    %v1492 = vmul.f32 %v1480, %v1488
    %1495 = vrot.lane.b32.xlu0 %v1479, 64
    %v1496 = vpop.permute.xlu0 %1495
    %1497 = vrot.lane.b32.xlu0 %v1480, 64
    %v1498 = vpop.permute.xlu0 %1497
    %v1501 = vmul.f32 %v1479, %v1496
    %v1502 = vmul.f32 %v1480, %v1498
    %1505 = vrot.lane.b32.xlu0 %v1501, 32
    %v1506 = vpop.permute.xlu0 %1505
    %1507 = vrot.lane.b32.xlu0 %v1502, 32
    %v1508 = vpop.permute.xlu0 %1507
    %v1511 = vadd.f32 %v1491, %v1506
    %v1512 = vadd.f32 %v1492, %v1508
    %v1513 = vtanh.pop %v1511
    %v1514 = vtanh.pop %v1512
    %1517 = vrot.lane.b32.xlu0 %v1513, 64
    %v1518 = vpop.permute.xlu0 %1517
    %1519 = vrot.lane.b32.xlu0 %v1514, 64
    %v1520 = vpop.permute.xlu0 %1519
    %v1523 = vmul.f32 %v1479, %v1518
    %v1524 = vmul.f32 %v1480, %v1520
    %1527 = vrot.lane.b32.xlu0 %v1511, 96
    %v1528 = vpop.permute.xlu0 %1527
    %1529 = vrot.lane.b32.xlu0 %v1512, 96
    %v1530 = vpop.permute.xlu0 %1529
    %1533 = vst.msk [vmem:[#allocation5] sm:$0xff] %vm128, %v1528
    %1534 = vst.msk [vmem:[#allocation5 + $0x8] sm:$0xff] %vm128, %v1530
    %1537 = vrot.lane.b32.xlu0 %v1523, 32
    %v1538 = vpop.permute.xlu0 %1537
    %1539 = vrot.lane.b32.xlu0 %v1524, 32
    %v1540 = vpop.permute.xlu0 %1539
    %1543 = vst.msk [vmem:[#allocation4] sm:$0xff] %vm128, %v1538
    %1544 = vst.msk [vmem:[#allocation4 + $0x8] sm:$0xff] %vm128, %v1540
    %v1545 = vpack.c.bf16 %v1524, %v1523
    %v1547 = vunpack.c.l.b16 %v1545
    %v1548 = vunpack.c.h.b16 %v1545
    %v1549 = vpack.c.b16 %v1547, %v1547
    %v1550 = vpack.c.b16 %v1548, %v1548
    %1551 = vrot.lane.b32.xlu0 %v1549, 32
    %v1552 = vpop.permute.xlu0 %1551
    %1553 = vrot.lane.b32.xlu0 %v1550, 32
    %v1554 = vpop.permute.xlu0 %1553
    %1557 = vst.msk [vmem:[#allocation3 + $0x38] sm:$0xf] %vm429, %v1552
    %1558 = vst.msk [vmem:[#allocation3 + $0x3c] sm:$0xf] %vm429, %v1554
    %v1559 = vld [vmem:[#allocation3] sm:$0xf]
    %v1560 = vld [vmem:[#allocation3 + $0x4] sm:$0xf]
    %v1561 = vld [vmem:[#allocation3 + $0x8] sm:$0xf]
    %v1562 = vld [vmem:[#allocation3 + $0xc] sm:$0xf]
    %v1563 = vld [vmem:[#allocation3 + $0x10] sm:$0xf]
    %v1564 = vld [vmem:[#allocation3 + $0x14] sm:$0xf]
    %v1565 = vld [vmem:[#allocation3 + $0x18] sm:$0xf]
    %v1566 = vld [vmem:[#allocation3 + $0x1c] sm:$0xf]
    %v1567 = vld [vmem:[#allocation3 + $0x20] sm:$0xf]
    %v1568 = vld [vmem:[#allocation3 + $0x24] sm:$0xf]
    %v1569 = vld [vmem:[#allocation3 + $0x28] sm:$0xf]
    %v1570 = vld [vmem:[#allocation3 + $0x2c] sm:$0xf]
    %v1571 = vld [vmem:[#allocation3 + $0x30] sm:$0xf]
    %v1572 = vld [vmem:[#allocation3 + $0x34] sm:$0xf]
    %v1573 = vld [vmem:[#allocation3 + $0x38] sm:$0xf]
    %v1574 = vld [vmem:[#allocation3 + $0x3c] sm:$0xf]
    %v1575 = vld [vmem:[%s6] sm:$0xf]
    %v1576 = vld [vmem:[%s6 + $0x4] sm:$0xf]
    %v1577 = vld [vmem:[%s6 + $0x8] sm:$0xf]
    %v1578 = vld [vmem:[%s6 + $0xc] sm:$0xf]
    %v1579 = vld [vmem:[%s8] sm:$0x1]
    %v1581 = vlaneseq
    %v1582 = vshrl.u32 %v1581, 7
    %v1583 = vsub.s32 0, %v1582
    %v1584 = vrot.slane %v1579, %v1583
    %v1602 = vunpack.c.l.b16 %v1559
    %v1603 = vunpack.c.l.b16 %v1560
    %v1604 = vunpack.c.l.b16 %v1561
    %v1605 = vunpack.c.l.b16 %v1562
    %v1606 = vunpack.c.l.b16 %v1563
    %v1607 = vunpack.c.l.b16 %v1564
    %v1608 = vunpack.c.l.b16 %v1565
    %v1609 = vunpack.c.l.b16 %v1566
    %v1610 = vunpack.c.l.b16 %v1567
    %v1611 = vunpack.c.l.b16 %v1568
    %v1612 = vunpack.c.l.b16 %v1569
    %v1613 = vunpack.c.l.b16 %v1570
    %v1614 = vunpack.c.l.b16 %v1571
    %v1615 = vunpack.c.l.b16 %v1572
    %v1616 = vunpack.c.l.b16 %v1573
    %v1617 = vunpack.c.l.b16 %v1574
    %v1618 = vpack.c.b16 %v1603, %v1602
    %v1619 = vpack.c.b16 %v1605, %v1604
    %v1620 = vpack.c.b16 %v1607, %v1606
    %v1621 = vpack.c.b16 %v1609, %v1608
    %v1622 = vpack.c.b16 %v1611, %v1610
    %v1623 = vpack.c.b16 %v1613, %v1612
    %v1624 = vpack.c.b16 %v1615, %v1614
    %v1625 = vpack.c.b16 %v1617, %v1616
    %v1630 = vunpack.c.l.b16 %v1575
    %v1631 = vunpack.c.l.b16 %v1576
    %v1632 = vunpack.c.l.b16 %v1577
    %v1633 = vunpack.c.l.b16 %v1578
    %v1634 = vpack.c.b16 %v1631, %v1630
    %v1635 = vpack.c.b16 %v1633, %v1632
    %v1639 = vsel %vm128, %v1618, 0
    %v1642 = vsel %vm128, %v1619, 0
    %v1645 = vsel %vm128, %v1620, 0
    %v1648 = vsel %vm128, %v1621, 0
    %v1651 = vsel %vm128, %v1622, 0
    %v1654 = vsel %vm128, %v1623, 0
    %v1657 = vsel %vm128, %v1624, 0
    %v1660 = vsel %vm128, %v1625, 0
    %1662 = vmatprep.subr.bf16.mxu0 0
    %1663 = vmatpush1.bf16.msra.mxu0 0
    %1664 = vmatprep.subr.bf16.mxu0 0
    %1665 = vmatpush1.bf16.msra.mxu0 0
    %1666 = vmatprep.subr.bf16.mxu0 0
    %1667 = vmatpush1.bf16.msra.mxu0 0
    %1668 = vmatprep.subr.bf16.mxu0 0
    %1669 = vmatpush1.bf16.msra.mxu0 0
    %1670 = vmatprep.subr.bf16.mxu0 0
    %1671 = vmatpush1.bf16.msra.mxu0 0
    %1672 = vmatprep.subr.bf16.mxu0 0
    %1673 = vmatpush1.bf16.msra.mxu0 0
    %1674 = vmatprep.subr.bf16.mxu0 0
    %1675 = vmatpush1.bf16.msra.mxu0 %v1635
    %1676 = vmatprep.subr.bf16.mxu0 0
    %1677 = vmatpush1.bf16.msra.mxu0 %v1634
    %1678 = vmatprep.subr.bf16.mxu0 0
    %1679 = vmatpush2.bf16.msra.mxu0 0
    %1680 = vmatprep.subr.bf16.mxu0 0
    %1681 = vmatpush2.bf16.msra.mxu0 0
    %1682 = vmatprep.subr.bf16.mxu0 0
    %1683 = vmatpush2.bf16.msra.mxu0 0
    %1684 = vmatprep.subr.bf16.mxu0 0
    %1685 = vmatpush2.bf16.msra.mxu0 0
    %1686 = vmatprep.subr.bf16.mxu0 0
    %1687 = vmatpush2.bf16.msra.mxu0 0
    %1688 = vmatprep.subr.bf16.mxu0 0
    %1689 = vmatpush2.bf16.msra.mxu0 0
    %1690 = vmatprep.subr.bf16.mxu0 0
    %1691 = vmatpush2.bf16.msra.mxu0 0
    %1692 = vmatprep.subr.bf16.mxu0 0
    %1693 = vmatpush2.bf16.msra.mxu0 0
    %1694 = vmatprep.mubr.bf16.mxu0 0
    %1695 = vmatmul.mubr.bf16.gmra.mxu0 %v1639
    %v1696 = vpop.f32.mrf.mxu0
    %v1697 = vadd.f32 %v1584, %v1696
    %v1698 = vpop.f32.mrf.mxu0
    %v1699 = vpop.f32.mrf.mxu0
    %v1700 = vadd.f32 %v1584, %v1699
    %v1701 = vpop.f32.mrf.mxu0
    %1702 = vmatprep.mubr.bf16.mxu0 0
    %1703 = vmatmul.mubr.bf16.gmra.mxu0 %v1642
    %v1704 = vpop.f32.mrf.mxu0
    %v1705 = vadd.f32 %v1584, %v1704
    %v1706 = vpop.f32.mrf.mxu0
    %v1707 = vpop.f32.mrf.mxu0
    %v1708 = vadd.f32 %v1584, %v1707
    %v1709 = vpop.f32.mrf.mxu0
    %1710 = vmatprep.mubr.bf16.mxu0 0
    %1711 = vmatmul.mubr.bf16.gmra.mxu0 %v1645
    %v1712 = vpop.f32.mrf.mxu0
    %v1713 = vadd.f32 %v1584, %v1712
    %v1714 = vpop.f32.mrf.mxu0
    %v1715 = vpop.f32.mrf.mxu0
    %v1716 = vadd.f32 %v1584, %v1715
    %v1717 = vpop.f32.mrf.mxu0
    %1718 = vmatprep.mubr.bf16.mxu0 0
    %1719 = vmatmul.mubr.bf16.gmra.mxu0 %v1648
    %v1720 = vpop.f32.mrf.mxu0
    %v1721 = vadd.f32 %v1584, %v1720
    %v1722 = vpop.f32.mrf.mxu0
    %v1723 = vpop.f32.mrf.mxu0
    %v1724 = vadd.f32 %v1584, %v1723
    %v1725 = vpop.f32.mrf.mxu0
    %1726 = vmatprep.mubr.bf16.mxu0 0
    %1727 = vmatmul.mubr.bf16.gmra.mxu0 %v1651
    %v1728 = vpop.f32.mrf.mxu0
    %v1729 = vadd.f32 %v1584, %v1728
    %v1730 = vpop.f32.mrf.mxu0
    %v1731 = vpop.f32.mrf.mxu0
    %v1732 = vadd.f32 %v1584, %v1731
    %v1733 = vpop.f32.mrf.mxu0
    %1734 = vmatprep.mubr.bf16.mxu0 0
    %1735 = vmatmul.mubr.bf16.gmra.mxu0 %v1654
    %v1736 = vpop.f32.mrf.mxu0
    %v1737 = vadd.f32 %v1584, %v1736
    %v1738 = vpop.f32.mrf.mxu0
    %v1739 = vpop.f32.mrf.mxu0
    %v1740 = vadd.f32 %v1584, %v1739
    %v1741 = vpop.f32.mrf.mxu0
    %1742 = vmatprep.mubr.bf16.mxu0 0
    %1743 = vmatmul.mubr.bf16.gmra.mxu0 %v1657
    %v1744 = vpop.f32.mrf.mxu0
    %v1745 = vadd.f32 %v1584, %v1744
    %v1746 = vpop.f32.mrf.mxu0
    %v1747 = vpop.f32.mrf.mxu0
    %v1748 = vadd.f32 %v1584, %v1747
    %v1749 = vpop.f32.mrf.mxu0
    %1750 = vmatprep.mubr.bf16.mxu0 0
    %1751 = vmatmul.mubr.bf16.gmra.mxu0 %v1660
    %v1752 = vpop.f32.mrf.mxu0
    %v1753 = vadd.f32 %v1584, %v1752
    %v1754 = vpop.f32.mrf.mxu0
    %v1755 = vpop.f32.mrf.mxu0
    %v1756 = vadd.f32 %v1584, %v1755
    %v1757 = vpop.f32.mrf.mxu0
    %1758 = vdwg.mxu0
    %1759 = vst [vmem:[#allocation2] sm:$0xff] %v1697
    %1760 = vst [vmem:[#allocation2 + $0x8] sm:$0xff] %v1700
    %1761 = vst [vmem:[#allocation2 + $0x10] sm:$0xff] %v1705
    %1762 = vst [vmem:[#allocation2 + $0x18] sm:$0xff] %v1708
    %1763 = vst [vmem:[#allocation2 + $0x20] sm:$0xff] %v1713
    %1764 = vst [vmem:[#allocation2 + $0x28] sm:$0xff] %v1716
    %1765 = vst [vmem:[#allocation2 + $0x30] sm:$0xff] %v1721
    %1766 = vst [vmem:[#allocation2 + $0x38] sm:$0xff] %v1724
    %1767 = vst [vmem:[#allocation2 + $0x40] sm:$0xff] %v1729
    %1768 = vst [vmem:[#allocation2 + $0x48] sm:$0xff] %v1732
    %1769 = vst [vmem:[#allocation2 + $0x50] sm:$0xff] %v1737
    %1770 = vst [vmem:[#allocation2 + $0x58] sm:$0xff] %v1740
    %1771 = vst [vmem:[#allocation2 + $0x60] sm:$0xff] %v1745
    %1772 = vst [vmem:[#allocation2 + $0x68] sm:$0xff] %v1748
    %1773 = vst [vmem:[#allocation2 + $0x70] sm:$0xff] %v1753
    %1774 = vst [vmem:[#allocation2 + $0x78] sm:$0xff] %v1756
    %1775 = vst.msk [vmem:[#allocation4] sm:$0xff] %vm128, 0.0
    %1776 = vst.msk [vmem:[#allocation4 + $0x8] sm:$0xff] %vm128, 0.0
    %1777 = vst.msk [vmem:[#allocation5] sm:$0xff] %vm128, 0.0
    %1778 = vst.msk [vmem:[#allocation5 + $0x8] sm:$0xff] %vm128, 0.0
    %1779 = vst.msk [vmem:[#allocation6] sm:$0xff] %vm128, -inf
    %1780 = vst.msk [vmem:[#allocation6 + $0x8] sm:$0xff] %vm128, -inf
    %v1781 = vld [vmem:[#allocation2] sm:$0xff]
    %v1782 = vld [vmem:[#allocation2 + $0x8] sm:$0xff]
    %v1783 = vld [vmem:[#allocation4] sm:$0xff]
    %v1784 = vld [vmem:[#allocation4 + $0x8] sm:$0xff]
    %v1785 = vpack.c.bf16 %v1784, %v1783
    %v1786 = vld [vmem:[%s7] sm:$0xf]
    %v1787 = vld [vmem:[%s7 + $0x4] sm:$0xf]
    %v1788 = vld [vmem:[%s7 + $0x8] sm:$0xf]
    %v1789 = vld [vmem:[%s7 + $0xc] sm:$0xf]
    %v1794 = vunpack.c.l.b16 %v1786
    %v1795 = vunpack.c.l.b16 %v1787
    %v1796 = vunpack.c.l.b16 %v1788
    %v1797 = vunpack.c.l.b16 %v1789
    %v1798 = vpack.c.b16 %v1795, %v1794
    %v1799 = vpack.c.b16 %v1797, %v1796
    %v1803 = vsel %vm128, %v1785, 0
    %1805 = vmatprep.subr.bf16.mxu0 0
    %1806 = vmatpush1.bf16.msra.mxu0 0
    %1807 = vmatprep.subr.bf16.mxu0 0
    %1808 = vmatpush1.bf16.msra.mxu0 0
    %1809 = vmatprep.subr.bf16.mxu0 0
    %1810 = vmatpush1.bf16.msra.mxu0 0
    %1811 = vmatprep.subr.bf16.mxu0 0
    %1812 = vmatpush1.bf16.msra.mxu0 0
    %1813 = vmatprep.subr.bf16.mxu0 0
    %1814 = vmatpush1.bf16.msra.mxu0 0
    %1815 = vmatprep.subr.bf16.mxu0 0
    %1816 = vmatpush1.bf16.msra.mxu0 0
    %1817 = vmatprep.subr.bf16.mxu0 0
    %1818 = vmatpush1.bf16.msra.mxu0 %v1799
    %1819 = vmatprep.subr.bf16.mxu0 0
    %1820 = vmatpush1.bf16.msra.mxu0 %v1798
    %1821 = vmatprep.subr.bf16.mxu0 0
    %1822 = vmatpush2.bf16.msra.mxu0 0
    %1823 = vmatprep.subr.bf16.mxu0 0
    %1824 = vmatpush2.bf16.msra.mxu0 0
    %1825 = vmatprep.subr.bf16.mxu0 0
    %1826 = vmatpush2.bf16.msra.mxu0 0
    %1827 = vmatprep.subr.bf16.mxu0 0
    %1828 = vmatpush2.bf16.msra.mxu0 0
    %1829 = vmatprep.subr.bf16.mxu0 0
    %1830 = vmatpush2.bf16.msra.mxu0 0
    %1831 = vmatprep.subr.bf16.mxu0 0
    %1832 = vmatpush2.bf16.msra.mxu0 0
    %1833 = vmatprep.subr.bf16.mxu0 0
    %1834 = vmatpush2.bf16.msra.mxu0 0
    %1835 = vmatprep.subr.bf16.mxu0 0
    %1836 = vmatpush2.bf16.msra.mxu0 0
    %1837 = vmatprep.mubr.bf16.mxu0 0
    %1838 = vmatmul.mubr.bf16.gmra.mxu0 %v1803
    %v1839 = vpop.f32.mrf.mxu0
    %v1840 = vadd.f32 0.0, %v1839
    %v1841 = vpop.f32.mrf.mxu0
    %v1842 = vpop.f32.mrf.mxu0
    %v1843 = vadd.f32 0.0, %v1842
    %v1844 = vpop.f32.mrf.mxu0
    %1845 = vdwg.mxu0
    %v1846 = vadd.f32 %v1781, %v1840
    %v1847 = vadd.f32 %v1782, %v1843
    %v1848 = vtanh.pop %v1846
    %v1849 = vtanh.pop %v1847
    %v1850 = vxor.u32 %v1846, 2147483648
    %v1851 = vxor.u32 %v1847, 2147483648
    %v1852 = vmul.f32 %v1850, 1.442695
    %v1853 = vpow.pop %v1852
    %v1854 = vmul.f32 %v1851, 1.442695
    %v1855 = vpow.pop %v1854
    %v1856 = vadd.f32 %v1853, 1.0
    %v1857 = vadd.f32 %v1855, 1.0
    %v1858 = vrcp.pop %v1856
    %v1859 = vmul.f32 1.0, %v1858
    %v1860 = vrcp.pop %v1857
    %v1861 = vmul.f32 1.0, %v1860
    %v1862 = vsel %vm44, %v1848, %v1859
    %v1863 = vsel %vm44, %v1849, %v1861
    %v1864 = vld [vmem:[#allocation5] sm:$0xff]
    %v1865 = vld [vmem:[#allocation5 + $0x8] sm:$0xff]
    %1868 = vrot.lane.b32.xlu0 %v1864, 32
    %v1869 = vpop.permute.xlu0 %1868
    %1870 = vrot.lane.b32.xlu0 %v1865, 32
    %v1871 = vpop.permute.xlu0 %1870
    %v1874 = vmul.f32 %v1862, %v1869
    %v1875 = vmul.f32 %v1863, %v1871
    %1878 = vrot.lane.b32.xlu0 %v1862, 64
    %v1879 = vpop.permute.xlu0 %1878
    %1880 = vrot.lane.b32.xlu0 %v1863, 64
    %v1881 = vpop.permute.xlu0 %1880
    %v1884 = vmul.f32 %v1862, %v1879
    %v1885 = vmul.f32 %v1863, %v1881
    %1888 = vrot.lane.b32.xlu0 %v1884, 32
    %v1889 = vpop.permute.xlu0 %1888
    %1890 = vrot.lane.b32.xlu0 %v1885, 32
    %v1891 = vpop.permute.xlu0 %1890
    %v1894 = vadd.f32 %v1874, %v1889
    %v1895 = vadd.f32 %v1875, %v1891
    %v1896 = vtanh.pop %v1894
    %v1897 = vtanh.pop %v1895
    %1900 = vrot.lane.b32.xlu0 %v1896, 64
    %v1901 = vpop.permute.xlu0 %1900
    %1902 = vrot.lane.b32.xlu0 %v1897, 64
    %v1903 = vpop.permute.xlu0 %1902
    %v1906 = vmul.f32 %v1862, %v1901
    %v1907 = vmul.f32 %v1863, %v1903
    %1910 = vrot.lane.b32.xlu0 %v1894, 96
    %v1911 = vpop.permute.xlu0 %1910
    %1912 = vrot.lane.b32.xlu0 %v1895, 96
    %v1913 = vpop.permute.xlu0 %1912
    %1916 = vst.msk [vmem:[#allocation5] sm:$0xff] %vm128, %v1911
    %1917 = vst.msk [vmem:[#allocation5 + $0x8] sm:$0xff] %vm128, %v1913
    %1920 = vrot.lane.b32.xlu0 %v1906, 32
    %v1921 = vpop.permute.xlu0 %1920
    %1922 = vrot.lane.b32.xlu0 %v1907, 32
    %v1923 = vpop.permute.xlu0 %1922
    %1926 = vst.msk [vmem:[#allocation4] sm:$0xff] %vm128, %v1921
    %1927 = vst.msk [vmem:[#allocation4 + $0x8] sm:$0xff] %vm128, %v1923
    %vm1928 = vcmp.le.s32.totalorder %v45, 0
    %vm1929 = vcmp.le.s32.totalorder %v46, 0
    %vm1930 = vcmp.gt.s32.totalorder %v47, 0
    %vm1931 = vcmp.gt.s32.totalorder %v48, 0
    %vm1932 = vmand %vm1928, %vm1930
    %vm1933 = vmand %vm1929, %vm1931
    %v1934 = vld [vmem:[#allocation6] sm:$0xff]
    %v1935 = vld [vmem:[#allocation6 + $0x8] sm:$0xff]
    %v1936 = vsel %vm1932, 1, 0
    %v1937 = vsel %vm1933, 1, 0
    %1938 = vset.pattern.permute.xlu0 0
    %1939 = vperm.xlu0 %1938, %v1936
    %v1940 = vpop.permute.xlu0 %1939
    %1941 = vset.pattern.permute.xlu0 0
    %1942 = vperm.xlu0 %1941, %v1937
    %v1943 = vpop.permute.xlu0 %1942
    %vm1944 = vcmp.eq.s32.totalorder %v1940, 1
    %vm1945 = vcmp.eq.s32.totalorder %v1943, 1
    %v1946 = vsel %vm1944, %v1906, -inf
    %v1947 = vsel %vm1945, %v1907, -inf
    %1950 = vrot.lane.b32.xlu0 %v1946, 32
    %v1951 = vpop.permute.xlu0 %1950
    %1952 = vrot.lane.b32.xlu0 %v1947, 32
    %v1953 = vpop.permute.xlu0 %1952
    %v1956 = vmax.f32 %v1934, %v1951
    %v1957 = vmax.f32 %v1935, %v1953
    %1958 = vst.msk [vmem:[#allocation6] sm:$0xff] %vm128, %v1956
    %1959 = vst.msk [vmem:[#allocation6 + $0x8] sm:$0xff] %vm128, %v1957
    %v1960 = vld [vmem:[#allocation2 + $0x10] sm:$0xff]
    %v1961 = vld [vmem:[#allocation2 + $0x18] sm:$0xff]
    %v1962 = vld [vmem:[#allocation4] sm:$0xff]
    %v1963 = vld [vmem:[#allocation4 + $0x8] sm:$0xff]
    %v1964 = vpack.c.bf16 %v1963, %v1962
    %v1965 = vld [vmem:[%s7] sm:$0xf]
    %v1966 = vld [vmem:[%s7 + $0x4] sm:$0xf]
    %v1967 = vld [vmem:[%s7 + $0x8] sm:$0xf]
    %v1968 = vld [vmem:[%s7 + $0xc] sm:$0xf]
    %v1973 = vunpack.c.l.b16 %v1965
    %v1974 = vunpack.c.l.b16 %v1966
    %v1975 = vunpack.c.l.b16 %v1967
    %v1976 = vunpack.c.l.b16 %v1968
    %v1977 = vpack.c.b16 %v1974, %v1973
    %v1978 = vpack.c.b16 %v1976, %v1975
    %v1982 = vsel %vm128, %v1964, 0
    %1984 = vmatprep.subr.bf16.mxu0 0
    %1985 = vmatpush1.bf16.msra.mxu0 0
    %1986 = vmatprep.subr.bf16.mxu0 0
    %1987 = vmatpush1.bf16.msra.mxu0 0
    %1988 = vmatprep.subr.bf16.mxu0 0
    %1989 = vmatpush1.bf16.msra.mxu0 0
    %1990 = vmatprep.subr.bf16.mxu0 0
    %1991 = vmatpush1.bf16.msra.mxu0 0
    %1992 = vmatprep.subr.bf16.mxu0 0
    %1993 = vmatpush1.bf16.msra.mxu0 0
    %1994 = vmatprep.subr.bf16.mxu0 0
    %1995 = vmatpush1.bf16.msra.mxu0 0
    %1996 = vmatprep.subr.bf16.mxu0 0
    %1997 = vmatpush1.bf16.msra.mxu0 %v1978
    %1998 = vmatprep.subr.bf16.mxu0 0
    %1999 = vmatpush1.bf16.msra.mxu0 %v1977
    %2000 = vmatprep.subr.bf16.mxu0 0
    %2001 = vmatpush2.bf16.msra.mxu0 0
    %2002 = vmatprep.subr.bf16.mxu0 0
    %2003 = vmatpush2.bf16.msra.mxu0 0
    %2004 = vmatprep.subr.bf16.mxu0 0
    %2005 = vmatpush2.bf16.msra.mxu0 0
    %2006 = vmatprep.subr.bf16.mxu0 0
    %2007 = vmatpush2.bf16.msra.mxu0 0
    %2008 = vmatprep.subr.bf16.mxu0 0
    %2009 = vmatpush2.bf16.msra.mxu0 0
    %2010 = vmatprep.subr.bf16.mxu0 0
    %2011 = vmatpush2.bf16.msra.mxu0 0
    %2012 = vmatprep.subr.bf16.mxu0 0
    %2013 = vmatpush2.bf16.msra.mxu0 0
    %2014 = vmatprep.subr.bf16.mxu0 0
    %2015 = vmatpush2.bf16.msra.mxu0 0
    %2016 = vmatprep.mubr.bf16.mxu0 0
    %2017 = vmatmul.mubr.bf16.gmra.mxu0 %v1982
    %v2018 = vpop.f32.mrf.mxu0
    %v2019 = vadd.f32 0.0, %v2018
    %v2020 = vpop.f32.mrf.mxu0
    %v2021 = vpop.f32.mrf.mxu0
    %v2022 = vadd.f32 0.0, %v2021
    %v2023 = vpop.f32.mrf.mxu0
    %2024 = vdwg.mxu0
    %v2025 = vadd.f32 %v1960, %v2019
    %v2026 = vadd.f32 %v1961, %v2022
    %v2027 = vtanh.pop %v2025
    %v2028 = vtanh.pop %v2026
    %v2029 = vxor.u32 %v2025, 2147483648
    %v2030 = vxor.u32 %v2026, 2147483648
    %v2031 = vmul.f32 %v2029, 1.442695
    %v2032 = vpow.pop %v2031
    %v2033 = vmul.f32 %v2030, 1.442695
    %v2034 = vpow.pop %v2033
    %v2035 = vadd.f32 %v2032, 1.0
    %v2036 = vadd.f32 %v2034, 1.0
    %v2037 = vrcp.pop %v2035
    %v2038 = vmul.f32 1.0, %v2037
    %v2039 = vrcp.pop %v2036
    %v2040 = vmul.f32 1.0, %v2039
    %v2041 = vsel %vm44, %v2027, %v2038
    %v2042 = vsel %vm44, %v2028, %v2040
    %v2043 = vld [vmem:[#allocation5] sm:$0xff]
    %v2044 = vld [vmem:[#allocation5 + $0x8] sm:$0xff]
    %2047 = vrot.lane.b32.xlu0 %v2043, 32
    %v2048 = vpop.permute.xlu0 %2047
    %2049 = vrot.lane.b32.xlu0 %v2044, 32
    %v2050 = vpop.permute.xlu0 %2049
    %v2053 = vmul.f32 %v2041, %v2048
    %v2054 = vmul.f32 %v2042, %v2050
    %2057 = vrot.lane.b32.xlu0 %v2041, 64
    %v2058 = vpop.permute.xlu0 %2057
    %2059 = vrot.lane.b32.xlu0 %v2042, 64
    %v2060 = vpop.permute.xlu0 %2059
    %v2063 = vmul.f32 %v2041, %v2058
    %v2064 = vmul.f32 %v2042, %v2060
    %2067 = vrot.lane.b32.xlu0 %v2063, 32
    %v2068 = vpop.permute.xlu0 %2067
    %2069 = vrot.lane.b32.xlu0 %v2064, 32
    %v2070 = vpop.permute.xlu0 %2069
    %v2073 = vadd.f32 %v2053, %v2068
    %v2074 = vadd.f32 %v2054, %v2070
    %v2075 = vtanh.pop %v2073
    %v2076 = vtanh.pop %v2074
    %2079 = vrot.lane.b32.xlu0 %v2075, 64
    %v2080 = vpop.permute.xlu0 %2079
    %2081 = vrot.lane.b32.xlu0 %v2076, 64
    %v2082 = vpop.permute.xlu0 %2081
    %v2085 = vmul.f32 %v2041, %v2080
    %v2086 = vmul.f32 %v2042, %v2082
    %2089 = vrot.lane.b32.xlu0 %v2073, 96
    %v2090 = vpop.permute.xlu0 %2089
    %2091 = vrot.lane.b32.xlu0 %v2074, 96
    %v2092 = vpop.permute.xlu0 %2091
    %2095 = vst.msk [vmem:[#allocation5] sm:$0xff] %vm128, %v2090
    %2096 = vst.msk [vmem:[#allocation5 + $0x8] sm:$0xff] %vm128, %v2092
    %2099 = vrot.lane.b32.xlu0 %v2085, 32
    %v2100 = vpop.permute.xlu0 %2099
    %2101 = vrot.lane.b32.xlu0 %v2086, 32
    %v2102 = vpop.permute.xlu0 %2101
    %2105 = vst.msk [vmem:[#allocation4] sm:$0xff] %vm128, %v2100
    %2106 = vst.msk [vmem:[#allocation4 + $0x8] sm:$0xff] %vm128, %v2102
    %vm2107 = vcmp.le.s32.totalorder %v45, 1
    %vm2108 = vcmp.le.s32.totalorder %v46, 1
    %vm2109 = vcmp.gt.s32.totalorder %v47, 1
    %vm2110 = vcmp.gt.s32.totalorder %v48, 1
    %vm2111 = vmand %vm2107, %vm2109
    %vm2112 = vmand %vm2108, %vm2110
    %v2113 = vld [vmem:[#allocation6] sm:$0xff]
    %v2114 = vld [vmem:[#allocation6 + $0x8] sm:$0xff]
    %v2115 = vsel %vm2111, 1, 0
    %v2116 = vsel %vm2112, 1, 0
    %2117 = vset.pattern.permute.xlu0 0
    %2118 = vperm.xlu0 %2117, %v2115
    %v2119 = vpop.permute.xlu0 %2118
    %2120 = vset.pattern.permute.xlu0 0
    %2121 = vperm.xlu0 %2120, %v2116
    %v2122 = vpop.permute.xlu0 %2121
    %vm2123 = vcmp.eq.s32.totalorder %v2119, 1
    %vm2124 = vcmp.eq.s32.totalorder %v2122, 1
    %v2125 = vsel %vm2123, %v2085, -inf
    %v2126 = vsel %vm2124, %v2086, -inf
    %2129 = vrot.lane.b32.xlu0 %v2125, 32
    %v2130 = vpop.permute.xlu0 %2129
    %2131 = vrot.lane.b32.xlu0 %v2126, 32
    %v2132 = vpop.permute.xlu0 %2131
    %v2135 = vmax.f32 %v2113, %v2130
    %v2136 = vmax.f32 %v2114, %v2132
    %2137 = vst.msk [vmem:[#allocation6] sm:$0xff] %vm128, %v2135
    %2138 = vst.msk [vmem:[#allocation6 + $0x8] sm:$0xff] %vm128, %v2136
    %v2139 = vld [vmem:[#allocation2 + $0x20] sm:$0xff]
    %v2140 = vld [vmem:[#allocation2 + $0x28] sm:$0xff]
    %v2141 = vld [vmem:[#allocation4] sm:$0xff]
    %v2142 = vld [vmem:[#allocation4 + $0x8] sm:$0xff]
    %v2143 = vpack.c.bf16 %v2142, %v2141
    %v2144 = vld [vmem:[%s7] sm:$0xf]
    %v2145 = vld [vmem:[%s7 + $0x4] sm:$0xf]
    %v2146 = vld [vmem:[%s7 + $0x8] sm:$0xf]
    %v2147 = vld [vmem:[%s7 + $0xc] sm:$0xf]
    %v2152 = vunpack.c.l.b16 %v2144
    %v2153 = vunpack.c.l.b16 %v2145
    %v2154 = vunpack.c.l.b16 %v2146
    %v2155 = vunpack.c.l.b16 %v2147
    %v2156 = vpack.c.b16 %v2153, %v2152
    %v2157 = vpack.c.b16 %v2155, %v2154
    %v2161 = vsel %vm128, %v2143, 0
    %2163 = vmatprep.subr.bf16.mxu0 0
    %2164 = vmatpush1.bf16.msra.mxu0 0
    %2165 = vmatprep.subr.bf16.mxu0 0
    %2166 = vmatpush1.bf16.msra.mxu0 0
    %2167 = vmatprep.subr.bf16.mxu0 0
    %2168 = vmatpush1.bf16.msra.mxu0 0
    %2169 = vmatprep.subr.bf16.mxu0 0
    %2170 = vmatpush1.bf16.msra.mxu0 0
    %2171 = vmatprep.subr.bf16.mxu0 0
    %2172 = vmatpush1.bf16.msra.mxu0 0
    %2173 = vmatprep.subr.bf16.mxu0 0
    %2174 = vmatpush1.bf16.msra.mxu0 0
    %2175 = vmatprep.subr.bf16.mxu0 0
    %2176 = vmatpush1.bf16.msra.mxu0 %v2157
    %2177 = vmatprep.subr.bf16.mxu0 0
    %2178 = vmatpush1.bf16.msra.mxu0 %v2156
    %2179 = vmatprep.subr.bf16.mxu0 0
    %2180 = vmatpush2.bf16.msra.mxu0 0
    %2181 = vmatprep.subr.bf16.mxu0 0
    %2182 = vmatpush2.bf16.msra.mxu0 0
    %2183 = vmatprep.subr.bf16.mxu0 0
    %2184 = vmatpush2.bf16.msra.mxu0 0
    %2185 = vmatprep.subr.bf16.mxu0 0
    %2186 = vmatpush2.bf16.msra.mxu0 0
    %2187 = vmatprep.subr.bf16.mxu0 0
    %2188 = vmatpush2.bf16.msra.mxu0 0
    %2189 = vmatprep.subr.bf16.mxu0 0
    %2190 = vmatpush2.bf16.msra.mxu0 0
    %2191 = vmatprep.subr.bf16.mxu0 0
    %2192 = vmatpush2.bf16.msra.mxu0 0
    %2193 = vmatprep.subr.bf16.mxu0 0
    %2194 = vmatpush2.bf16.msra.mxu0 0
    %2195 = vmatprep.mubr.bf16.mxu0 0
    %2196 = vmatmul.mubr.bf16.gmra.mxu0 %v2161
    %v2197 = vpop.f32.mrf.mxu0
    %v2198 = vadd.f32 0.0, %v2197
    %v2199 = vpop.f32.mrf.mxu0
    %v2200 = vpop.f32.mrf.mxu0
    %v2201 = vadd.f32 0.0, %v2200
    %v2202 = vpop.f32.mrf.mxu0
    %2203 = vdwg.mxu0
    %v2204 = vadd.f32 %v2139, %v2198
    %v2205 = vadd.f32 %v2140, %v2201
    %v2206 = vtanh.pop %v2204
    %v2207 = vtanh.pop %v2205
    %v2208 = vxor.u32 %v2204, 2147483648
    %v2209 = vxor.u32 %v2205, 2147483648
    %v2210 = vmul.f32 %v2208, 1.442695
    %v2211 = vpow.pop %v2210
    %v2212 = vmul.f32 %v2209, 1.442695
    %v2213 = vpow.pop %v2212
    %v2214 = vadd.f32 %v2211, 1.0
    %v2215 = vadd.f32 %v2213, 1.0
    %v2216 = vrcp.pop %v2214
    %v2217 = vmul.f32 1.0, %v2216
    %v2218 = vrcp.pop %v2215
    %v2219 = vmul.f32 1.0, %v2218
    %v2220 = vsel %vm44, %v2206, %v2217
    %v2221 = vsel %vm44, %v2207, %v2219
    %v2222 = vld [vmem:[#allocation5] sm:$0xff]
    %v2223 = vld [vmem:[#allocation5 + $0x8] sm:$0xff]
    %2226 = vrot.lane.b32.xlu0 %v2222, 32
    %v2227 = vpop.permute.xlu0 %2226
    %2228 = vrot.lane.b32.xlu0 %v2223, 32
    %v2229 = vpop.permute.xlu0 %2228
    %v2232 = vmul.f32 %v2220, %v2227
    %v2233 = vmul.f32 %v2221, %v2229
    %2236 = vrot.lane.b32.xlu0 %v2220, 64
    %v2237 = vpop.permute.xlu0 %2236
    %2238 = vrot.lane.b32.xlu0 %v2221, 64
    %v2239 = vpop.permute.xlu0 %2238
    %v2242 = vmul.f32 %v2220, %v2237
    %v2243 = vmul.f32 %v2221, %v2239
    %2246 = vrot.lane.b32.xlu0 %v2242, 32
    %v2247 = vpop.permute.xlu0 %2246
    %2248 = vrot.lane.b32.xlu0 %v2243, 32
    %v2249 = vpop.permute.xlu0 %2248
    %v2252 = vadd.f32 %v2232, %v2247
    %v2253 = vadd.f32 %v2233, %v2249
    %v2254 = vtanh.pop %v2252
    %v2255 = vtanh.pop %v2253
    %2258 = vrot.lane.b32.xlu0 %v2254, 64
    %v2259 = vpop.permute.xlu0 %2258
    %2260 = vrot.lane.b32.xlu0 %v2255, 64
    %v2261 = vpop.permute.xlu0 %2260
    %v2264 = vmul.f32 %v2220, %v2259
    %v2265 = vmul.f32 %v2221, %v2261
    %2268 = vrot.lane.b32.xlu0 %v2252, 96
    %v2269 = vpop.permute.xlu0 %2268
    %2270 = vrot.lane.b32.xlu0 %v2253, 96
    %v2271 = vpop.permute.xlu0 %2270
    %2274 = vst.msk [vmem:[#allocation5] sm:$0xff] %vm128, %v2269
    %2275 = vst.msk [vmem:[#allocation5 + $0x8] sm:$0xff] %vm128, %v2271
    %2278 = vrot.lane.b32.xlu0 %v2264, 32
    %v2279 = vpop.permute.xlu0 %2278
    %2280 = vrot.lane.b32.xlu0 %v2265, 32
    %v2281 = vpop.permute.xlu0 %2280
    %2284 = vst.msk [vmem:[#allocation4] sm:$0xff] %vm128, %v2279
    %2285 = vst.msk [vmem:[#allocation4 + $0x8] sm:$0xff] %vm128, %v2281
    %vm2286 = vcmp.le.s32.totalorder %v45, 2
    %vm2287 = vcmp.le.s32.totalorder %v46, 2
    %vm2288 = vcmp.gt.s32.totalorder %v47, 2
    %vm2289 = vcmp.gt.s32.totalorder %v48, 2
    %vm2290 = vmand %vm2286, %vm2288
    %vm2291 = vmand %vm2287, %vm2289
    %v2292 = vld [vmem:[#allocation6] sm:$0xff]
    %v2293 = vld [vmem:[#allocation6 + $0x8] sm:$0xff]
    %v2294 = vsel %vm2290, 1, 0
    %v2295 = vsel %vm2291, 1, 0
    %2296 = vset.pattern.permute.xlu0 0
    %2297 = vperm.xlu0 %2296, %v2294
    %v2298 = vpop.permute.xlu0 %2297
    %2299 = vset.pattern.permute.xlu0 0
    %2300 = vperm.xlu0 %2299, %v2295
    %v2301 = vpop.permute.xlu0 %2300
    %vm2302 = vcmp.eq.s32.totalorder %v2298, 1
    %vm2303 = vcmp.eq.s32.totalorder %v2301, 1
    %v2304 = vsel %vm2302, %v2264, -inf
    %v2305 = vsel %vm2303, %v2265, -inf
    %2308 = vrot.lane.b32.xlu0 %v2304, 32
    %v2309 = vpop.permute.xlu0 %2308
    %2310 = vrot.lane.b32.xlu0 %v2305, 32
    %v2311 = vpop.permute.xlu0 %2310
    %v2314 = vmax.f32 %v2292, %v2309
    %v2315 = vmax.f32 %v2293, %v2311
    %2316 = vst.msk [vmem:[#allocation6] sm:$0xff] %vm128, %v2314
    %2317 = vst.msk [vmem:[#allocation6 + $0x8] sm:$0xff] %vm128, %v2315
    %v2318 = vld [vmem:[#allocation2 + $0x30] sm:$0xff]
    %v2319 = vld [vmem:[#allocation2 + $0x38] sm:$0xff]
    %v2320 = vld [vmem:[#allocation4] sm:$0xff]
    %v2321 = vld [vmem:[#allocation4 + $0x8] sm:$0xff]
    %v2322 = vpack.c.bf16 %v2321, %v2320
    %v2323 = vld [vmem:[%s7] sm:$0xf]
    %v2324 = vld [vmem:[%s7 + $0x4] sm:$0xf]
    %v2325 = vld [vmem:[%s7 + $0x8] sm:$0xf]
    %v2326 = vld [vmem:[%s7 + $0xc] sm:$0xf]
    %v2331 = vunpack.c.l.b16 %v2323
    %v2332 = vunpack.c.l.b16 %v2324
    %v2333 = vunpack.c.l.b16 %v2325
    %v2334 = vunpack.c.l.b16 %v2326
    %v2335 = vpack.c.b16 %v2332, %v2331
    %v2336 = vpack.c.b16 %v2334, %v2333
    %v2340 = vsel %vm128, %v2322, 0
    %2342 = vmatprep.subr.bf16.mxu0 0
    %2343 = vmatpush1.bf16.msra.mxu0 0
    %2344 = vmatprep.subr.bf16.mxu0 0
    %2345 = vmatpush1.bf16.msra.mxu0 0
    %2346 = vmatprep.subr.bf16.mxu0 0
    %2347 = vmatpush1.bf16.msra.mxu0 0
    %2348 = vmatprep.subr.bf16.mxu0 0
    %2349 = vmatpush1.bf16.msra.mxu0 0
    %2350 = vmatprep.subr.bf16.mxu0 0
    %2351 = vmatpush1.bf16.msra.mxu0 0
    %2352 = vmatprep.subr.bf16.mxu0 0
    %2353 = vmatpush1.bf16.msra.mxu0 0
    %2354 = vmatprep.subr.bf16.mxu0 0
    %2355 = vmatpush1.bf16.msra.mxu0 %v2336
    %2356 = vmatprep.subr.bf16.mxu0 0
    %2357 = vmatpush1.bf16.msra.mxu0 %v2335
    %2358 = vmatprep.subr.bf16.mxu0 0
    %2359 = vmatpush2.bf16.msra.mxu0 0
    %2360 = vmatprep.subr.bf16.mxu0 0
    %2361 = vmatpush2.bf16.msra.mxu0 0
    %2362 = vmatprep.subr.bf16.mxu0 0
    %2363 = vmatpush2.bf16.msra.mxu0 0
    %2364 = vmatprep.subr.bf16.mxu0 0
    %2365 = vmatpush2.bf16.msra.mxu0 0
    %2366 = vmatprep.subr.bf16.mxu0 0
    %2367 = vmatpush2.bf16.msra.mxu0 0
    %2368 = vmatprep.subr.bf16.mxu0 0
    %2369 = vmatpush2.bf16.msra.mxu0 0
    %2370 = vmatprep.subr.bf16.mxu0 0
    %2371 = vmatpush2.bf16.msra.mxu0 0
    %2372 = vmatprep.subr.bf16.mxu0 0
    %2373 = vmatpush2.bf16.msra.mxu0 0
    %2374 = vmatprep.mubr.bf16.mxu0 0
    %2375 = vmatmul.mubr.bf16.gmra.mxu0 %v2340
    %v2376 = vpop.f32.mrf.mxu0
    %v2377 = vadd.f32 0.0, %v2376
    %v2378 = vpop.f32.mrf.mxu0
    %v2379 = vpop.f32.mrf.mxu0
    %v2380 = vadd.f32 0.0, %v2379
    %v2381 = vpop.f32.mrf.mxu0
    %2382 = vdwg.mxu0
    %v2383 = vadd.f32 %v2318, %v2377
    %v2384 = vadd.f32 %v2319, %v2380
    %v2385 = vtanh.pop %v2383
    %v2386 = vtanh.pop %v2384
    %v2387 = vxor.u32 %v2383, 2147483648
    %v2388 = vxor.u32 %v2384, 2147483648
    %v2389 = vmul.f32 %v2387, 1.442695
    %v2390 = vpow.pop %v2389
    %v2391 = vmul.f32 %v2388, 1.442695
    %v2392 = vpow.pop %v2391
    %v2393 = vadd.f32 %v2390, 1.0
    %v2394 = vadd.f32 %v2392, 1.0
    %v2395 = vrcp.pop %v2393
    %v2396 = vmul.f32 1.0, %v2395
    %v2397 = vrcp.pop %v2394
    %v2398 = vmul.f32 1.0, %v2397
    %v2399 = vsel %vm44, %v2385, %v2396
    %v2400 = vsel %vm44, %v2386, %v2398
    %v2401 = vld [vmem:[#allocation5] sm:$0xff]
    %v2402 = vld [vmem:[#allocation5 + $0x8] sm:$0xff]
    %2405 = vrot.lane.b32.xlu0 %v2401, 32
    %v2406 = vpop.permute.xlu0 %2405
    %2407 = vrot.lane.b32.xlu0 %v2402, 32
    %v2408 = vpop.permute.xlu0 %2407
    %v2411 = vmul.f32 %v2399, %v2406
    %v2412 = vmul.f32 %v2400, %v2408
    %2415 = vrot.lane.b32.xlu0 %v2399, 64
    %v2416 = vpop.permute.xlu0 %2415
    %2417 = vrot.lane.b32.xlu0 %v2400, 64
    %v2418 = vpop.permute.xlu0 %2417
    %v2421 = vmul.f32 %v2399, %v2416
    %v2422 = vmul.f32 %v2400, %v2418
    %2425 = vrot.lane.b32.xlu0 %v2421, 32
    %v2426 = vpop.permute.xlu0 %2425
    %2427 = vrot.lane.b32.xlu0 %v2422, 32
    %v2428 = vpop.permute.xlu0 %2427
    %v2431 = vadd.f32 %v2411, %v2426
    %v2432 = vadd.f32 %v2412, %v2428
    %v2433 = vtanh.pop %v2431
    %v2434 = vtanh.pop %v2432
    %2437 = vrot.lane.b32.xlu0 %v2433, 64
    %v2438 = vpop.permute.xlu0 %2437
    %2439 = vrot.lane.b32.xlu0 %v2434, 64
    %v2440 = vpop.permute.xlu0 %2439
    %v2443 = vmul.f32 %v2399, %v2438
    %v2444 = vmul.f32 %v2400, %v2440
    %2447 = vrot.lane.b32.xlu0 %v2431, 96
    %v2448 = vpop.permute.xlu0 %2447
    %2449 = vrot.lane.b32.xlu0 %v2432, 96
    %v2450 = vpop.permute.xlu0 %2449
    %2453 = vst.msk [vmem:[#allocation5] sm:$0xff] %vm128, %v2448
    %2454 = vst.msk [vmem:[#allocation5 + $0x8] sm:$0xff] %vm128, %v2450
    %2457 = vrot.lane.b32.xlu0 %v2443, 32
    %v2458 = vpop.permute.xlu0 %2457
    %2459 = vrot.lane.b32.xlu0 %v2444, 32
    %v2460 = vpop.permute.xlu0 %2459
    %2463 = vst.msk [vmem:[#allocation4] sm:$0xff] %vm128, %v2458
    %2464 = vst.msk [vmem:[#allocation4 + $0x8] sm:$0xff] %vm128, %v2460
    %vm2465 = vcmp.le.s32.totalorder %v45, 3
    %vm2466 = vcmp.le.s32.totalorder %v46, 3
    %vm2467 = vcmp.gt.s32.totalorder %v47, 3
    %vm2468 = vcmp.gt.s32.totalorder %v48, 3
    %vm2469 = vmand %vm2465, %vm2467
    %vm2470 = vmand %vm2466, %vm2468
    %v2471 = vld [vmem:[#allocation6] sm:$0xff]
    %v2472 = vld [vmem:[#allocation6 + $0x8] sm:$0xff]
    %v2473 = vsel %vm2469, 1, 0
    %v2474 = vsel %vm2470, 1, 0
    %2475 = vset.pattern.permute.xlu0 0
    %2476 = vperm.xlu0 %2475, %v2473
    %v2477 = vpop.permute.xlu0 %2476
    %2478 = vset.pattern.permute.xlu0 0
    %2479 = vperm.xlu0 %2478, %v2474
    %v2480 = vpop.permute.xlu0 %2479
    %vm2481 = vcmp.eq.s32.totalorder %v2477, 1
    %vm2482 = vcmp.eq.s32.totalorder %v2480, 1
    %v2483 = vsel %vm2481, %v2443, -inf
    %v2484 = vsel %vm2482, %v2444, -inf
    %2487 = vrot.lane.b32.xlu0 %v2483, 32
    %v2488 = vpop.permute.xlu0 %2487
    %2489 = vrot.lane.b32.xlu0 %v2484, 32
    %v2490 = vpop.permute.xlu0 %2489
    %v2493 = vmax.f32 %v2471, %v2488
    %v2494 = vmax.f32 %v2472, %v2490
    %2495 = vst.msk [vmem:[#allocation6] sm:$0xff] %vm128, %v2493
    %2496 = vst.msk [vmem:[#allocation6 + $0x8] sm:$0xff] %vm128, %v2494
    %v2497 = vld [vmem:[#allocation2 + $0x40] sm:$0xff]
    %v2498 = vld [vmem:[#allocation2 + $0x48] sm:$0xff]
    %v2499 = vld [vmem:[#allocation4] sm:$0xff]
    %v2500 = vld [vmem:[#allocation4 + $0x8] sm:$0xff]
    %v2501 = vpack.c.bf16 %v2500, %v2499
    %v2502 = vld [vmem:[%s7] sm:$0xf]
    %v2503 = vld [vmem:[%s7 + $0x4] sm:$0xf]
    %v2504 = vld [vmem:[%s7 + $0x8] sm:$0xf]
    %v2505 = vld [vmem:[%s7 + $0xc] sm:$0xf]
    %v2510 = vunpack.c.l.b16 %v2502
    %v2511 = vunpack.c.l.b16 %v2503
    %v2512 = vunpack.c.l.b16 %v2504
    %v2513 = vunpack.c.l.b16 %v2505
    %v2514 = vpack.c.b16 %v2511, %v2510
    %v2515 = vpack.c.b16 %v2513, %v2512
    %v2519 = vsel %vm128, %v2501, 0
    %2521 = vmatprep.subr.bf16.mxu0 0
    %2522 = vmatpush1.bf16.msra.mxu0 0
    %2523 = vmatprep.subr.bf16.mxu0 0
    %2524 = vmatpush1.bf16.msra.mxu0 0
    %2525 = vmatprep.subr.bf16.mxu0 0
    %2526 = vmatpush1.bf16.msra.mxu0 0
    %2527 = vmatprep.subr.bf16.mxu0 0
    %2528 = vmatpush1.bf16.msra.mxu0 0
    %2529 = vmatprep.subr.bf16.mxu0 0
    %2530 = vmatpush1.bf16.msra.mxu0 0
    %2531 = vmatprep.subr.bf16.mxu0 0
    %2532 = vmatpush1.bf16.msra.mxu0 0
    %2533 = vmatprep.subr.bf16.mxu0 0
    %2534 = vmatpush1.bf16.msra.mxu0 %v2515
    %2535 = vmatprep.subr.bf16.mxu0 0
    %2536 = vmatpush1.bf16.msra.mxu0 %v2514
    %2537 = vmatprep.subr.bf16.mxu0 0
    %2538 = vmatpush2.bf16.msra.mxu0 0
    %2539 = vmatprep.subr.bf16.mxu0 0
    %2540 = vmatpush2.bf16.msra.mxu0 0
    %2541 = vmatprep.subr.bf16.mxu0 0
    %2542 = vmatpush2.bf16.msra.mxu0 0
    %2543 = vmatprep.subr.bf16.mxu0 0
    %2544 = vmatpush2.bf16.msra.mxu0 0
    %2545 = vmatprep.subr.bf16.mxu0 0
    %2546 = vmatpush2.bf16.msra.mxu0 0
    %2547 = vmatprep.subr.bf16.mxu0 0
    %2548 = vmatpush2.bf16.msra.mxu0 0
    %2549 = vmatprep.subr.bf16.mxu0 0
    %2550 = vmatpush2.bf16.msra.mxu0 0
    %2551 = vmatprep.subr.bf16.mxu0 0
    %2552 = vmatpush2.bf16.msra.mxu0 0
    %2553 = vmatprep.mubr.bf16.mxu0 0
    %2554 = vmatmul.mubr.bf16.gmra.mxu0 %v2519
    %v2555 = vpop.f32.mrf.mxu0
    %v2556 = vadd.f32 0.0, %v2555
    %v2557 = vpop.f32.mrf.mxu0
    %v2558 = vpop.f32.mrf.mxu0
    %v2559 = vadd.f32 0.0, %v2558
    %v2560 = vpop.f32.mrf.mxu0
    %2561 = vdwg.mxu0
    %v2562 = vadd.f32 %v2497, %v2556
    %v2563 = vadd.f32 %v2498, %v2559
    %v2564 = vtanh.pop %v2562
    %v2565 = vtanh.pop %v2563
    %v2566 = vxor.u32 %v2562, 2147483648
    %v2567 = vxor.u32 %v2563, 2147483648
    %v2568 = vmul.f32 %v2566, 1.442695
    %v2569 = vpow.pop %v2568
    %v2570 = vmul.f32 %v2567, 1.442695
    %v2571 = vpow.pop %v2570
    %v2572 = vadd.f32 %v2569, 1.0
    %v2573 = vadd.f32 %v2571, 1.0
    %v2574 = vrcp.pop %v2572
    %v2575 = vmul.f32 1.0, %v2574
    %v2576 = vrcp.pop %v2573
    %v2577 = vmul.f32 1.0, %v2576
    %v2578 = vsel %vm44, %v2564, %v2575
    %v2579 = vsel %vm44, %v2565, %v2577
    %v2580 = vld [vmem:[#allocation5] sm:$0xff]
    %v2581 = vld [vmem:[#allocation5 + $0x8] sm:$0xff]
    %2584 = vrot.lane.b32.xlu0 %v2580, 32
    %v2585 = vpop.permute.xlu0 %2584
    %2586 = vrot.lane.b32.xlu0 %v2581, 32
    %v2587 = vpop.permute.xlu0 %2586
    %v2590 = vmul.f32 %v2578, %v2585
    %v2591 = vmul.f32 %v2579, %v2587
    %2594 = vrot.lane.b32.xlu0 %v2578, 64
    %v2595 = vpop.permute.xlu0 %2594
    %2596 = vrot.lane.b32.xlu0 %v2579, 64
    %v2597 = vpop.permute.xlu0 %2596
    %v2600 = vmul.f32 %v2578, %v2595
    %v2601 = vmul.f32 %v2579, %v2597
    %2604 = vrot.lane.b32.xlu0 %v2600, 32
    %v2605 = vpop.permute.xlu0 %2604
    %2606 = vrot.lane.b32.xlu0 %v2601, 32
    %v2607 = vpop.permute.xlu0 %2606
    %v2610 = vadd.f32 %v2590, %v2605
    %v2611 = vadd.f32 %v2591, %v2607
    %v2612 = vtanh.pop %v2610
    %v2613 = vtanh.pop %v2611
    %2616 = vrot.lane.b32.xlu0 %v2612, 64
    %v2617 = vpop.permute.xlu0 %2616
    %2618 = vrot.lane.b32.xlu0 %v2613, 64
    %v2619 = vpop.permute.xlu0 %2618
    %v2622 = vmul.f32 %v2578, %v2617
    %v2623 = vmul.f32 %v2579, %v2619
    %2626 = vrot.lane.b32.xlu0 %v2610, 96
    %v2627 = vpop.permute.xlu0 %2626
    %2628 = vrot.lane.b32.xlu0 %v2611, 96
    %v2629 = vpop.permute.xlu0 %2628
    %2632 = vst.msk [vmem:[#allocation5] sm:$0xff] %vm128, %v2627
    %2633 = vst.msk [vmem:[#allocation5 + $0x8] sm:$0xff] %vm128, %v2629
    %2636 = vrot.lane.b32.xlu0 %v2622, 32
    %v2637 = vpop.permute.xlu0 %2636
    %2638 = vrot.lane.b32.xlu0 %v2623, 32
    %v2639 = vpop.permute.xlu0 %2638
    %2642 = vst.msk [vmem:[#allocation4] sm:$0xff] %vm128, %v2637
    %2643 = vst.msk [vmem:[#allocation4 + $0x8] sm:$0xff] %vm128, %v2639
    %vm2644 = vcmp.le.s32.totalorder %v45, 4
    %vm2645 = vcmp.le.s32.totalorder %v46, 4
    %vm2646 = vcmp.gt.s32.totalorder %v47, 4
    %vm2647 = vcmp.gt.s32.totalorder %v48, 4
    %vm2648 = vmand %vm2644, %vm2646
    %vm2649 = vmand %vm2645, %vm2647
    %v2650 = vld [vmem:[#allocation6] sm:$0xff]
    %v2651 = vld [vmem:[#allocation6 + $0x8] sm:$0xff]
    %v2652 = vsel %vm2648, 1, 0
    %v2653 = vsel %vm2649, 1, 0
    %2654 = vset.pattern.permute.xlu0 0
    %2655 = vperm.xlu0 %2654, %v2652
    %v2656 = vpop.permute.xlu0 %2655
    %2657 = vset.pattern.permute.xlu0 0
    %2658 = vperm.xlu0 %2657, %v2653
    %v2659 = vpop.permute.xlu0 %2658
    %vm2660 = vcmp.eq.s32.totalorder %v2656, 1
    %vm2661 = vcmp.eq.s32.totalorder %v2659, 1
    %v2662 = vsel %vm2660, %v2622, -inf
    %v2663 = vsel %vm2661, %v2623, -inf
    %2666 = vrot.lane.b32.xlu0 %v2662, 32
    %v2667 = vpop.permute.xlu0 %2666
    %2668 = vrot.lane.b32.xlu0 %v2663, 32
    %v2669 = vpop.permute.xlu0 %2668
    %v2672 = vmax.f32 %v2650, %v2667
    %v2673 = vmax.f32 %v2651, %v2669
    %2674 = vst.msk [vmem:[#allocation6] sm:$0xff] %vm128, %v2672
    %2675 = vst.msk [vmem:[#allocation6 + $0x8] sm:$0xff] %vm128, %v2673
    %v2676 = vld [vmem:[#allocation2 + $0x50] sm:$0xff]
    %v2677 = vld [vmem:[#allocation2 + $0x58] sm:$0xff]
    %v2678 = vld [vmem:[#allocation4] sm:$0xff]
    %v2679 = vld [vmem:[#allocation4 + $0x8] sm:$0xff]
    %v2680 = vpack.c.bf16 %v2679, %v2678
    %v2681 = vld [vmem:[%s7] sm:$0xf]
    %v2682 = vld [vmem:[%s7 + $0x4] sm:$0xf]
    %v2683 = vld [vmem:[%s7 + $0x8] sm:$0xf]
    %v2684 = vld [vmem:[%s7 + $0xc] sm:$0xf]
    %v2689 = vunpack.c.l.b16 %v2681
    %v2690 = vunpack.c.l.b16 %v2682
    %v2691 = vunpack.c.l.b16 %v2683
    %v2692 = vunpack.c.l.b16 %v2684
    %v2693 = vpack.c.b16 %v2690, %v2689
    %v2694 = vpack.c.b16 %v2692, %v2691
    %v2698 = vsel %vm128, %v2680, 0
    %2700 = vmatprep.subr.bf16.mxu0 0
    %2701 = vmatpush1.bf16.msra.mxu0 0
    %2702 = vmatprep.subr.bf16.mxu0 0
    %2703 = vmatpush1.bf16.msra.mxu0 0
    %2704 = vmatprep.subr.bf16.mxu0 0
    %2705 = vmatpush1.bf16.msra.mxu0 0
    %2706 = vmatprep.subr.bf16.mxu0 0
    %2707 = vmatpush1.bf16.msra.mxu0 0
    %2708 = vmatprep.subr.bf16.mxu0 0
    %2709 = vmatpush1.bf16.msra.mxu0 0
    %2710 = vmatprep.subr.bf16.mxu0 0
    %2711 = vmatpush1.bf16.msra.mxu0 0
    %2712 = vmatprep.subr.bf16.mxu0 0
    %2713 = vmatpush1.bf16.msra.mxu0 %v2694
    %2714 = vmatprep.subr.bf16.mxu0 0
    %2715 = vmatpush1.bf16.msra.mxu0 %v2693
    %2716 = vmatprep.subr.bf16.mxu0 0
    %2717 = vmatpush2.bf16.msra.mxu0 0
    %2718 = vmatprep.subr.bf16.mxu0 0
    %2719 = vmatpush2.bf16.msra.mxu0 0
    %2720 = vmatprep.subr.bf16.mxu0 0
    %2721 = vmatpush2.bf16.msra.mxu0 0
    %2722 = vmatprep.subr.bf16.mxu0 0
    %2723 = vmatpush2.bf16.msra.mxu0 0
    %2724 = vmatprep.subr.bf16.mxu0 0
    %2725 = vmatpush2.bf16.msra.mxu0 0
    %2726 = vmatprep.subr.bf16.mxu0 0
    %2727 = vmatpush2.bf16.msra.mxu0 0
    %2728 = vmatprep.subr.bf16.mxu0 0
    %2729 = vmatpush2.bf16.msra.mxu0 0
    %2730 = vmatprep.subr.bf16.mxu0 0
    %2731 = vmatpush2.bf16.msra.mxu0 0
    %2732 = vmatprep.mubr.bf16.mxu0 0
    %2733 = vmatmul.mubr.bf16.gmra.mxu0 %v2698
    %v2734 = vpop.f32.mrf.mxu0
    %v2735 = vadd.f32 0.0, %v2734
    %v2736 = vpop.f32.mrf.mxu0
    %v2737 = vpop.f32.mrf.mxu0
    %v2738 = vadd.f32 0.0, %v2737
    %v2739 = vpop.f32.mrf.mxu0
    %2740 = vdwg.mxu0
    %v2741 = vadd.f32 %v2676, %v2735
    %v2742 = vadd.f32 %v2677, %v2738
    %v2743 = vtanh.pop %v2741
    %v2744 = vtanh.pop %v2742
    %v2745 = vxor.u32 %v2741, 2147483648
    %v2746 = vxor.u32 %v2742, 2147483648
    %v2747 = vmul.f32 %v2745, 1.442695
    %v2748 = vpow.pop %v2747
    %v2749 = vmul.f32 %v2746, 1.442695
    %v2750 = vpow.pop %v2749
    %v2751 = vadd.f32 %v2748, 1.0
    %v2752 = vadd.f32 %v2750, 1.0
    %v2753 = vrcp.pop %v2751
    %v2754 = vmul.f32 1.0, %v2753
    %v2755 = vrcp.pop %v2752
    %v2756 = vmul.f32 1.0, %v2755
    %v2757 = vsel %vm44, %v2743, %v2754
    %v2758 = vsel %vm44, %v2744, %v2756
    %v2759 = vld [vmem:[#allocation5] sm:$0xff]
    %v2760 = vld [vmem:[#allocation5 + $0x8] sm:$0xff]
    %2763 = vrot.lane.b32.xlu0 %v2759, 32
    %v2764 = vpop.permute.xlu0 %2763
    %2765 = vrot.lane.b32.xlu0 %v2760, 32
    %v2766 = vpop.permute.xlu0 %2765
    %v2769 = vmul.f32 %v2757, %v2764
    %v2770 = vmul.f32 %v2758, %v2766
    %2773 = vrot.lane.b32.xlu0 %v2757, 64
    %v2774 = vpop.permute.xlu0 %2773
    %2775 = vrot.lane.b32.xlu0 %v2758, 64
    %v2776 = vpop.permute.xlu0 %2775
    %v2779 = vmul.f32 %v2757, %v2774
    %v2780 = vmul.f32 %v2758, %v2776
    %2783 = vrot.lane.b32.xlu0 %v2779, 32
    %v2784 = vpop.permute.xlu0 %2783
    %2785 = vrot.lane.b32.xlu0 %v2780, 32
    %v2786 = vpop.permute.xlu0 %2785
    %v2789 = vadd.f32 %v2769, %v2784
    %v2790 = vadd.f32 %v2770, %v2786
    %v2791 = vtanh.pop %v2789
    %v2792 = vtanh.pop %v2790
    %2795 = vrot.lane.b32.xlu0 %v2791, 64
    %v2796 = vpop.permute.xlu0 %2795
    %2797 = vrot.lane.b32.xlu0 %v2792, 64
    %v2798 = vpop.permute.xlu0 %2797
    %v2801 = vmul.f32 %v2757, %v2796
    %v2802 = vmul.f32 %v2758, %v2798
    %2805 = vrot.lane.b32.xlu0 %v2789, 96
    %v2806 = vpop.permute.xlu0 %2805
    %2807 = vrot.lane.b32.xlu0 %v2790, 96
    %v2808 = vpop.permute.xlu0 %2807
    %2811 = vst.msk [vmem:[#allocation5] sm:$0xff] %vm128, %v2806
    %2812 = vst.msk [vmem:[#allocation5 + $0x8] sm:$0xff] %vm128, %v2808
    %2815 = vrot.lane.b32.xlu0 %v2801, 32
    %v2816 = vpop.permute.xlu0 %2815
    %2817 = vrot.lane.b32.xlu0 %v2802, 32
    %v2818 = vpop.permute.xlu0 %2817
    %2821 = vst.msk [vmem:[#allocation4] sm:$0xff] %vm128, %v2816
    %2822 = vst.msk [vmem:[#allocation4 + $0x8] sm:$0xff] %vm128, %v2818
    %vm2823 = vcmp.le.s32.totalorder %v45, 5
    %vm2824 = vcmp.le.s32.totalorder %v46, 5
    %vm2825 = vcmp.gt.s32.totalorder %v47, 5
    %vm2826 = vcmp.gt.s32.totalorder %v48, 5
    %vm2827 = vmand %vm2823, %vm2825
    %vm2828 = vmand %vm2824, %vm2826
    %v2829 = vld [vmem:[#allocation6] sm:$0xff]
    %v2830 = vld [vmem:[#allocation6 + $0x8] sm:$0xff]
    %v2831 = vsel %vm2827, 1, 0
    %v2832 = vsel %vm2828, 1, 0
    %2833 = vset.pattern.permute.xlu0 0
    %2834 = vperm.xlu0 %2833, %v2831
    %v2835 = vpop.permute.xlu0 %2834
    %2836 = vset.pattern.permute.xlu0 0
    %2837 = vperm.xlu0 %2836, %v2832
    %v2838 = vpop.permute.xlu0 %2837
    %vm2839 = vcmp.eq.s32.totalorder %v2835, 1
    %vm2840 = vcmp.eq.s32.totalorder %v2838, 1
    %v2841 = vsel %vm2839, %v2801, -inf
    %v2842 = vsel %vm2840, %v2802, -inf
    %2845 = vrot.lane.b32.xlu0 %v2841, 32
    %v2846 = vpop.permute.xlu0 %2845
    %2847 = vrot.lane.b32.xlu0 %v2842, 32
    %v2848 = vpop.permute.xlu0 %2847
    %v2851 = vmax.f32 %v2829, %v2846
    %v2852 = vmax.f32 %v2830, %v2848
    %2853 = vst.msk [vmem:[#allocation6] sm:$0xff] %vm128, %v2851
    %2854 = vst.msk [vmem:[#allocation6 + $0x8] sm:$0xff] %vm128, %v2852
    %v2855 = vld [vmem:[#allocation2 + $0x60] sm:$0xff]
    %v2856 = vld [vmem:[#allocation2 + $0x68] sm:$0xff]
    %v2857 = vld [vmem:[#allocation4] sm:$0xff]
    %v2858 = vld [vmem:[#allocation4 + $0x8] sm:$0xff]
    %v2859 = vpack.c.bf16 %v2858, %v2857
    %v2860 = vld [vmem:[%s7] sm:$0xf]
    %v2861 = vld [vmem:[%s7 + $0x4] sm:$0xf]
    %v2862 = vld [vmem:[%s7 + $0x8] sm:$0xf]
    %v2863 = vld [vmem:[%s7 + $0xc] sm:$0xf]
    %v2868 = vunpack.c.l.b16 %v2860
    %v2869 = vunpack.c.l.b16 %v2861
    %v2870 = vunpack.c.l.b16 %v2862
    %v2871 = vunpack.c.l.b16 %v2863
    %v2872 = vpack.c.b16 %v2869, %v2868
    %v2873 = vpack.c.b16 %v2871, %v2870
    %v2877 = vsel %vm128, %v2859, 0
    %2879 = vmatprep.subr.bf16.mxu0 0
    %2880 = vmatpush1.bf16.msra.mxu0 0
    %2881 = vmatprep.subr.bf16.mxu0 0
    %2882 = vmatpush1.bf16.msra.mxu0 0
    %2883 = vmatprep.subr.bf16.mxu0 0
    %2884 = vmatpush1.bf16.msra.mxu0 0
    %2885 = vmatprep.subr.bf16.mxu0 0
    %2886 = vmatpush1.bf16.msra.mxu0 0
    %2887 = vmatprep.subr.bf16.mxu0 0
    %2888 = vmatpush1.bf16.msra.mxu0 0
    %2889 = vmatprep.subr.bf16.mxu0 0
    %2890 = vmatpush1.bf16.msra.mxu0 0
    %2891 = vmatprep.subr.bf16.mxu0 0
    %2892 = vmatpush1.bf16.msra.mxu0 %v2873
    %2893 = vmatprep.subr.bf16.mxu0 0
    %2894 = vmatpush1.bf16.msra.mxu0 %v2872
    %2895 = vmatprep.subr.bf16.mxu0 0
    %2896 = vmatpush2.bf16.msra.mxu0 0
    %2897 = vmatprep.subr.bf16.mxu0 0
    %2898 = vmatpush2.bf16.msra.mxu0 0
    %2899 = vmatprep.subr.bf16.mxu0 0
    %2900 = vmatpush2.bf16.msra.mxu0 0
    %2901 = vmatprep.subr.bf16.mxu0 0
    %2902 = vmatpush2.bf16.msra.mxu0 0
    %2903 = vmatprep.subr.bf16.mxu0 0
    %2904 = vmatpush2.bf16.msra.mxu0 0
    %2905 = vmatprep.subr.bf16.mxu0 0
    %2906 = vmatpush2.bf16.msra.mxu0 0
    %2907 = vmatprep.subr.bf16.mxu0 0
    %2908 = vmatpush2.bf16.msra.mxu0 0
    %2909 = vmatprep.subr.bf16.mxu0 0
    %2910 = vmatpush2.bf16.msra.mxu0 0
    %2911 = vmatprep.mubr.bf16.mxu0 0
    %2912 = vmatmul.mubr.bf16.gmra.mxu0 %v2877
    %v2913 = vpop.f32.mrf.mxu0
    %v2914 = vadd.f32 0.0, %v2913
    %v2915 = vpop.f32.mrf.mxu0
    %v2916 = vpop.f32.mrf.mxu0
    %v2917 = vadd.f32 0.0, %v2916
    %v2918 = vpop.f32.mrf.mxu0
    %2919 = vdwg.mxu0
    %v2920 = vadd.f32 %v2855, %v2914
    %v2921 = vadd.f32 %v2856, %v2917
    %v2922 = vtanh.pop %v2920
    %v2923 = vtanh.pop %v2921
    %v2924 = vxor.u32 %v2920, 2147483648
    %v2925 = vxor.u32 %v2921, 2147483648
    %v2926 = vmul.f32 %v2924, 1.442695
    %v2927 = vpow.pop %v2926
    %v2928 = vmul.f32 %v2925, 1.442695
    %v2929 = vpow.pop %v2928
    %v2930 = vadd.f32 %v2927, 1.0
    %v2931 = vadd.f32 %v2929, 1.0
    %v2932 = vrcp.pop %v2930
    %v2933 = vmul.f32 1.0, %v2932
    %v2934 = vrcp.pop %v2931
    %v2935 = vmul.f32 1.0, %v2934
    %v2936 = vsel %vm44, %v2922, %v2933
    %v2937 = vsel %vm44, %v2923, %v2935
    %v2938 = vld [vmem:[#allocation5] sm:$0xff]
    %v2939 = vld [vmem:[#allocation5 + $0x8] sm:$0xff]
    %2942 = vrot.lane.b32.xlu0 %v2938, 32
    %v2943 = vpop.permute.xlu0 %2942
    %2944 = vrot.lane.b32.xlu0 %v2939, 32
    %v2945 = vpop.permute.xlu0 %2944
    %v2948 = vmul.f32 %v2936, %v2943
    %v2949 = vmul.f32 %v2937, %v2945
    %2952 = vrot.lane.b32.xlu0 %v2936, 64
    %v2953 = vpop.permute.xlu0 %2952
    %2954 = vrot.lane.b32.xlu0 %v2937, 64
    %v2955 = vpop.permute.xlu0 %2954
    %v2958 = vmul.f32 %v2936, %v2953
    %v2959 = vmul.f32 %v2937, %v2955
    %2962 = vrot.lane.b32.xlu0 %v2958, 32
    %v2963 = vpop.permute.xlu0 %2962
    %2964 = vrot.lane.b32.xlu0 %v2959, 32
    %v2965 = vpop.permute.xlu0 %2964
    %v2968 = vadd.f32 %v2948, %v2963
    %v2969 = vadd.f32 %v2949, %v2965
    %v2970 = vtanh.pop %v2968
    %v2971 = vtanh.pop %v2969
    %2974 = vrot.lane.b32.xlu0 %v2970, 64
    %v2975 = vpop.permute.xlu0 %2974
    %2976 = vrot.lane.b32.xlu0 %v2971, 64
    %v2977 = vpop.permute.xlu0 %2976
    %v2980 = vmul.f32 %v2936, %v2975
    %v2981 = vmul.f32 %v2937, %v2977
    %2984 = vrot.lane.b32.xlu0 %v2968, 96
    %v2985 = vpop.permute.xlu0 %2984
    %2986 = vrot.lane.b32.xlu0 %v2969, 96
    %v2987 = vpop.permute.xlu0 %2986
    %2990 = vst.msk [vmem:[#allocation5] sm:$0xff] %vm128, %v2985
    %2991 = vst.msk [vmem:[#allocation5 + $0x8] sm:$0xff] %vm128, %v2987
    %2994 = vrot.lane.b32.xlu0 %v2980, 32
    %v2995 = vpop.permute.xlu0 %2994
    %2996 = vrot.lane.b32.xlu0 %v2981, 32
    %v2997 = vpop.permute.xlu0 %2996
    %3000 = vst.msk [vmem:[#allocation4] sm:$0xff] %vm128, %v2995
    %3001 = vst.msk [vmem:[#allocation4 + $0x8] sm:$0xff] %vm128, %v2997
    %vm3002 = vcmp.le.s32.totalorder %v45, 6
    %vm3003 = vcmp.le.s32.totalorder %v46, 6
    %vm3004 = vcmp.gt.s32.totalorder %v47, 6
    %vm3005 = vcmp.gt.s32.totalorder %v48, 6
    %vm3006 = vmand %vm3002, %vm3004
    %vm3007 = vmand %vm3003, %vm3005
    %v3008 = vld [vmem:[#allocation6] sm:$0xff]
    %v3009 = vld [vmem:[#allocation6 + $0x8] sm:$0xff]
    %v3010 = vsel %vm3006, 1, 0
    %v3011 = vsel %vm3007, 1, 0
    %3012 = vset.pattern.permute.xlu0 0
    %3013 = vperm.xlu0 %3012, %v3010
    %v3014 = vpop.permute.xlu0 %3013
    %3015 = vset.pattern.permute.xlu0 0
    %3016 = vperm.xlu0 %3015, %v3011
    %v3017 = vpop.permute.xlu0 %3016
    %vm3018 = vcmp.eq.s32.totalorder %v3014, 1
    %vm3019 = vcmp.eq.s32.totalorder %v3017, 1
    %v3020 = vsel %vm3018, %v2980, -inf
    %v3021 = vsel %vm3019, %v2981, -inf
    %3024 = vrot.lane.b32.xlu0 %v3020, 32
    %v3025 = vpop.permute.xlu0 %3024
    %3026 = vrot.lane.b32.xlu0 %v3021, 32
    %v3027 = vpop.permute.xlu0 %3026
    %v3030 = vmax.f32 %v3008, %v3025
    %v3031 = vmax.f32 %v3009, %v3027
    %3032 = vst.msk [vmem:[#allocation6] sm:$0xff] %vm128, %v3030
    %3033 = vst.msk [vmem:[#allocation6 + $0x8] sm:$0xff] %vm128, %v3031
    %v3034 = vld [vmem:[#allocation2 + $0x70] sm:$0xff]
    %v3035 = vld [vmem:[#allocation2 + $0x78] sm:$0xff]
    %v3036 = vld [vmem:[#allocation4] sm:$0xff]
    %v3037 = vld [vmem:[#allocation4 + $0x8] sm:$0xff]
    %v3038 = vpack.c.bf16 %v3037, %v3036
    %v3039 = vld [vmem:[%s7] sm:$0xf]
    %v3040 = vld [vmem:[%s7 + $0x4] sm:$0xf]
    %v3041 = vld [vmem:[%s7 + $0x8] sm:$0xf]
    %v3042 = vld [vmem:[%s7 + $0xc] sm:$0xf]
    %v3047 = vunpack.c.l.b16 %v3039
    %v3048 = vunpack.c.l.b16 %v3040
    %v3049 = vunpack.c.l.b16 %v3041
    %v3050 = vunpack.c.l.b16 %v3042
    %v3051 = vpack.c.b16 %v3048, %v3047
    %v3052 = vpack.c.b16 %v3050, %v3049
    %v3056 = vsel %vm128, %v3038, 0
    %3058 = vmatprep.subr.bf16.mxu0 0
    %3059 = vmatpush1.bf16.msra.mxu0 0
    %3060 = vmatprep.subr.bf16.mxu0 0
    %3061 = vmatpush1.bf16.msra.mxu0 0
    %3062 = vmatprep.subr.bf16.mxu0 0
    %3063 = vmatpush1.bf16.msra.mxu0 0
    %3064 = vmatprep.subr.bf16.mxu0 0
    %3065 = vmatpush1.bf16.msra.mxu0 0
    %3066 = vmatprep.subr.bf16.mxu0 0
    %3067 = vmatpush1.bf16.msra.mxu0 0
    %3068 = vmatprep.subr.bf16.mxu0 0
    %3069 = vmatpush1.bf16.msra.mxu0 0
    %3070 = vmatprep.subr.bf16.mxu0 0
    %3071 = vmatpush1.bf16.msra.mxu0 %v3052
    %3072 = vmatprep.subr.bf16.mxu0 0
    %3073 = vmatpush1.bf16.msra.mxu0 %v3051
    %3074 = vmatprep.subr.bf16.mxu0 0
    %3075 = vmatpush2.bf16.msra.mxu0 0
    %3076 = vmatprep.subr.bf16.mxu0 0
    %3077 = vmatpush2.bf16.msra.mxu0 0
    %3078 = vmatprep.subr.bf16.mxu0 0
    %3079 = vmatpush2.bf16.msra.mxu0 0
    %3080 = vmatprep.subr.bf16.mxu0 0
    %3081 = vmatpush2.bf16.msra.mxu0 0
    %3082 = vmatprep.subr.bf16.mxu0 0
    %3083 = vmatpush2.bf16.msra.mxu0 0
    %3084 = vmatprep.subr.bf16.mxu0 0
    %3085 = vmatpush2.bf16.msra.mxu0 0
    %3086 = vmatprep.subr.bf16.mxu0 0
    %3087 = vmatpush2.bf16.msra.mxu0 0
    %3088 = vmatprep.subr.bf16.mxu0 0
    %3089 = vmatpush2.bf16.msra.mxu0 0
    %3090 = vmatprep.mubr.bf16.mxu0 0
    %3091 = vmatmul.mubr.bf16.gmra.mxu0 %v3056
    %v3092 = vpop.f32.mrf.mxu0
    %v3093 = vadd.f32 0.0, %v3092
    %v3094 = vpop.f32.mrf.mxu0
    %v3095 = vpop.f32.mrf.mxu0
    %v3096 = vadd.f32 0.0, %v3095
    %v3097 = vpop.f32.mrf.mxu0
    %3098 = vdwg.mxu0
    %v3099 = vadd.f32 %v3034, %v3093
    %v3100 = vadd.f32 %v3035, %v3096
    %v3101 = vtanh.pop %v3099
    %v3102 = vtanh.pop %v3100
    %v3103 = vxor.u32 %v3099, 2147483648
    %v3104 = vxor.u32 %v3100, 2147483648
    %v3105 = vmul.f32 %v3103, 1.442695
    %v3106 = vpow.pop %v3105
    %v3107 = vmul.f32 %v3104, 1.442695
    %v3108 = vpow.pop %v3107
    %v3109 = vadd.f32 %v3106, 1.0
    %v3110 = vadd.f32 %v3108, 1.0
    %v3111 = vrcp.pop %v3109
    %v3112 = vmul.f32 1.0, %v3111
    %v3113 = vrcp.pop %v3110
    %v3114 = vmul.f32 1.0, %v3113
    %v3115 = vsel %vm44, %v3101, %v3112
    %v3116 = vsel %vm44, %v3102, %v3114
    %v3117 = vld [vmem:[#allocation5] sm:$0xff]
    %v3118 = vld [vmem:[#allocation5 + $0x8] sm:$0xff]
    %3121 = vrot.lane.b32.xlu0 %v3117, 32
    %v3122 = vpop.permute.xlu0 %3121
    %3123 = vrot.lane.b32.xlu0 %v3118, 32
    %v3124 = vpop.permute.xlu0 %3123
    %v3127 = vmul.f32 %v3115, %v3122
    %v3128 = vmul.f32 %v3116, %v3124
    %3131 = vrot.lane.b32.xlu0 %v3115, 64
    %v3132 = vpop.permute.xlu0 %3131
    %3133 = vrot.lane.b32.xlu0 %v3116, 64
    %v3134 = vpop.permute.xlu0 %3133
    %v3137 = vmul.f32 %v3115, %v3132
    %v3138 = vmul.f32 %v3116, %v3134
    %3141 = vrot.lane.b32.xlu0 %v3137, 32
    %v3142 = vpop.permute.xlu0 %3141
    %3143 = vrot.lane.b32.xlu0 %v3138, 32
    %v3144 = vpop.permute.xlu0 %3143
    %v3147 = vadd.f32 %v3127, %v3142
    %v3148 = vadd.f32 %v3128, %v3144
    %v3149 = vtanh.pop %v3147
    %v3150 = vtanh.pop %v3148
    %3153 = vrot.lane.b32.xlu0 %v3149, 64
    %v3154 = vpop.permute.xlu0 %3153
    %3155 = vrot.lane.b32.xlu0 %v3150, 64
    %v3156 = vpop.permute.xlu0 %3155
    %v3159 = vmul.f32 %v3115, %v3154
    %v3160 = vmul.f32 %v3116, %v3156
    %3163 = vrot.lane.b32.xlu0 %v3147, 96
    %v3164 = vpop.permute.xlu0 %3163
    %3165 = vrot.lane.b32.xlu0 %v3148, 96
    %v3166 = vpop.permute.xlu0 %3165
    %3169 = vst.msk [vmem:[#allocation5] sm:$0xff] %vm128, %v3164
    %3170 = vst.msk [vmem:[#allocation5 + $0x8] sm:$0xff] %vm128, %v3166
    %3173 = vrot.lane.b32.xlu0 %v3159, 32
    %v3174 = vpop.permute.xlu0 %3173
    %3175 = vrot.lane.b32.xlu0 %v3160, 32
    %v3176 = vpop.permute.xlu0 %3175
    %3179 = vst.msk [vmem:[#allocation4] sm:$0xff] %vm128, %v3174
    %3180 = vst.msk [vmem:[#allocation4 + $0x8] sm:$0xff] %vm128, %v3176
    %vm3181 = vcmp.le.s32.totalorder %v45, 7
    %vm3182 = vcmp.le.s32.totalorder %v46, 7
    %vm3183 = vcmp.gt.s32.totalorder %v47, 7
    %vm3184 = vcmp.gt.s32.totalorder %v48, 7
    %vm3185 = vmand %vm3181, %vm3183
    %vm3186 = vmand %vm3182, %vm3184
    %v3187 = vld [vmem:[#allocation6] sm:$0xff]
    %v3188 = vld [vmem:[#allocation6 + $0x8] sm:$0xff]
    %v3189 = vsel %vm3185, 1, 0
    %v3190 = vsel %vm3186, 1, 0
    %3191 = vset.pattern.permute.xlu0 0
    %3192 = vperm.xlu0 %3191, %v3189
    %v3193 = vpop.permute.xlu0 %3192
    %3194 = vset.pattern.permute.xlu0 0
    %3195 = vperm.xlu0 %3194, %v3190
    %v3196 = vpop.permute.xlu0 %3195
    %vm3197 = vcmp.eq.s32.totalorder %v3193, 1
    %vm3198 = vcmp.eq.s32.totalorder %v3196, 1
    %v3199 = vsel %vm3197, %v3159, -inf
    %v3200 = vsel %vm3198, %v3160, -inf
    %3203 = vrot.lane.b32.xlu0 %v3199, 32
    %v3204 = vpop.permute.xlu0 %3203
    %3205 = vrot.lane.b32.xlu0 %v3200, 32
    %v3206 = vpop.permute.xlu0 %3205
    %v3209 = vmax.f32 %v3187, %v3204
    %v3210 = vmax.f32 %v3188, %v3206
    %3211 = vst.msk [vmem:[#allocation6] sm:$0xff] %vm128, %v3209
    %3212 = vst.msk [vmem:[#allocation6 + $0x8] sm:$0xff] %vm128, %v3210
    %vm3213 = vcmp.gt.s32.totalorder %v47, %v45
    %vm3214 = vcmp.gt.s32.totalorder %v48, %v46
    %v3215 = vld [vmem:[#allocation6] sm:$0xff]
    %v3216 = vld [vmem:[#allocation6 + $0x8] sm:$0xff]
    %v3217 = vsel %vm3213, 1, 0
    %v3218 = vsel %vm3214, 1, 0
    %3219 = vset.pattern.permute.xlu0 0
    %3220 = vperm.xlu0 %3219, %v3217
    %v3221 = vpop.permute.xlu0 %3220
    %3222 = vset.pattern.permute.xlu0 0
    %3223 = vperm.xlu0 %3222, %v3218
    %v3224 = vpop.permute.xlu0 %3223
    %vm3225 = vcmp.eq.s32.totalorder %v3221, 1
    %vm3226 = vcmp.eq.s32.totalorder %v3224, 1
    %v3227 = vsel %vm3225, %v3215, 0.0
    %v3228 = vsel %vm3226, %v3216, 0.0
    %v3229 = vpack.c.bf16 %v3228, %v3227
    %v3230 = vld [vmem:[%s9] sm:$0xf]
    %v3231 = vld [vmem:[%s9 + $0x4] sm:$0xf]
    %v3232 = vld [vmem:[%s9 + $0x8] sm:$0xf]
    %v3233 = vld [vmem:[%s9 + $0xc] sm:$0xf]
    %v3234 = vld [vmem:[%s10] sm:$0x1]
    %v3236 = vlaneseq
    %v3237 = vshrl.u32 %v3236, 7
    %v3238 = vsub.s32 0, %v3237
    %v3239 = vrot.slane %v3234, %v3238
    %v3245 = vunpack.c.l.b16 %v3230
    %v3246 = vunpack.c.l.b16 %v3231
    %v3247 = vunpack.c.l.b16 %v3232
    %v3248 = vunpack.c.l.b16 %v3233
    %v3249 = vpack.c.b16 %v3246, %v3245
    %v3250 = vpack.c.b16 %v3248, %v3247
    %v3254 = vsel %vm128, %v3229, 0
    %3256 = vmatprep.subr.bf16.mxu0 0
    %3257 = vmatpush1.bf16.msra.mxu0 0
    %3258 = vmatprep.subr.bf16.mxu0 0
    %3259 = vmatpush1.bf16.msra.mxu0 0
    %3260 = vmatprep.subr.bf16.mxu0 0
    %3261 = vmatpush1.bf16.msra.mxu0 0
    %3262 = vmatprep.subr.bf16.mxu0 0
    %3263 = vmatpush1.bf16.msra.mxu0 0
    %3264 = vmatprep.subr.bf16.mxu0 0
    %3265 = vmatpush1.bf16.msra.mxu0 0
    %3266 = vmatprep.subr.bf16.mxu0 0
    %3267 = vmatpush1.bf16.msra.mxu0 0
    %3268 = vmatprep.subr.bf16.mxu0 0
    %3269 = vmatpush1.bf16.msra.mxu0 %v3250
    %3270 = vmatprep.subr.bf16.mxu0 0
    %3271 = vmatpush1.bf16.msra.mxu0 %v3249
    %3272 = vmatprep.subr.bf16.mxu0 0
    %3273 = vmatpush2.bf16.msra.mxu0 0
    %3274 = vmatprep.subr.bf16.mxu0 0
    %3275 = vmatpush2.bf16.msra.mxu0 0
    %3276 = vmatprep.subr.bf16.mxu0 0
    %3277 = vmatpush2.bf16.msra.mxu0 0
    %3278 = vmatprep.subr.bf16.mxu0 0
    %3279 = vmatpush2.bf16.msra.mxu0 0
    %3280 = vmatprep.subr.bf16.mxu0 0
    %3281 = vmatpush2.bf16.msra.mxu0 0
    %3282 = vmatprep.subr.bf16.mxu0 0
    %3283 = vmatpush2.bf16.msra.mxu0 0
    %3284 = vmatprep.subr.bf16.mxu0 0
    %3285 = vmatpush2.bf16.msra.mxu0 0
    %3286 = vmatprep.subr.bf16.mxu0 0
    %3287 = vmatpush2.bf16.msra.mxu0 0
    %3288 = vmatprep.mubr.bf16.mxu0 0
    %3289 = vmatmul.mubr.bf16.gmra.mxu0 %v3254
    %v3290 = vpop.f32.mrf.mxu0
    %v3291 = vadd.f32 %v3239, %v3290
    %v3292 = vpop.f32.mrf.mxu0
    %v3293 = vpop.f32.mrf.mxu0
    %v3294 = vadd.f32 %v3239, %v3293
    %v3295 = vpop.f32.mrf.mxu0
    %3296 = vdwg.mxu0
    %3297 = vst [vmem:[#allocation7] sm:$0xff] %v3291
    %3298 = vst [vmem:[#allocation7 + $0x8] sm:$0xff] %v3294
    // Predicated region
    $region46: #{tpu_custom_call.1} parent=1 // pred_check
      _
    $region47: #{tpu_custom_call.1} parent=1 // pred_check_branch
      %3300 = sbr.rel (0) target = $region49
    $region48: #{tpu_custom_call.1} parent=1 // pred_region
      %s3302 = ssub.s32 256, 256
      %3303 = vsyncadd [#allocation8], %s3302
      %s3304 = sshll.u32 [#allocation7], 4
      %s3305 = int_to_ptr.vmem [resolvable:$true] %s3304
      %3310 = dma.vmem_to_hbm [thread:$0]  %s3305, 256, %s11, [#allocation8], 128, 128, 8
    $region49: #{tpu_custom_call.1} parent=1 // pred_fallthru
      _
    // Predicated region
    $region50: #{tpu_custom_call.1} parent=1 // pred_check
      _
    $region51: #{tpu_custom_call.1} parent=1 // pred_check_branch
      %3312 = sbr.rel (0) target = $region53
    $region52: #{tpu_custom_call.1} parent=1 // pred_region
      %3313 = dma.done [#allocation8], 256
    $region53: #{tpu_custom_call.1} parent=1 // pred_fallthru
      _
    %3314 = vsyncpa [#allocation8], 1

</llo_original>
